<compile_context>
chip_gen: v6e
topology: v6e:2x2x1
jax: 0.10.0
libtpu: 0.0.40
codegen_flags: <defaults>
</compile_context>

<pallas_src>
import functools

import jax
import jax.numpy as jnp
from jax.experimental import pallas as pl
from jax.experimental.pallas import tpu as pltpu

# ---------------- model config (small, consistent with the module) ----------------
N_TOKEN = 26
N_INPUT = 32      # embedding dim (module default 100, scaled down)
HIDDEN = 32       # hidden_dim   (module default 100, scaled down); must be a power of 2 here
NUM_LAYERS = 3
SEQ_LEN = 8
BATCH = 16        # total batch; split into NUM_SHARDS shards of 8 (sublane-aligned)
NUM_SHARDS = 2    # grid axis; maps to the two v7x TensorCores, sequential elsewhere
V_PAD = 32        # vocab padded to a sublane multiple for the one-hot matmul

GATE_PERM = (0, 1, 3, 2)   # raw [i, f, g, o] -> fused [i, f, o, g] (sigmoid gates contiguous)


# ---------------- fused forward kernel (one batch shard per grid step) ----------------
def fused_forward_kernel(tok_ref, emb_ref,
                         wih0_ref, whh0_ref, b0_ref,
                         wih1_ref, whh1_ref, b1_ref,
                         wih2_ref, whh2_ref, b2_ref,
                         dec_w_ref, dec_b_ref,
                         out_ref,
                         *, T, B, H):
    """Entire SimpleLSTM forward for one batch shard.

    tok_ref : (T*B, 1) int32      emb_ref : (V_PAD, E) f32
    wihL    : (Din, 8H) f32       whhL    : (2H, 8H) f32 (block-diagonal)   bL : (1, 8H) f32
    dec_w   : (2H, 128) f32 (real column 0)   dec_b : (1, 128) f32
    out_ref : (B, 128) f32 (result in column 0)
    Fused gate columns: [i_f,i_b, f_f,f_b, o_f,o_b, g_f,g_b], each block H wide.
    """
    TB = T * B
    V = emb_ref.shape[0]

    # ---- embedding via one-hot matmul (vocab padded, extra rows never selected) ----
    ids = tok_ref[...]                                            # (TB, 1) int32
    iota = jax.lax.broadcasted_iota(jnp.int32, (TB, V), 1)        # (TB, V)
    onehot = (ids == iota).astype(jnp.float32)
    x = jnp.dot(onehot, emb_ref[...], preferred_element_type=jnp.float32)   # (TB, E)

    # Column mask: within each 2H gate block, first H columns = forward dir, last H = backward dir.
    col = jax.lax.broadcasted_iota(jnp.int32, (B, 8 * H), 1)
    fwd_mask = jnp.bitwise_and(col, 2 * H - 1) < H                # (B, 8H) bool  (H power of 2)

    def run_layer(x_flat, wih_ref, whh_ref, b_ref):
        # Hoisted input projection for all timesteps & both directions; bias folded in once.
        gin_all = (jnp.dot(x_flat, wih_ref[...],
                           preferred_element_type=jnp.float32) + b_ref[...])   # (TB, 8H)
        g_t = [gin_all[t * B:(t + 1) * B, :] for t in range(T)]
        # Pre-merged gate inputs (independent of h/c -> off the recurrent chain):
        # forward gate columns use input time t, backward gate columns use input time T-1-t.
        merged = [jnp.where(fwd_mask, g_t[t], g_t[T - 1 - t]) for t in range(T)]

        whh = whh_ref[...]                                         # (2H, 8H)
        h = jnp.zeros((B, 2 * H), jnp.float32)                     # [h_fwd | h_bwd]
        c = jnp.zeros((B, 2 * H), jnp.float32)                     # [c_fwd | c_bwd]
        hs = []
        for t in range(T):                                         # fully unrolled (T static)
            gates = merged[t] + jnp.dot(h, whh,
                                        preferred_element_type=jnp.float32)   # (B, 8H)
            ifo = jax.nn.sigmoid(gates[:, 0:6 * H])                # i,f,o for both dirs (1 EUP op)
            g = jnp.tanh(gates[:, 6 * H:8 * H])                    # g for both dirs    (1 EUP op)
            i = ifo[:, 0:2 * H]
            f = ifo[:, 2 * H:4 * H]
            o = ifo[:, 4 * H:6 * H]
            c = f * c + i * g
            h = o * jnp.tanh(c)
            hs.append(h)                                           # step-indexed states
        return hs

    hs = run_layer(x, wih0_ref, whh0_ref, b0_ref)
    # TODO(synk): training-mode inter-layer dropout (p=0.5) omitted (eval/inference semantics).
    for wih_ref, whh_ref, b_ref in ((wih1_ref, whh1_ref, b1_ref),
                                    (wih2_ref, whh2_ref, b2_ref)):
        # Time-aligned layer output (done once per layer, off the chain):
        # y[s] = [ h_fwd(step s) | h_bwd(step T-1-s) ]
        ys = [jnp.concatenate([hs[s][:, 0:H], hs[T - 1 - s][:, H:2 * H]], axis=1)
              for s in range(T)]
        hs = run_layer(jnp.concatenate(ys, axis=0), wih_ref, whh_ref, b_ref)

    # 'bi' readout exactly as in the PyTorch module: forward-direction states at t=0 and t=T-1.
    feat = jnp.concatenate([hs[0][:, 0:H], hs[T - 1][:, 0:H]], axis=1)        # (B, 2H)
    out_ref[...] = (jnp.dot(feat, dec_w_ref[...],
                            preferred_element_type=jnp.float32) + dec_b_ref[...])   # (B, 128)


# ---------------- wrapper ----------------
def simple_lstm_forward(tokens, params, num_shards=NUM_SHARDS):
    """tokens: (T, B_total) int32 (seq-major). Returns (B_total, 1) f32."""
    T, B_total = tokens.shape
    H = HIDDEN
    assert H & (H - 1) == 0, "fused lane mask requires hidden_dim to be a power of two"
    assert B_total % num_shards == 0, "batch must divide evenly across shards"
    Bs = B_total // num_shards

    # shard-major flattening: row = shard*(T*Bs) + t*Bs + b
    tok = (tokens.astype(jnp.int32)
           .reshape(T, num_shards, Bs).transpose(1, 0, 2).reshape(num_shards * T * Bs, 1))

    kernel = functools.partial(fused_forward_kernel, T=T, B=Bs, H=H)

    def full_spec(p):
        return pl.BlockSpec(p.shape, lambda i: (0,) * p.ndim)     # weight resident across shards

    weights = (params["emb"],
               params["wih_0"], params["whh_0"], params["b_0"],
               params["wih_1"], params["whh_1"], params["b_1"],
               params["wih_2"], params["whh_2"], params["b_2"],
               params["dec_w"], params["dec_b"])

    out = pl.pallas_call(
        kernel,
        out_shape=jax.ShapeDtypeStruct((num_shards * Bs, 128), jnp.float32),
        grid_spec=pltpu.PrefetchScalarGridSpec(
            num_scalar_prefetch=0,
            grid=(num_shards,),
            in_specs=[pl.BlockSpec((T * Bs, 1), lambda i: (i, 0))]
                     + [full_spec(p) for p in weights],
            out_specs=pl.BlockSpec((Bs, 128), lambda i: (i, 0)),
        ),
        compiler_params=pltpu.CompilerParams(dimension_semantics=("parallel",)),
    )(tok, *weights)
    return out[:, 0:1]                                            # (B_total, 1)


# ---------------- host-side weight preparation (direction fusion + padding) ----------------
def _fuse_layer_weights(wih_f, wih_b, whh_f, whh_b, b_f, b_b):
    H = HIDDEN

    def interleave(wf, wb):
        # per-gate column interleave in fused gate order [i, f, o, g]:
        # [i_f, i_b, f_f, f_b, o_f, o_b, g_f, g_b]
        blocks = []
        for g in GATE_PERM:
            blocks.append(wf[:, g * H:(g + 1) * H])
            blocks.append(wb[:, g * H:(g + 1) * H])
        return jnp.concatenate(blocks, axis=1)

    wih_cat = interleave(wih_f, wih_b)                             # (Din, 8H)
    whh_blk = jnp.zeros((2 * H, 8 * H), jnp.float32)               # block-diagonal recurrent
    for k, g in enumerate(GATE_PERM):
        whh_blk = whh_blk.at[0:H, (2 * k) * H:(2 * k + 1) * H].set(whh_f[:, g * H:(g + 1) * H])
        whh_blk = whh_blk.at[H:2 * H, (2 * k + 1) * H:(2 * k + 2) * H].set(whh_b[:, g * H:(g + 1) * H])
    b_cat = interleave(b_f, b_b)                                   # (1, 8H)
    return wih_cat, whh_blk, b_cat


def prepare_fused_params(params):
    fp = {}
    fp["emb"] = jnp.zeros((V_PAD, N_INPUT), jnp.float32).at[:N_TOKEN].set(params["emb"])
    for layer in range(NUM_LAYERS):
        wih, whh, b = _fuse_layer_weights(
            params[f"wih_{layer}_0"], params[f"wih_{layer}_1"],
            params[f"whh_{layer}_0"], params[f"whh_{layer}_1"],
            params[f"b_{layer}_0"], params[f"b_{layer}_1"])
        fp[f"wih_{layer}"] = wih
        fp[f"whh_{layer}"] = whh
        fp[f"b_{layer}"] = b
    # lane-dense decoder: real weights/bias in column 0, rest zero
    fp["dec_w"] = jnp.zeros((2 * HIDDEN, 128), jnp.float32).at[:, 0:1].set(params["dec_w"])
    fp["dec_b"] = jnp.zeros((1, 128), jnp.float32).at[:, 0:1].set(params["dec_b"])
    return fp


# ---------------- pure-JAX reference (for correctness check) ----------------
def _ref_lstm_dir(x, wih, whh, b):
    T, B, _ = x.shape
    H = whh.shape[0]
    h = jnp.zeros((B, H), jnp.float32)
    c = jnp.zeros((B, H), jnp.float32)
    outs = []
    for t in range(T):
        gates = x[t] @ wih + h @ whh + b
        i = jax.nn.sigmoid(gates[:, 0 * H:1 * H])
        f = jax.nn.sigmoid(gates[:, 1 * H:2 * H])
        g = jnp.tanh(gates[:, 2 * H:3 * H])
        o = jax.nn.sigmoid(gates[:, 3 * H:4 * H])
        c = f * c + i * g
        h = o * jnp.tanh(c)
        outs.append(h)
    return jnp.stack(outs, axis=0)


def simple_lstm_ref(tokens, params):
    x = params["emb"][tokens]                                      # (T, B, E)
    for layer in range(NUM_LAYERS):
        fwd = _ref_lstm_dir(x, params[f"wih_{layer}_0"],
                            params[f"whh_{layer}_0"], params[f"b_{layer}_0"])
        bwd = _ref_lstm_dir(x[::-1], params[f"wih_{layer}_1"],
                            params[f"whh_{layer}_1"], params[f"b_{layer}_1"])[::-1]
        x = jnp.concatenate([fwd, bwd], axis=-1)
    feat = jnp.concatenate([x[0, :, :HIDDEN], x[-1, :, :HIDDEN]], axis=1)
    return feat @ params["dec_w"] + params["dec_b"]


# ---------------- deterministic parameter init (raw weights use PyTorch [i,f,g,o] order) ----------------
def init_params(key):
    params = {}
    scale = 1.0 / jnp.sqrt(HIDDEN).astype(jnp.float32)

    def uni(k, shape, s):
        return jax.random.uniform(k, shape, jnp.float32, -s, s)

    keys = iter(jax.random.split(key, 64))
    params["emb"] = jax.random.normal(next(keys), (N_TOKEN, N_INPUT), jnp.float32)
    for layer in range(NUM_LAYERS):
        din = N_INPUT if layer == 0 else 2 * HIDDEN
        for d in range(2):
            params[f"wih_{layer}_{d}"] = uni(next(keys), (din, 4 * HIDDEN), scale)
            params[f"whh_{layer}_{d}"] = uni(next(keys), (HIDDEN, 4 * HIDDEN), scale)
            # combined b_ih + b_hh
            params[f"b_{layer}_{d}"] = uni(next(keys), (1, 4 * HIDDEN), 2 * scale)
    params["dec_w"] = uni(next(keys), (2 * HIDDEN, 1), scale)
    params["dec_b"] = uni(next(keys), (1, 1), scale)
    return params


if __name__ == "__main__":
    key = jax.random.PRNGKey(0)
    pkey, tkey = jax.random.split(key)
    params = init_params(pkey)
    fused_params = prepare_fused_params(params)
    tokens = jax.random.randint(tkey, (SEQ_LEN, BATCH), 0, N_TOKEN, dtype=jnp.int32)

    fwd = jax.jit(functools.partial(simple_lstm_forward, params=fused_params))
    out = jax.block_until_ready(fwd(tokens))
    assert out.shape == (BATCH, 1), out.shape

    ref = simple_lstm_ref(tokens, params)
    assert jnp.allclose(out, ref, atol=1e-4, rtol=1e-4), (out, ref)

    print("KERNEL_OK")
</pallas_src>

<mosaic_0001>
module attributes {stable_mosaic.version = 11 : i64} {
  func.func @fused_forward_kernel(%arg0: i32, %arg1: memref<64x1xi32, #tpu.memory_space<vmem>>, %arg2: memref<32x32xf32, #tpu.memory_space<vmem>>, %arg3: memref<32x256xf32, #tpu.memory_space<vmem>>, %arg4: memref<64x256xf32, #tpu.memory_space<vmem>>, %arg5: memref<1x256xf32, #tpu.memory_space<vmem>>, %arg6: memref<64x256xf32, #tpu.memory_space<vmem>>, %arg7: memref<64x256xf32, #tpu.memory_space<vmem>>, %arg8: memref<1x256xf32, #tpu.memory_space<vmem>>, %arg9: memref<64x256xf32, #tpu.memory_space<vmem>>, %arg10: memref<64x256xf32, #tpu.memory_space<vmem>>, %arg11: memref<1x256xf32, #tpu.memory_space<vmem>>, %arg12: memref<64x128xf32, #tpu.memory_space<vmem>>, %arg13: memref<1x128xf32, #tpu.memory_space<vmem>>, %arg14: memref<8x128xf32, #tpu.memory_space<vmem>>) attributes {dimension_semantics = [#tpu.dimension_semantics<parallel>], iteration_bounds = array<i64: 2>, scalar_prefetch = 0 : i64, scratch_operands = 0 : i64, tpu.core_type = #tpu.core_type<tc>, window_params = [{transform_indices = @transform_0, window_bounds = array<i64: 64, 1>}, {pipeline_mode = #tpu.pipeline_mode<synchronous>, transform_indices = @transform_1, window_bounds = array<i64: 32, 32>}, {pipeline_mode = #tpu.pipeline_mode<synchronous>, transform_indices = @transform_2, window_bounds = array<i64: 32, 256>}, {pipeline_mode = #tpu.pipeline_mode<synchronous>, transform_indices = @transform_3, window_bounds = array<i64: 64, 256>}, {pipeline_mode = #tpu.pipeline_mode<synchronous>, transform_indices = @transform_4, window_bounds = array<i64: 1, 256>}, {pipeline_mode = #tpu.pipeline_mode<synchronous>, transform_indices = @transform_5, window_bounds = array<i64: 64, 256>}, {pipeline_mode = #tpu.pipeline_mode<synchronous>, transform_indices = @transform_6, window_bounds = array<i64: 64, 256>}, {pipeline_mode = #tpu.pipeline_mode<synchronous>, transform_indices = @transform_7, window_bounds = array<i64: 1, 256>}, {pipeline_mode = #tpu.pipeline_mode<synchronous>, transform_indices = @transform_8, window_bounds = array<i64: 64, 256>}, {pipeline_mode = #tpu.pipeline_mode<synchronous>, transform_indices = @transform_9, window_bounds = array<i64: 64, 256>}, {pipeline_mode = #tpu.pipeline_mode<synchronous>, transform_indices = @transform_10, window_bounds = array<i64: 1, 256>}, {pipeline_mode = #tpu.pipeline_mode<synchronous>, transform_indices = @transform_11, window_bounds = array<i64: 64, 128>}, {pipeline_mode = #tpu.pipeline_mode<synchronous>, transform_indices = @transform_12, window_bounds = array<i64: 1, 128>}, {transform_indices = @transform_13, window_bounds = array<i64: 8, 128>}]} {
    %c0 = arith.constant 0 : index
    %c0_0 = arith.constant 0 : index
    %0 = vector.load %arg1[%c0, %c0_0] : memref<64x1xi32, #tpu.memory_space<vmem>>, vector<64x1xi32>
    %1 = tpu.iota {dimensions = array<i32: 1>} : vector<64x32xi32>
    %2 = vector.broadcast %0 : vector<64x1xi32> to vector<64x32xi32>
    %3 = arith.cmpi eq, %2, %1 : vector<64x32xi32>
    %4 = arith.extui %3 : vector<64x32xi1> to vector<64x32xi32>
    %5 = arith.sitofp %4 : vector<64x32xi32> to vector<64x32xf32>
    %c0_1 = arith.constant 0 : index
    %c0_2 = arith.constant 0 : index
    %6 = vector.load %arg2[%c0_1, %c0_2] : memref<32x32xf32, #tpu.memory_space<vmem>>, vector<32x32xf32>
    %cst = arith.constant dense<0.000000e+00> : vector<64x32xf32>
    %7 = tpu.matmul %5, %6, %cst {dimension_numbers = #tpu.dot_dimension_numbers<[1], [0], [0], [1], [0, 0, 1, 1], [], []>} : vector<64x32xf32>, vector<32x32xf32>, vector<64x32xf32> -> vector<64x32xf32>
    %8 = tpu.iota {dimensions = array<i32: 1>} : vector<8x256xi32>
    %c63_i32 = arith.constant 63 : i32
    %9 = vector.broadcast %c63_i32 : i32 to vector<8x256xi32>
    %10 = arith.andi %8, %9 : vector<8x256xi32>
    %c32_i32 = arith.constant 32 : i32
    %11 = vector.broadcast %c32_i32 : i32 to vector<8x256xi32>
    %12 = arith.cmpi slt, %10, %11 : vector<8x256xi32>
    %c0_3 = arith.constant 0 : index
    %c0_4 = arith.constant 0 : index
    %13 = vector.load %arg3[%c0_3, %c0_4] : memref<32x256xf32, #tpu.memory_space<vmem>>, vector<32x256xf32>
    %cst_5 = arith.constant dense<0.000000e+00> : vector<64x256xf32>
    %14 = tpu.matmul %7, %13, %cst_5 {dimension_numbers = #tpu.dot_dimension_numbers<[1], [0], [0], [1], [0, 0, 1, 1], [], []>} : vector<64x32xf32>, vector<32x256xf32>, vector<64x256xf32> -> vector<64x256xf32>
    %c0_6 = arith.constant 0 : index
    %c0_7 = arith.constant 0 : index
    %15 = vector.load %arg5[%c0_6, %c0_7] : memref<1x256xf32, #tpu.memory_space<vmem>>, vector<1x256xf32>
    %16 = vector.broadcast %15 : vector<1x256xf32> to vector<64x256xf32>
    %17 = arith.addf %14, %16 : vector<64x256xf32>
    %18 = vector.extract_strided_slice %17 {offsets = [0, 0], sizes = [8, 256], strides = [1, 1]} : vector<64x256xf32> to vector<8x256xf32>
    %19 = vector.extract_strided_slice %17 {offsets = [8, 0], sizes = [8, 256], strides = [1, 1]} : vector<64x256xf32> to vector<8x256xf32>
    %20 = vector.extract_strided_slice %17 {offsets = [16, 0], sizes = [8, 256], strides = [1, 1]} : vector<64x256xf32> to vector<8x256xf32>
    %21 = vector.extract_strided_slice %17 {offsets = [24, 0], sizes = [8, 256], strides = [1, 1]} : vector<64x256xf32> to vector<8x256xf32>
    %22 = vector.extract_strided_slice %17 {offsets = [32, 0], sizes = [8, 256], strides = [1, 1]} : vector<64x256xf32> to vector<8x256xf32>
    %23 = vector.extract_strided_slice %17 {offsets = [40, 0], sizes = [8, 256], strides = [1, 1]} : vector<64x256xf32> to vector<8x256xf32>
    %24 = vector.extract_strided_slice %17 {offsets = [48, 0], sizes = [8, 256], strides = [1, 1]} : vector<64x256xf32> to vector<8x256xf32>
    %25 = vector.extract_strided_slice %17 {offsets = [56, 0], sizes = [8, 256], strides = [1, 1]} : vector<64x256xf32> to vector<8x256xf32>
    %26 = arith.select %12, %18, %25 : vector<8x256xi1>, vector<8x256xf32>
    %27 = arith.select %12, %19, %24 : vector<8x256xi1>, vector<8x256xf32>
    %28 = arith.select %12, %20, %23 : vector<8x256xi1>, vector<8x256xf32>
    %29 = arith.select %12, %21, %22 : vector<8x256xi1>, vector<8x256xf32>
    %30 = arith.select %12, %22, %21 : vector<8x256xi1>, vector<8x256xf32>
    %31 = arith.select %12, %23, %20 : vector<8x256xi1>, vector<8x256xf32>
    %32 = arith.select %12, %24, %19 : vector<8x256xi1>, vector<8x256xf32>
    %33 = arith.select %12, %25, %18 : vector<8x256xi1>, vector<8x256xf32>
    %c0_8 = arith.constant 0 : index
    %c0_9 = arith.constant 0 : index
    %34 = vector.load %arg4[%c0_8, %c0_9] : memref<64x256xf32, #tpu.memory_space<vmem>>, vector<64x256xf32>
    %cst_10 = arith.constant 0.000000e+00 : f32
    %35 = vector.broadcast %cst_10 : f32 to vector<8x64xf32>
    %cst_11 = arith.constant 0.000000e+00 : f32
    %36 = vector.broadcast %cst_11 : f32 to vector<8x64xf32>
    %cst_12 = arith.constant dense<0.000000e+00> : vector<8x256xf32>
    %37 = tpu.matmul %35, %34, %cst_12 {dimension_numbers = #tpu.dot_dimension_numbers<[1], [0], [0], [1], [0, 0, 1, 1], [], []>} : vector<8x64xf32>, vector<64x256xf32>, vector<8x256xf32> -> vector<8x256xf32>
    %38 = arith.addf %26, %37 : vector<8x256xf32>
    %39 = vector.extract_strided_slice %38 {offsets = [0, 0], sizes = [8, 192], strides = [1, 1]} : vector<8x256xf32> to vector<8x192xf32>
    %40 = arith.negf %39 : vector<8x192xf32>
    %41 = math.exp %40 : vector<8x192xf32>
    %cst_13 = arith.constant 1.000000e+00 : f32
    %42 = vector.broadcast %cst_13 : f32 to vector<8x192xf32>
    %43 = arith.addf %42, %41 : vector<8x192xf32>
    %44 = arith.divf %42, %43 : vector<8x192xf32>
    %45 = vector.extract_strided_slice %38 {offsets = [0, 192], sizes = [8, 64], strides = [1, 1]} : vector<8x256xf32> to vector<8x64xf32>
    %46 = math.tanh %45 : vector<8x64xf32>
    %47 = vector.extract_strided_slice %44 {offsets = [0, 0], sizes = [8, 64], strides = [1, 1]} : vector<8x192xf32> to vector<8x64xf32>
    %48 = vector.extract_strided_slice %44 {offsets = [0, 64], sizes = [8, 64], strides = [1, 1]} : vector<8x192xf32> to vector<8x64xf32>
    %49 = vector.extract_strided_slice %44 {offsets = [0, 128], sizes = [8, 64], strides = [1, 1]} : vector<8x192xf32> to vector<8x64xf32>
    %50 = arith.mulf %48, %36 : vector<8x64xf32>
    %51 = arith.mulf %47, %46 : vector<8x64xf32>
    %52 = arith.addf %50, %51 : vector<8x64xf32>
    %53 = math.tanh %52 : vector<8x64xf32>
    %54 = arith.mulf %49, %53 : vector<8x64xf32>
    %cst_14 = arith.constant dense<0.000000e+00> : vector<8x256xf32>
    %55 = tpu.matmul %54, %34, %cst_14 {dimension_numbers = #tpu.dot_dimension_numbers<[1], [0], [0], [1], [0, 0, 1, 1], [], []>} : vector<8x64xf32>, vector<64x256xf32>, vector<8x256xf32> -> vector<8x256xf32>
    %56 = arith.addf %27, %55 : vector<8x256xf32>
    %57 = vector.extract_strided_slice %56 {offsets = [0, 0], sizes = [8, 192], strides = [1, 1]} : vector<8x256xf32> to vector<8x192xf32>
    %58 = arith.negf %57 : vector<8x192xf32>
    %59 = math.exp %58 : vector<8x192xf32>
    %cst_15 = arith.constant 1.000000e+00 : f32
    %60 = vector.broadcast %cst_15 : f32 to vector<8x192xf32>
    %61 = arith.addf %60, %59 : vector<8x192xf32>
    %62 = arith.divf %60, %61 : vector<8x192xf32>
    %63 = vector.extract_strided_slice %56 {offsets = [0, 192], sizes = [8, 64], strides = [1, 1]} : vector<8x256xf32> to vector<8x64xf32>
    %64 = math.tanh %63 : vector<8x64xf32>
    %65 = vector.extract_strided_slice %62 {offsets = [0, 0], sizes = [8, 64], strides = [1, 1]} : vector<8x192xf32> to vector<8x64xf32>
    %66 = vector.extract_strided_slice %62 {offsets = [0, 64], sizes = [8, 64], strides = [1, 1]} : vector<8x192xf32> to vector<8x64xf32>
    %67 = vector.extract_strided_slice %62 {offsets = [0, 128], sizes = [8, 64], strides = [1, 1]} : vector<8x192xf32> to vector<8x64xf32>
    %68 = arith.mulf %66, %52 : vector<8x64xf32>
    %69 = arith.mulf %65, %64 : vector<8x64xf32>
    %70 = arith.addf %68, %69 : vector<8x64xf32>
    %71 = math.tanh %70 : vector<8x64xf32>
    %72 = arith.mulf %67, %71 : vector<8x64xf32>
    %cst_16 = arith.constant dense<0.000000e+00> : vector<8x256xf32>
    %73 = tpu.matmul %72, %34, %cst_16 {dimension_numbers = #tpu.dot_dimension_numbers<[1], [0], [0], [1], [0, 0, 1, 1], [], []>} : vector<8x64xf32>, vector<64x256xf32>, vector<8x256xf32> -> vector<8x256xf32>
    %74 = arith.addf %28, %73 : vector<8x256xf32>
    %75 = vector.extract_strided_slice %74 {offsets = [0, 0], sizes = [8, 192], strides = [1, 1]} : vector<8x256xf32> to vector<8x192xf32>
    %76 = arith.negf %75 : vector<8x192xf32>
    %77 = math.exp %76 : vector<8x192xf32>
    %cst_17 = arith.constant 1.000000e+00 : f32
    %78 = vector.broadcast %cst_17 : f32 to vector<8x192xf32>
    %79 = arith.addf %78, %77 : vector<8x192xf32>
    %80 = arith.divf %78, %79 : vector<8x192xf32>
    %81 = vector.extract_strided_slice %74 {offsets = [0, 192], sizes = [8, 64], strides = [1, 1]} : vector<8x256xf32> to vector<8x64xf32>
    %82 = math.tanh %81 : vector<8x64xf32>
    %83 = vector.extract_strided_slice %80 {offsets = [0, 0], sizes = [8, 64], strides = [1, 1]} : vector<8x192xf32> to vector<8x64xf32>
    %84 = vector.extract_strided_slice %80 {offsets = [0, 64], sizes = [8, 64], strides = [1, 1]} : vector<8x192xf32> to vector<8x64xf32>
    %85 = vector.extract_strided_slice %80 {offsets = [0, 128], sizes = [8, 64], strides = [1, 1]} : vector<8x192xf32> to vector<8x64xf32>
    %86 = arith.mulf %84, %70 : vector<8x64xf32>
    %87 = arith.mulf %83, %82 : vector<8x64xf32>
    %88 = arith.addf %86, %87 : vector<8x64xf32>
    %89 = math.tanh %88 : vector<8x64xf32>
    %90 = arith.mulf %85, %89 : vector<8x64xf32>
    %cst_18 = arith.constant dense<0.000000e+00> : vector<8x256xf32>
    %91 = tpu.matmul %90, %34, %cst_18 {dimension_numbers = #tpu.dot_dimension_numbers<[1], [0], [0], [1], [0, 0, 1, 1], [], []>} : vector<8x64xf32>, vector<64x256xf32>, vector<8x256xf32> -> vector<8x256xf32>
    %92 = arith.addf %29, %91 : vector<8x256xf32>
    %93 = vector.extract_strided_slice %92 {offsets = [0, 0], sizes = [8, 192], strides = [1, 1]} : vector<8x256xf32> to vector<8x192xf32>
    %94 = arith.negf %93 : vector<8x192xf32>
    %95 = math.exp %94 : vector<8x192xf32>
    %cst_19 = arith.constant 1.000000e+00 : f32
    %96 = vector.broadcast %cst_19 : f32 to vector<8x192xf32>
    %97 = arith.addf %96, %95 : vector<8x192xf32>
    %98 = arith.divf %96, %97 : vector<8x192xf32>
    %99 = vector.extract_strided_slice %92 {offsets = [0, 192], sizes = [8, 64], strides = [1, 1]} : vector<8x256xf32> to vector<8x64xf32>
    %100 = math.tanh %99 : vector<8x64xf32>
    %101 = vector.extract_strided_slice %98 {offsets = [0, 0], sizes = [8, 64], strides = [1, 1]} : vector<8x192xf32> to vector<8x64xf32>
    %102 = vector.extract_strided_slice %98 {offsets = [0, 64], sizes = [8, 64], strides = [1, 1]} : vector<8x192xf32> to vector<8x64xf32>
    %103 = vector.extract_strided_slice %98 {offsets = [0, 128], sizes = [8, 64], strides = [1, 1]} : vector<8x192xf32> to vector<8x64xf32>
    %104 = arith.mulf %102, %88 : vector<8x64xf32>
    %105 = arith.mulf %101, %100 : vector<8x64xf32>
    %106 = arith.addf %104, %105 : vector<8x64xf32>
    %107 = math.tanh %106 : vector<8x64xf32>
    %108 = arith.mulf %103, %107 : vector<8x64xf32>
    %cst_20 = arith.constant dense<0.000000e+00> : vector<8x256xf32>
    %109 = tpu.matmul %108, %34, %cst_20 {dimension_numbers = #tpu.dot_dimension_numbers<[1], [0], [0], [1], [0, 0, 1, 1], [], []>} : vector<8x64xf32>, vector<64x256xf32>, vector<8x256xf32> -> vector<8x256xf32>
    %110 = arith.addf %30, %109 : vector<8x256xf32>
    %111 = vector.extract_strided_slice %110 {offsets = [0, 0], sizes = [8, 192], strides = [1, 1]} : vector<8x256xf32> to vector<8x192xf32>
    %112 = arith.negf %111 : vector<8x192xf32>
    %113 = math.exp %112 : vector<8x192xf32>
    %cst_21 = arith.constant 1.000000e+00 : f32
    %114 = vector.broadcast %cst_21 : f32 to vector<8x192xf32>
    %115 = arith.addf %114, %113 : vector<8x192xf32>
    %116 = arith.divf %114, %115 : vector<8x192xf32>
    %117 = vector.extract_strided_slice %110 {offsets = [0, 192], sizes = [8, 64], strides = [1, 1]} : vector<8x256xf32> to vector<8x64xf32>
    %118 = math.tanh %117 : vector<8x64xf32>
    %119 = vector.extract_strided_slice %116 {offsets = [0, 0], sizes = [8, 64], strides = [1, 1]} : vector<8x192xf32> to vector<8x64xf32>
    %120 = vector.extract_strided_slice %116 {offsets = [0, 64], sizes = [8, 64], strides = [1, 1]} : vector<8x192xf32> to vector<8x64xf32>
    %121 = vector.extract_strided_slice %116 {offsets = [0, 128], sizes = [8, 64], strides = [1, 1]} : vector<8x192xf32> to vector<8x64xf32>
    %122 = arith.mulf %120, %106 : vector<8x64xf32>
    %123 = arith.mulf %119, %118 : vector<8x64xf32>
    %124 = arith.addf %122, %123 : vector<8x64xf32>
    %125 = math.tanh %124 : vector<8x64xf32>
    %126 = arith.mulf %121, %125 : vector<8x64xf32>
    %cst_22 = arith.constant dense<0.000000e+00> : vector<8x256xf32>
    %127 = tpu.matmul %126, %34, %cst_22 {dimension_numbers = #tpu.dot_dimension_numbers<[1], [0], [0], [1], [0, 0, 1, 1], [], []>} : vector<8x64xf32>, vector<64x256xf32>, vector<8x256xf32> -> vector<8x256xf32>
    %128 = arith.addf %31, %127 : vector<8x256xf32>
    %129 = vector.extract_strided_slice %128 {offsets = [0, 0], sizes = [8, 192], strides = [1, 1]} : vector<8x256xf32> to vector<8x192xf32>
    %130 = arith.negf %129 : vector<8x192xf32>
    %131 = math.exp %130 : vector<8x192xf32>
    %cst_23 = arith.constant 1.000000e+00 : f32
    %132 = vector.broadcast %cst_23 : f32 to vector<8x192xf32>
    %133 = arith.addf %132, %131 : vector<8x192xf32>
    %134 = arith.divf %132, %133 : vector<8x192xf32>
    %135 = vector.extract_strided_slice %128 {offsets = [0, 192], sizes = [8, 64], strides = [1, 1]} : vector<8x256xf32> to vector<8x64xf32>
    %136 = math.tanh %135 : vector<8x64xf32>
    %137 = vector.extract_strided_slice %134 {offsets = [0, 0], sizes = [8, 64], strides = [1, 1]} : vector<8x192xf32> to vector<8x64xf32>
    %138 = vector.extract_strided_slice %134 {offsets = [0, 64], sizes = [8, 64], strides = [1, 1]} : vector<8x192xf32> to vector<8x64xf32>
    %139 = vector.extract_strided_slice %134 {offsets = [0, 128], sizes = [8, 64], strides = [1, 1]} : vector<8x192xf32> to vector<8x64xf32>
    %140 = arith.mulf %138, %124 : vector<8x64xf32>
    %141 = arith.mulf %137, %136 : vector<8x64xf32>
    %142 = arith.addf %140, %141 : vector<8x64xf32>
    %143 = math.tanh %142 : vector<8x64xf32>
    %144 = arith.mulf %139, %143 : vector<8x64xf32>
    %cst_24 = arith.constant dense<0.000000e+00> : vector<8x256xf32>
    %145 = tpu.matmul %144, %34, %cst_24 {dimension_numbers = #tpu.dot_dimension_numbers<[1], [0], [0], [1], [0, 0, 1, 1], [], []>} : vector<8x64xf32>, vector<64x256xf32>, vector<8x256xf32> -> vector<8x256xf32>
    %146 = arith.addf %32, %145 : vector<8x256xf32>
    %147 = vector.extract_strided_slice %146 {offsets = [0, 0], sizes = [8, 192], strides = [1, 1]} : vector<8x256xf32> to vector<8x192xf32>
    %148 = arith.negf %147 : vector<8x192xf32>
    %149 = math.exp %148 : vector<8x192xf32>
    %cst_25 = arith.constant 1.000000e+00 : f32
    %150 = vector.broadcast %cst_25 : f32 to vector<8x192xf32>
    %151 = arith.addf %150, %149 : vector<8x192xf32>
    %152 = arith.divf %150, %151 : vector<8x192xf32>
    %153 = vector.extract_strided_slice %146 {offsets = [0, 192], sizes = [8, 64], strides = [1, 1]} : vector<8x256xf32> to vector<8x64xf32>
    %154 = math.tanh %153 : vector<8x64xf32>
    %155 = vector.extract_strided_slice %152 {offsets = [0, 0], sizes = [8, 64], strides = [1, 1]} : vector<8x192xf32> to vector<8x64xf32>
    %156 = vector.extract_strided_slice %152 {offsets = [0, 64], sizes = [8, 64], strides = [1, 1]} : vector<8x192xf32> to vector<8x64xf32>
    %157 = vector.extract_strided_slice %152 {offsets = [0, 128], sizes = [8, 64], strides = [1, 1]} : vector<8x192xf32> to vector<8x64xf32>
    %158 = arith.mulf %156, %142 : vector<8x64xf32>
    %159 = arith.mulf %155, %154 : vector<8x64xf32>
    %160 = arith.addf %158, %159 : vector<8x64xf32>
    %161 = math.tanh %160 : vector<8x64xf32>
    %162 = arith.mulf %157, %161 : vector<8x64xf32>
    %cst_26 = arith.constant dense<0.000000e+00> : vector<8x256xf32>
    %163 = tpu.matmul %162, %34, %cst_26 {dimension_numbers = #tpu.dot_dimension_numbers<[1], [0], [0], [1], [0, 0, 1, 1], [], []>} : vector<8x64xf32>, vector<64x256xf32>, vector<8x256xf32> -> vector<8x256xf32>
    %164 = arith.addf %33, %163 : vector<8x256xf32>
    %165 = vector.extract_strided_slice %164 {offsets = [0, 0], sizes = [8, 192], strides = [1, 1]} : vector<8x256xf32> to vector<8x192xf32>
    %166 = arith.negf %165 : vector<8x192xf32>
    %167 = math.exp %166 : vector<8x192xf32>
    %cst_27 = arith.constant 1.000000e+00 : f32
    %168 = vector.broadcast %cst_27 : f32 to vector<8x192xf32>
    %169 = arith.addf %168, %167 : vector<8x192xf32>
    %170 = arith.divf %168, %169 : vector<8x192xf32>
    %171 = vector.extract_strided_slice %164 {offsets = [0, 192], sizes = [8, 64], strides = [1, 1]} : vector<8x256xf32> to vector<8x64xf32>
    %172 = math.tanh %171 : vector<8x64xf32>
    %173 = vector.extract_strided_slice %170 {offsets = [0, 0], sizes = [8, 64], strides = [1, 1]} : vector<8x192xf32> to vector<8x64xf32>
    %174 = vector.extract_strided_slice %170 {offsets = [0, 64], sizes = [8, 64], strides = [1, 1]} : vector<8x192xf32> to vector<8x64xf32>
    %175 = vector.extract_strided_slice %170 {offsets = [0, 128], sizes = [8, 64], strides = [1, 1]} : vector<8x192xf32> to vector<8x64xf32>
    %176 = arith.mulf %174, %160 : vector<8x64xf32>
    %177 = arith.mulf %173, %172 : vector<8x64xf32>
    %178 = arith.addf %176, %177 : vector<8x64xf32>
    %179 = math.tanh %178 : vector<8x64xf32>
    %180 = arith.mulf %175, %179 : vector<8x64xf32>
    %181 = vector.extract_strided_slice %54 {offsets = [0, 0], sizes = [8, 32], strides = [1, 1]} : vector<8x64xf32> to vector<8x32xf32>
    %182 = vector.extract_strided_slice %180 {offsets = [0, 32], sizes = [8, 32], strides = [1, 1]} : vector<8x64xf32> to vector<8x32xf32>
    %183 = tpu.concatenate %181, %182 in 1 : vector<8x32xf32>, vector<8x32xf32> -> vector<8x64xf32>
    %184 = vector.extract_strided_slice %72 {offsets = [0, 0], sizes = [8, 32], strides = [1, 1]} : vector<8x64xf32> to vector<8x32xf32>
    %185 = vector.extract_strided_slice %162 {offsets = [0, 32], sizes = [8, 32], strides = [1, 1]} : vector<8x64xf32> to vector<8x32xf32>
    %186 = tpu.concatenate %184, %185 in 1 : vector<8x32xf32>, vector<8x32xf32> -> vector<8x64xf32>
    %187 = vector.extract_strided_slice %90 {offsets = [0, 0], sizes = [8, 32], strides = [1, 1]} : vector<8x64xf32> to vector<8x32xf32>
    %188 = vector.extract_strided_slice %144 {offsets = [0, 32], sizes = [8, 32], strides = [1, 1]} : vector<8x64xf32> to vector<8x32xf32>
    %189 = tpu.concatenate %187, %188 in 1 : vector<8x32xf32>, vector<8x32xf32> -> vector<8x64xf32>
    %190 = vector.extract_strided_slice %108 {offsets = [0, 0], sizes = [8, 32], strides = [1, 1]} : vector<8x64xf32> to vector<8x32xf32>
    %191 = vector.extract_strided_slice %126 {offsets = [0, 32], sizes = [8, 32], strides = [1, 1]} : vector<8x64xf32> to vector<8x32xf32>
    %192 = tpu.concatenate %190, %191 in 1 : vector<8x32xf32>, vector<8x32xf32> -> vector<8x64xf32>
    %193 = vector.extract_strided_slice %126 {offsets = [0, 0], sizes = [8, 32], strides = [1, 1]} : vector<8x64xf32> to vector<8x32xf32>
    %194 = vector.extract_strided_slice %108 {offsets = [0, 32], sizes = [8, 32], strides = [1, 1]} : vector<8x64xf32> to vector<8x32xf32>
    %195 = tpu.concatenate %193, %194 in 1 : vector<8x32xf32>, vector<8x32xf32> -> vector<8x64xf32>
    %196 = vector.extract_strided_slice %144 {offsets = [0, 0], sizes = [8, 32], strides = [1, 1]} : vector<8x64xf32> to vector<8x32xf32>
    %197 = vector.extract_strided_slice %90 {offsets = [0, 32], sizes = [8, 32], strides = [1, 1]} : vector<8x64xf32> to vector<8x32xf32>
    %198 = tpu.concatenate %196, %197 in 1 : vector<8x32xf32>, vector<8x32xf32> -> vector<8x64xf32>
    %199 = vector.extract_strided_slice %162 {offsets = [0, 0], sizes = [8, 32], strides = [1, 1]} : vector<8x64xf32> to vector<8x32xf32>
    %200 = vector.extract_strided_slice %72 {offsets = [0, 32], sizes = [8, 32], strides = [1, 1]} : vector<8x64xf32> to vector<8x32xf32>
    %201 = tpu.concatenate %199, %200 in 1 : vector<8x32xf32>, vector<8x32xf32> -> vector<8x64xf32>
    %202 = vector.extract_strided_slice %180 {offsets = [0, 0], sizes = [8, 32], strides = [1, 1]} : vector<8x64xf32> to vector<8x32xf32>
    %203 = vector.extract_strided_slice %54 {offsets = [0, 32], sizes = [8, 32], strides = [1, 1]} : vector<8x64xf32> to vector<8x32xf32>
    %204 = tpu.concatenate %202, %203 in 1 : vector<8x32xf32>, vector<8x32xf32> -> vector<8x64xf32>
    %205 = tpu.concatenate %183, %186, %189, %192, %195, %198, %201, %204 in 0 : vector<8x64xf32>, vector<8x64xf32>, vector<8x64xf32>, vector<8x64xf32>, vector<8x64xf32>, vector<8x64xf32>, vector<8x64xf32>, vector<8x64xf32> -> vector<64x64xf32>
    %c0_28 = arith.constant 0 : index
    %c0_29 = arith.constant 0 : index
    %206 = vector.load %arg6[%c0_28, %c0_29] : memref<64x256xf32, #tpu.memory_space<vmem>>, vector<64x256xf32>
    %cst_30 = arith.constant dense<0.000000e+00> : vector<64x256xf32>
    %207 = tpu.matmul %205, %206, %cst_30 {dimension_numbers = #tpu.dot_dimension_numbers<[1], [0], [0], [1], [0, 0, 1, 1], [], []>} : vector<64x64xf32>, vector<64x256xf32>, vector<64x256xf32> -> vector<64x256xf32>
    %c0_31 = arith.constant 0 : index
    %c0_32 = arith.constant 0 : index
    %208 = vector.load %arg8[%c0_31, %c0_32] : memref<1x256xf32, #tpu.memory_space<vmem>>, vector<1x256xf32>
    %209 = vector.broadcast %208 : vector<1x256xf32> to vector<64x256xf32>
    %210 = arith.addf %207, %209 : vector<64x256xf32>
    %211 = vector.extract_strided_slice %210 {offsets = [0, 0], sizes = [8, 256], strides = [1, 1]} : vector<64x256xf32> to vector<8x256xf32>
    %212 = vector.extract_strided_slice %210 {offsets = [8, 0], sizes = [8, 256], strides = [1, 1]} : vector<64x256xf32> to vector<8x256xf32>
    %213 = vector.extract_strided_slice %210 {offsets = [16, 0], sizes = [8, 256], strides = [1, 1]} : vector<64x256xf32> to vector<8x256xf32>
    %214 = vector.extract_strided_slice %210 {offsets = [24, 0], sizes = [8, 256], strides = [1, 1]} : vector<64x256xf32> to vector<8x256xf32>
    %215 = vector.extract_strided_slice %210 {offsets = [32, 0], sizes = [8, 256], strides = [1, 1]} : vector<64x256xf32> to vector<8x256xf32>
    %216 = vector.extract_strided_slice %210 {offsets = [40, 0], sizes = [8, 256], strides = [1, 1]} : vector<64x256xf32> to vector<8x256xf32>
    %217 = vector.extract_strided_slice %210 {offsets = [48, 0], sizes = [8, 256], strides = [1, 1]} : vector<64x256xf32> to vector<8x256xf32>
    %218 = vector.extract_strided_slice %210 {offsets = [56, 0], sizes = [8, 256], strides = [1, 1]} : vector<64x256xf32> to vector<8x256xf32>
    %219 = arith.select %12, %211, %218 : vector<8x256xi1>, vector<8x256xf32>
    %220 = arith.select %12, %212, %217 : vector<8x256xi1>, vector<8x256xf32>
    %221 = arith.select %12, %213, %216 : vector<8x256xi1>, vector<8x256xf32>
    %222 = arith.select %12, %214, %215 : vector<8x256xi1>, vector<8x256xf32>
    %223 = arith.select %12, %215, %214 : vector<8x256xi1>, vector<8x256xf32>
    %224 = arith.select %12, %216, %213 : vector<8x256xi1>, vector<8x256xf32>
    %225 = arith.select %12, %217, %212 : vector<8x256xi1>, vector<8x256xf32>
    %226 = arith.select %12, %218, %211 : vector<8x256xi1>, vector<8x256xf32>
    %c0_33 = arith.constant 0 : index
    %c0_34 = arith.constant 0 : index
    %227 = vector.load %arg7[%c0_33, %c0_34] : memref<64x256xf32, #tpu.memory_space<vmem>>, vector<64x256xf32>
    %cst_35 = arith.constant 0.000000e+00 : f32
    %228 = vector.broadcast %cst_35 : f32 to vector<8x64xf32>
    %cst_36 = arith.constant 0.000000e+00 : f32
    %229 = vector.broadcast %cst_36 : f32 to vector<8x64xf32>
    %cst_37 = arith.constant dense<0.000000e+00> : vector<8x256xf32>
    %230 = tpu.matmul %228, %227, %cst_37 {dimension_numbers = #tpu.dot_dimension_numbers<[1], [0], [0], [1], [0, 0, 1, 1], [], []>} : vector<8x64xf32>, vector<64x256xf32>, vector<8x256xf32> -> vector<8x256xf32>
    %231 = arith.addf %219, %230 : vector<8x256xf32>
    %232 = vector.extract_strided_slice %231 {offsets = [0, 0], sizes = [8, 192], strides = [1, 1]} : vector<8x256xf32> to vector<8x192xf32>
    %233 = arith.negf %232 : vector<8x192xf32>
    %234 = math.exp %233 : vector<8x192xf32>
    %cst_38 = arith.constant 1.000000e+00 : f32
    %235 = vector.broadcast %cst_38 : f32 to vector<8x192xf32>
    %236 = arith.addf %235, %234 : vector<8x192xf32>
    %237 = arith.divf %235, %236 : vector<8x192xf32>
    %238 = vector.extract_strided_slice %231 {offsets = [0, 192], sizes = [8, 64], strides = [1, 1]} : vector<8x256xf32> to vector<8x64xf32>
    %239 = math.tanh %238 : vector<8x64xf32>
    %240 = vector.extract_strided_slice %237 {offsets = [0, 0], sizes = [8, 64], strides = [1, 1]} : vector<8x192xf32> to vector<8x64xf32>
    %241 = vector.extract_strided_slice %237 {offsets = [0, 64], sizes = [8, 64], strides = [1, 1]} : vector<8x192xf32> to vector<8x64xf32>
    %242 = vector.extract_strided_slice %237 {offsets = [0, 128], sizes = [8, 64], strides = [1, 1]} : vector<8x192xf32> to vector<8x64xf32>
    %243 = arith.mulf %241, %229 : vector<8x64xf32>
    %244 = arith.mulf %240, %239 : vector<8x64xf32>
    %245 = arith.addf %243, %244 : vector<8x64xf32>
    %246 = math.tanh %245 : vector<8x64xf32>
    %247 = arith.mulf %242, %246 : vector<8x64xf32>
    %cst_39 = arith.constant dense<0.000000e+00> : vector<8x256xf32>
    %248 = tpu.matmul %247, %227, %cst_39 {dimension_numbers = #tpu.dot_dimension_numbers<[1], [0], [0], [1], [0, 0, 1, 1], [], []>} : vector<8x64xf32>, vector<64x256xf32>, vector<8x256xf32> -> vector<8x256xf32>
    %249 = arith.addf %220, %248 : vector<8x256xf32>
    %250 = vector.extract_strided_slice %249 {offsets = [0, 0], sizes = [8, 192], strides = [1, 1]} : vector<8x256xf32> to vector<8x192xf32>
    %251 = arith.negf %250 : vector<8x192xf32>
    %252 = math.exp %251 : vector<8x192xf32>
    %cst_40 = arith.constant 1.000000e+00 : f32
    %253 = vector.broadcast %cst_40 : f32 to vector<8x192xf32>
    %254 = arith.addf %253, %252 : vector<8x192xf32>
    %255 = arith.divf %253, %254 : vector<8x192xf32>
    %256 = vector.extract_strided_slice %249 {offsets = [0, 192], sizes = [8, 64], strides = [1, 1]} : vector<8x256xf32> to vector<8x64xf32>
    %257 = math.tanh %256 : vector<8x64xf32>
    %258 = vector.extract_strided_slice %255 {offsets = [0, 0], sizes = [8, 64], strides = [1, 1]} : vector<8x192xf32> to vector<8x64xf32>
    %259 = vector.extract_strided_slice %255 {offsets = [0, 64], sizes = [8, 64], strides = [1, 1]} : vector<8x192xf32> to vector<8x64xf32>
    %260 = vector.extract_strided_slice %255 {offsets = [0, 128], sizes = [8, 64], strides = [1, 1]} : vector<8x192xf32> to vector<8x64xf32>
    %261 = arith.mulf %259, %245 : vector<8x64xf32>
    %262 = arith.mulf %258, %257 : vector<8x64xf32>
    %263 = arith.addf %261, %262 : vector<8x64xf32>
    %264 = math.tanh %263 : vector<8x64xf32>
    %265 = arith.mulf %260, %264 : vector<8x64xf32>
    %cst_41 = arith.constant dense<0.000000e+00> : vector<8x256xf32>
    %266 = tpu.matmul %265, %227, %cst_41 {dimension_numbers = #tpu.dot_dimension_numbers<[1], [0], [0], [1], [0, 0, 1, 1], [], []>} : vector<8x64xf32>, vector<64x256xf32>, vector<8x256xf32> -> vector<8x256xf32>
    %267 = arith.addf %221, %266 : vector<8x256xf32>
    %268 = vector.extract_strided_slice %267 {offsets = [0, 0], sizes = [8, 192], strides = [1, 1]} : vector<8x256xf32> to vector<8x192xf32>
    %269 = arith.negf %268 : vector<8x192xf32>
    %270 = math.exp %269 : vector<8x192xf32>
    %cst_42 = arith.constant 1.000000e+00 : f32
    %271 = vector.broadcast %cst_42 : f32 to vector<8x192xf32>
    %272 = arith.addf %271, %270 : vector<8x192xf32>
    %273 = arith.divf %271, %272 : vector<8x192xf32>
    %274 = vector.extract_strided_slice %267 {offsets = [0, 192], sizes = [8, 64], strides = [1, 1]} : vector<8x256xf32> to vector<8x64xf32>
    %275 = math.tanh %274 : vector<8x64xf32>
    %276 = vector.extract_strided_slice %273 {offsets = [0, 0], sizes = [8, 64], strides = [1, 1]} : vector<8x192xf32> to vector<8x64xf32>
    %277 = vector.extract_strided_slice %273 {offsets = [0, 64], sizes = [8, 64], strides = [1, 1]} : vector<8x192xf32> to vector<8x64xf32>
    %278 = vector.extract_strided_slice %273 {offsets = [0, 128], sizes = [8, 64], strides = [1, 1]} : vector<8x192xf32> to vector<8x64xf32>
    %279 = arith.mulf %277, %263 : vector<8x64xf32>
    %280 = arith.mulf %276, %275 : vector<8x64xf32>
    %281 = arith.addf %279, %280 : vector<8x64xf32>
    %282 = math.tanh %281 : vector<8x64xf32>
    %283 = arith.mulf %278, %282 : vector<8x64xf32>
    %cst_43 = arith.constant dense<0.000000e+00> : vector<8x256xf32>
    %284 = tpu.matmul %283, %227, %cst_43 {dimension_numbers = #tpu.dot_dimension_numbers<[1], [0], [0], [1], [0, 0, 1, 1], [], []>} : vector<8x64xf32>, vector<64x256xf32>, vector<8x256xf32> -> vector<8x256xf32>
    %285 = arith.addf %222, %284 : vector<8x256xf32>
    %286 = vector.extract_strided_slice %285 {offsets = [0, 0], sizes = [8, 192], strides = [1, 1]} : vector<8x256xf32> to vector<8x192xf32>
    %287 = arith.negf %286 : vector<8x192xf32>
    %288 = math.exp %287 : vector<8x192xf32>
    %cst_44 = arith.constant 1.000000e+00 : f32
    %289 = vector.broadcast %cst_44 : f32 to vector<8x192xf32>
    %290 = arith.addf %289, %288 : vector<8x192xf32>
    %291 = arith.divf %289, %290 : vector<8x192xf32>
    %292 = vector.extract_strided_slice %285 {offsets = [0, 192], sizes = [8, 64], strides = [1, 1]} : vector<8x256xf32> to vector<8x64xf32>
    %293 = math.tanh %292 : vector<8x64xf32>
    %294 = vector.extract_strided_slice %291 {offsets = [0, 0], sizes = [8, 64], strides = [1, 1]} : vector<8x192xf32> to vector<8x64xf32>
    %295 = vector.extract_strided_slice %291 {offsets = [0, 64], sizes = [8, 64], strides = [1, 1]} : vector<8x192xf32> to vector<8x64xf32>
    %296 = vector.extract_strided_slice %291 {offsets = [0, 128], sizes = [8, 64], strides = [1, 1]} : vector<8x192xf32> to vector<8x64xf32>
    %297 = arith.mulf %295, %281 : vector<8x64xf32>
    %298 = arith.mulf %294, %293 : vector<8x64xf32>
    %299 = arith.addf %297, %298 : vector<8x64xf32>
    %300 = math.tanh %299 : vector<8x64xf32>
    %301 = arith.mulf %296, %300 : vector<8x64xf32>
    %cst_45 = arith.constant dense<0.000000e+00> : vector<8x256xf32>
    %302 = tpu.matmul %301, %227, %cst_45 {dimension_numbers = #tpu.dot_dimension_numbers<[1], [0], [0], [1], [0, 0, 1, 1], [], []>} : vector<8x64xf32>, vector<64x256xf32>, vector<8x256xf32> -> vector<8x256xf32>
    %303 = arith.addf %223, %302 : vector<8x256xf32>
    %304 = vector.extract_strided_slice %303 {offsets = [0, 0], sizes = [8, 192], strides = [1, 1]} : vector<8x256xf32> to vector<8x192xf32>
    %305 = arith.negf %304 : vector<8x192xf32>
    %306 = math.exp %305 : vector<8x192xf32>
    %cst_46 = arith.constant 1.000000e+00 : f32
    %307 = vector.broadcast %cst_46 : f32 to vector<8x192xf32>
    %308 = arith.addf %307, %306 : vector<8x192xf32>
    %309 = arith.divf %307, %308 : vector<8x192xf32>
    %310 = vector.extract_strided_slice %303 {offsets = [0, 192], sizes = [8, 64], strides = [1, 1]} : vector<8x256xf32> to vector<8x64xf32>
    %311 = math.tanh %310 : vector<8x64xf32>
    %312 = vector.extract_strided_slice %309 {offsets = [0, 0], sizes = [8, 64], strides = [1, 1]} : vector<8x192xf32> to vector<8x64xf32>
    %313 = vector.extract_strided_slice %309 {offsets = [0, 64], sizes = [8, 64], strides = [1, 1]} : vector<8x192xf32> to vector<8x64xf32>
    %314 = vector.extract_strided_slice %309 {offsets = [0, 128], sizes = [8, 64], strides = [1, 1]} : vector<8x192xf32> to vector<8x64xf32>
    %315 = arith.mulf %313, %299 : vector<8x64xf32>
    %316 = arith.mulf %312, %311 : vector<8x64xf32>
    %317 = arith.addf %315, %316 : vector<8x64xf32>
    %318 = math.tanh %317 : vector<8x64xf32>
    %319 = arith.mulf %314, %318 : vector<8x64xf32>
    %cst_47 = arith.constant dense<0.000000e+00> : vector<8x256xf32>
    %320 = tpu.matmul %319, %227, %cst_47 {dimension_numbers = #tpu.dot_dimension_numbers<[1], [0], [0], [1], [0, 0, 1, 1], [], []>} : vector<8x64xf32>, vector<64x256xf32>, vector<8x256xf32> -> vector<8x256xf32>
    %321 = arith.addf %224, %320 : vector<8x256xf32>
    %322 = vector.extract_strided_slice %321 {offsets = [0, 0], sizes = [8, 192], strides = [1, 1]} : vector<8x256xf32> to vector<8x192xf32>
    %323 = arith.negf %322 : vector<8x192xf32>
    %324 = math.exp %323 : vector<8x192xf32>
    %cst_48 = arith.constant 1.000000e+00 : f32
    %325 = vector.broadcast %cst_48 : f32 to vector<8x192xf32>
    %326 = arith.addf %325, %324 : vector<8x192xf32>
    %327 = arith.divf %325, %326 : vector<8x192xf32>
    %328 = vector.extract_strided_slice %321 {offsets = [0, 192], sizes = [8, 64], strides = [1, 1]} : vector<8x256xf32> to vector<8x64xf32>
    %329 = math.tanh %328 : vector<8x64xf32>
    %330 = vector.extract_strided_slice %327 {offsets = [0, 0], sizes = [8, 64], strides = [1, 1]} : vector<8x192xf32> to vector<8x64xf32>
    %331 = vector.extract_strided_slice %327 {offsets = [0, 64], sizes = [8, 64], strides = [1, 1]} : vector<8x192xf32> to vector<8x64xf32>
    %332 = vector.extract_strided_slice %327 {offsets = [0, 128], sizes = [8, 64], strides = [1, 1]} : vector<8x192xf32> to vector<8x64xf32>
    %333 = arith.mulf %331, %317 : vector<8x64xf32>
    %334 = arith.mulf %330, %329 : vector<8x64xf32>
    %335 = arith.addf %333, %334 : vector<8x64xf32>
    %336 = math.tanh %335 : vector<8x64xf32>
    %337 = arith.mulf %332, %336 : vector<8x64xf32>
    %cst_49 = arith.constant dense<0.000000e+00> : vector<8x256xf32>
    %338 = tpu.matmul %337, %227, %cst_49 {dimension_numbers = #tpu.dot_dimension_numbers<[1], [0], [0], [1], [0, 0, 1, 1], [], []>} : vector<8x64xf32>, vector<64x256xf32>, vector<8x256xf32> -> vector<8x256xf32>
    %339 = arith.addf %225, %338 : vector<8x256xf32>
    %340 = vector.extract_strided_slice %339 {offsets = [0, 0], sizes = [8, 192], strides = [1, 1]} : vector<8x256xf32> to vector<8x192xf32>
    %341 = arith.negf %340 : vector<8x192xf32>
    %342 = math.exp %341 : vector<8x192xf32>
    %cst_50 = arith.constant 1.000000e+00 : f32
    %343 = vector.broadcast %cst_50 : f32 to vector<8x192xf32>
    %344 = arith.addf %343, %342 : vector<8x192xf32>
    %345 = arith.divf %343, %344 : vector<8x192xf32>
    %346 = vector.extract_strided_slice %339 {offsets = [0, 192], sizes = [8, 64], strides = [1, 1]} : vector<8x256xf32> to vector<8x64xf32>
    %347 = math.tanh %346 : vector<8x64xf32>
    %348 = vector.extract_strided_slice %345 {offsets = [0, 0], sizes = [8, 64], strides = [1, 1]} : vector<8x192xf32> to vector<8x64xf32>
    %349 = vector.extract_strided_slice %345 {offsets = [0, 64], sizes = [8, 64], strides = [1, 1]} : vector<8x192xf32> to vector<8x64xf32>
    %350 = vector.extract_strided_slice %345 {offsets = [0, 128], sizes = [8, 64], strides = [1, 1]} : vector<8x192xf32> to vector<8x64xf32>
    %351 = arith.mulf %349, %335 : vector<8x64xf32>
    %352 = arith.mulf %348, %347 : vector<8x64xf32>
    %353 = arith.addf %351, %352 : vector<8x64xf32>
    %354 = math.tanh %353 : vector<8x64xf32>
    %355 = arith.mulf %350, %354 : vector<8x64xf32>
    %cst_51 = arith.constant dense<0.000000e+00> : vector<8x256xf32>
    %356 = tpu.matmul %355, %227, %cst_51 {dimension_numbers = #tpu.dot_dimension_numbers<[1], [0], [0], [1], [0, 0, 1, 1], [], []>} : vector<8x64xf32>, vector<64x256xf32>, vector<8x256xf32> -> vector<8x256xf32>
    %357 = arith.addf %226, %356 : vector<8x256xf32>
    %358 = vector.extract_strided_slice %357 {offsets = [0, 0], sizes = [8, 192], strides = [1, 1]} : vector<8x256xf32> to vector<8x192xf32>
    %359 = arith.negf %358 : vector<8x192xf32>
    %360 = math.exp %359 : vector<8x192xf32>
    %cst_52 = arith.constant 1.000000e+00 : f32
    %361 = vector.broadcast %cst_52 : f32 to vector<8x192xf32>
    %362 = arith.addf %361, %360 : vector<8x192xf32>
    %363 = arith.divf %361, %362 : vector<8x192xf32>
    %364 = vector.extract_strided_slice %357 {offsets = [0, 192], sizes = [8, 64], strides = [1, 1]} : vector<8x256xf32> to vector<8x64xf32>
    %365 = math.tanh %364 : vector<8x64xf32>
    %366 = vector.extract_strided_slice %363 {offsets = [0, 0], sizes = [8, 64], strides = [1, 1]} : vector<8x192xf32> to vector<8x64xf32>
    %367 = vector.extract_strided_slice %363 {offsets = [0, 64], sizes = [8, 64], strides = [1, 1]} : vector<8x192xf32> to vector<8x64xf32>
    %368 = vector.extract_strided_slice %363 {offsets = [0, 128], sizes = [8, 64], strides = [1, 1]} : vector<8x192xf32> to vector<8x64xf32>
    %369 = arith.mulf %367, %353 : vector<8x64xf32>
    %370 = arith.mulf %366, %365 : vector<8x64xf32>
    %371 = arith.addf %369, %370 : vector<8x64xf32>
    %372 = math.tanh %371 : vector<8x64xf32>
    %373 = arith.mulf %368, %372 : vector<8x64xf32>
    %374 = vector.extract_strided_slice %247 {offsets = [0, 0], sizes = [8, 32], strides = [1, 1]} : vector<8x64xf32> to vector<8x32xf32>
    %375 = vector.extract_strided_slice %373 {offsets = [0, 32], sizes = [8, 32], strides = [1, 1]} : vector<8x64xf32> to vector<8x32xf32>
    %376 = tpu.concatenate %374, %375 in 1 : vector<8x32xf32>, vector<8x32xf32> -> vector<8x64xf32>
    %377 = vector.extract_strided_slice %265 {offsets = [0, 0], sizes = [8, 32], strides = [1, 1]} : vector<8x64xf32> to vector<8x32xf32>
    %378 = vector.extract_strided_slice %355 {offsets = [0, 32], sizes = [8, 32], strides = [1, 1]} : vector<8x64xf32> to vector<8x32xf32>
    %379 = tpu.concatenate %377, %378 in 1 : vector<8x32xf32>, vector<8x32xf32> -> vector<8x64xf32>
    %380 = vector.extract_strided_slice %283 {offsets = [0, 0], sizes = [8, 32], strides = [1, 1]} : vector<8x64xf32> to vector<8x32xf32>
    %381 = vector.extract_strided_slice %337 {offsets = [0, 32], sizes = [8, 32], strides = [1, 1]} : vector<8x64xf32> to vector<8x32xf32>
    %382 = tpu.concatenate %380, %381 in 1 : vector<8x32xf32>, vector<8x32xf32> -> vector<8x64xf32>
    %383 = vector.extract_strided_slice %301 {offsets = [0, 0], sizes = [8, 32], strides = [1, 1]} : vector<8x64xf32> to vector<8x32xf32>
    %384 = vector.extract_strided_slice %319 {offsets = [0, 32], sizes = [8, 32], strides = [1, 1]} : vector<8x64xf32> to vector<8x32xf32>
    %385 = tpu.concatenate %383, %384 in 1 : vector<8x32xf32>, vector<8x32xf32> -> vector<8x64xf32>
    %386 = vector.extract_strided_slice %319 {offsets = [0, 0], sizes = [8, 32], strides = [1, 1]} : vector<8x64xf32> to vector<8x32xf32>
    %387 = vector.extract_strided_slice %301 {offsets = [0, 32], sizes = [8, 32], strides = [1, 1]} : vector<8x64xf32> to vector<8x32xf32>
    %388 = tpu.concatenate %386, %387 in 1 : vector<8x32xf32>, vector<8x32xf32> -> vector<8x64xf32>
    %389 = vector.extract_strided_slice %337 {offsets = [0, 0], sizes = [8, 32], strides = [1, 1]} : vector<8x64xf32> to vector<8x32xf32>
    %390 = vector.extract_strided_slice %283 {offsets = [0, 32], sizes = [8, 32], strides = [1, 1]} : vector<8x64xf32> to vector<8x32xf32>
    %391 = tpu.concatenate %389, %390 in 1 : vector<8x32xf32>, vector<8x32xf32> -> vector<8x64xf32>
    %392 = vector.extract_strided_slice %355 {offsets = [0, 0], sizes = [8, 32], strides = [1, 1]} : vector<8x64xf32> to vector<8x32xf32>
    %393 = vector.extract_strided_slice %265 {offsets = [0, 32], sizes = [8, 32], strides = [1, 1]} : vector<8x64xf32> to vector<8x32xf32>
    %394 = tpu.concatenate %392, %393 in 1 : vector<8x32xf32>, vector<8x32xf32> -> vector<8x64xf32>
    %395 = vector.extract_strided_slice %373 {offsets = [0, 0], sizes = [8, 32], strides = [1, 1]} : vector<8x64xf32> to vector<8x32xf32>
    %396 = vector.extract_strided_slice %247 {offsets = [0, 32], sizes = [8, 32], strides = [1, 1]} : vector<8x64xf32> to vector<8x32xf32>
    %397 = tpu.concatenate %395, %396 in 1 : vector<8x32xf32>, vector<8x32xf32> -> vector<8x64xf32>
    %398 = tpu.concatenate %376, %379, %382, %385, %388, %391, %394, %397 in 0 : vector<8x64xf32>, vector<8x64xf32>, vector<8x64xf32>, vector<8x64xf32>, vector<8x64xf32>, vector<8x64xf32>, vector<8x64xf32>, vector<8x64xf32> -> vector<64x64xf32>
    %c0_53 = arith.constant 0 : index
    %c0_54 = arith.constant 0 : index
    %399 = vector.load %arg9[%c0_53, %c0_54] : memref<64x256xf32, #tpu.memory_space<vmem>>, vector<64x256xf32>
    %cst_55 = arith.constant dense<0.000000e+00> : vector<64x256xf32>
    %400 = tpu.matmul %398, %399, %cst_55 {dimension_numbers = #tpu.dot_dimension_numbers<[1], [0], [0], [1], [0, 0, 1, 1], [], []>} : vector<64x64xf32>, vector<64x256xf32>, vector<64x256xf32> -> vector<64x256xf32>
    %c0_56 = arith.constant 0 : index
    %c0_57 = arith.constant 0 : index
    %401 = vector.load %arg11[%c0_56, %c0_57] : memref<1x256xf32, #tpu.memory_space<vmem>>, vector<1x256xf32>
    %402 = vector.broadcast %401 : vector<1x256xf32> to vector<64x256xf32>
    %403 = arith.addf %400, %402 : vector<64x256xf32>
    %404 = vector.extract_strided_slice %403 {offsets = [0, 0], sizes = [8, 256], strides = [1, 1]} : vector<64x256xf32> to vector<8x256xf32>
    %405 = vector.extract_strided_slice %403 {offsets = [8, 0], sizes = [8, 256], strides = [1, 1]} : vector<64x256xf32> to vector<8x256xf32>
    %406 = vector.extract_strided_slice %403 {offsets = [16, 0], sizes = [8, 256], strides = [1, 1]} : vector<64x256xf32> to vector<8x256xf32>
    %407 = vector.extract_strided_slice %403 {offsets = [24, 0], sizes = [8, 256], strides = [1, 1]} : vector<64x256xf32> to vector<8x256xf32>
    %408 = vector.extract_strided_slice %403 {offsets = [32, 0], sizes = [8, 256], strides = [1, 1]} : vector<64x256xf32> to vector<8x256xf32>
    %409 = vector.extract_strided_slice %403 {offsets = [40, 0], sizes = [8, 256], strides = [1, 1]} : vector<64x256xf32> to vector<8x256xf32>
    %410 = vector.extract_strided_slice %403 {offsets = [48, 0], sizes = [8, 256], strides = [1, 1]} : vector<64x256xf32> to vector<8x256xf32>
    %411 = vector.extract_strided_slice %403 {offsets = [56, 0], sizes = [8, 256], strides = [1, 1]} : vector<64x256xf32> to vector<8x256xf32>
    %412 = arith.select %12, %404, %411 : vector<8x256xi1>, vector<8x256xf32>
    %413 = arith.select %12, %405, %410 : vector<8x256xi1>, vector<8x256xf32>
    %414 = arith.select %12, %406, %409 : vector<8x256xi1>, vector<8x256xf32>
    %415 = arith.select %12, %407, %408 : vector<8x256xi1>, vector<8x256xf32>
    %416 = arith.select %12, %408, %407 : vector<8x256xi1>, vector<8x256xf32>
    %417 = arith.select %12, %409, %406 : vector<8x256xi1>, vector<8x256xf32>
    %418 = arith.select %12, %410, %405 : vector<8x256xi1>, vector<8x256xf32>
    %419 = arith.select %12, %411, %404 : vector<8x256xi1>, vector<8x256xf32>
    %c0_58 = arith.constant 0 : index
    %c0_59 = arith.constant 0 : index
    %420 = vector.load %arg10[%c0_58, %c0_59] : memref<64x256xf32, #tpu.memory_space<vmem>>, vector<64x256xf32>
    %cst_60 = arith.constant 0.000000e+00 : f32
    %421 = vector.broadcast %cst_60 : f32 to vector<8x64xf32>
    %cst_61 = arith.constant 0.000000e+00 : f32
    %422 = vector.broadcast %cst_61 : f32 to vector<8x64xf32>
    %cst_62 = arith.constant dense<0.000000e+00> : vector<8x256xf32>
    %423 = tpu.matmul %421, %420, %cst_62 {dimension_numbers = #tpu.dot_dimension_numbers<[1], [0], [0], [1], [0, 0, 1, 1], [], []>} : vector<8x64xf32>, vector<64x256xf32>, vector<8x256xf32> -> vector<8x256xf32>
    %424 = arith.addf %412, %423 : vector<8x256xf32>
    %425 = vector.extract_strided_slice %424 {offsets = [0, 0], sizes = [8, 192], strides = [1, 1]} : vector<8x256xf32> to vector<8x192xf32>
    %426 = arith.negf %425 : vector<8x192xf32>
    %427 = math.exp %426 : vector<8x192xf32>
    %cst_63 = arith.constant 1.000000e+00 : f32
    %428 = vector.broadcast %cst_63 : f32 to vector<8x192xf32>
    %429 = arith.addf %428, %427 : vector<8x192xf32>
    %430 = arith.divf %428, %429 : vector<8x192xf32>
    %431 = vector.extract_strided_slice %424 {offsets = [0, 192], sizes = [8, 64], strides = [1, 1]} : vector<8x256xf32> to vector<8x64xf32>
    %432 = math.tanh %431 : vector<8x64xf32>
    %433 = vector.extract_strided_slice %430 {offsets = [0, 0], sizes = [8, 64], strides = [1, 1]} : vector<8x192xf32> to vector<8x64xf32>
    %434 = vector.extract_strided_slice %430 {offsets = [0, 64], sizes = [8, 64], strides = [1, 1]} : vector<8x192xf32> to vector<8x64xf32>
    %435 = vector.extract_strided_slice %430 {offsets = [0, 128], sizes = [8, 64], strides = [1, 1]} : vector<8x192xf32> to vector<8x64xf32>
    %436 = arith.mulf %434, %422 : vector<8x64xf32>
    %437 = arith.mulf %433, %432 : vector<8x64xf32>
    %438 = arith.addf %436, %437 : vector<8x64xf32>
    %439 = math.tanh %438 : vector<8x64xf32>
    %440 = arith.mulf %435, %439 : vector<8x64xf32>
    %cst_64 = arith.constant dense<0.000000e+00> : vector<8x256xf32>
    %441 = tpu.matmul %440, %420, %cst_64 {dimension_numbers = #tpu.dot_dimension_numbers<[1], [0], [0], [1], [0, 0, 1, 1], [], []>} : vector<8x64xf32>, vector<64x256xf32>, vector<8x256xf32> -> vector<8x256xf32>
    %442 = arith.addf %413, %441 : vector<8x256xf32>
    %443 = vector.extract_strided_slice %442 {offsets = [0, 0], sizes = [8, 192], strides = [1, 1]} : vector<8x256xf32> to vector<8x192xf32>
    %444 = arith.negf %443 : vector<8x192xf32>
    %445 = math.exp %444 : vector<8x192xf32>
    %cst_65 = arith.constant 1.000000e+00 : f32
    %446 = vector.broadcast %cst_65 : f32 to vector<8x192xf32>
    %447 = arith.addf %446, %445 : vector<8x192xf32>
    %448 = arith.divf %446, %447 : vector<8x192xf32>
    %449 = vector.extract_strided_slice %442 {offsets = [0, 192], sizes = [8, 64], strides = [1, 1]} : vector<8x256xf32> to vector<8x64xf32>
    %450 = math.tanh %449 : vector<8x64xf32>
    %451 = vector.extract_strided_slice %448 {offsets = [0, 0], sizes = [8, 64], strides = [1, 1]} : vector<8x192xf32> to vector<8x64xf32>
    %452 = vector.extract_strided_slice %448 {offsets = [0, 64], sizes = [8, 64], strides = [1, 1]} : vector<8x192xf32> to vector<8x64xf32>
    %453 = vector.extract_strided_slice %448 {offsets = [0, 128], sizes = [8, 64], strides = [1, 1]} : vector<8x192xf32> to vector<8x64xf32>
    %454 = arith.mulf %452, %438 : vector<8x64xf32>
    %455 = arith.mulf %451, %450 : vector<8x64xf32>
    %456 = arith.addf %454, %455 : vector<8x64xf32>
    %457 = math.tanh %456 : vector<8x64xf32>
    %458 = arith.mulf %453, %457 : vector<8x64xf32>
    %cst_66 = arith.constant dense<0.000000e+00> : vector<8x256xf32>
    %459 = tpu.matmul %458, %420, %cst_66 {dimension_numbers = #tpu.dot_dimension_numbers<[1], [0], [0], [1], [0, 0, 1, 1], [], []>} : vector<8x64xf32>, vector<64x256xf32>, vector<8x256xf32> -> vector<8x256xf32>
    %460 = arith.addf %414, %459 : vector<8x256xf32>
    %461 = vector.extract_strided_slice %460 {offsets = [0, 0], sizes = [8, 192], strides = [1, 1]} : vector<8x256xf32> to vector<8x192xf32>
    %462 = arith.negf %461 : vector<8x192xf32>
    %463 = math.exp %462 : vector<8x192xf32>
    %cst_67 = arith.constant 1.000000e+00 : f32
    %464 = vector.broadcast %cst_67 : f32 to vector<8x192xf32>
    %465 = arith.addf %464, %463 : vector<8x192xf32>
    %466 = arith.divf %464, %465 : vector<8x192xf32>
    %467 = vector.extract_strided_slice %460 {offsets = [0, 192], sizes = [8, 64], strides = [1, 1]} : vector<8x256xf32> to vector<8x64xf32>
    %468 = math.tanh %467 : vector<8x64xf32>
    %469 = vector.extract_strided_slice %466 {offsets = [0, 0], sizes = [8, 64], strides = [1, 1]} : vector<8x192xf32> to vector<8x64xf32>
    %470 = vector.extract_strided_slice %466 {offsets = [0, 64], sizes = [8, 64], strides = [1, 1]} : vector<8x192xf32> to vector<8x64xf32>
    %471 = vector.extract_strided_slice %466 {offsets = [0, 128], sizes = [8, 64], strides = [1, 1]} : vector<8x192xf32> to vector<8x64xf32>
    %472 = arith.mulf %470, %456 : vector<8x64xf32>
    %473 = arith.mulf %469, %468 : vector<8x64xf32>
    %474 = arith.addf %472, %473 : vector<8x64xf32>
    %475 = math.tanh %474 : vector<8x64xf32>
    %476 = arith.mulf %471, %475 : vector<8x64xf32>
    %cst_68 = arith.constant dense<0.000000e+00> : vector<8x256xf32>
    %477 = tpu.matmul %476, %420, %cst_68 {dimension_numbers = #tpu.dot_dimension_numbers<[1], [0], [0], [1], [0, 0, 1, 1], [], []>} : vector<8x64xf32>, vector<64x256xf32>, vector<8x256xf32> -> vector<8x256xf32>
    %478 = arith.addf %415, %477 : vector<8x256xf32>
    %479 = vector.extract_strided_slice %478 {offsets = [0, 0], sizes = [8, 192], strides = [1, 1]} : vector<8x256xf32> to vector<8x192xf32>
    %480 = arith.negf %479 : vector<8x192xf32>
    %481 = math.exp %480 : vector<8x192xf32>
    %cst_69 = arith.constant 1.000000e+00 : f32
    %482 = vector.broadcast %cst_69 : f32 to vector<8x192xf32>
    %483 = arith.addf %482, %481 : vector<8x192xf32>
    %484 = arith.divf %482, %483 : vector<8x192xf32>
    %485 = vector.extract_strided_slice %478 {offsets = [0, 192], sizes = [8, 64], strides = [1, 1]} : vector<8x256xf32> to vector<8x64xf32>
    %486 = math.tanh %485 : vector<8x64xf32>
    %487 = vector.extract_strided_slice %484 {offsets = [0, 0], sizes = [8, 64], strides = [1, 1]} : vector<8x192xf32> to vector<8x64xf32>
    %488 = vector.extract_strided_slice %484 {offsets = [0, 64], sizes = [8, 64], strides = [1, 1]} : vector<8x192xf32> to vector<8x64xf32>
    %489 = vector.extract_strided_slice %484 {offsets = [0, 128], sizes = [8, 64], strides = [1, 1]} : vector<8x192xf32> to vector<8x64xf32>
    %490 = arith.mulf %488, %474 : vector<8x64xf32>
    %491 = arith.mulf %487, %486 : vector<8x64xf32>
    %492 = arith.addf %490, %491 : vector<8x64xf32>
    %493 = math.tanh %492 : vector<8x64xf32>
    %494 = arith.mulf %489, %493 : vector<8x64xf32>
    %cst_70 = arith.constant dense<0.000000e+00> : vector<8x256xf32>
    %495 = tpu.matmul %494, %420, %cst_70 {dimension_numbers = #tpu.dot_dimension_numbers<[1], [0], [0], [1], [0, 0, 1, 1], [], []>} : vector<8x64xf32>, vector<64x256xf32>, vector<8x256xf32> -> vector<8x256xf32>
    %496 = arith.addf %416, %495 : vector<8x256xf32>
    %497 = vector.extract_strided_slice %496 {offsets = [0, 0], sizes = [8, 192], strides = [1, 1]} : vector<8x256xf32> to vector<8x192xf32>
    %498 = arith.negf %497 : vector<8x192xf32>
    %499 = math.exp %498 : vector<8x192xf32>
    %cst_71 = arith.constant 1.000000e+00 : f32
    %500 = vector.broadcast %cst_71 : f32 to vector<8x192xf32>
    %501 = arith.addf %500, %499 : vector<8x192xf32>
    %502 = arith.divf %500, %501 : vector<8x192xf32>
    %503 = vector.extract_strided_slice %496 {offsets = [0, 192], sizes = [8, 64], strides = [1, 1]} : vector<8x256xf32> to vector<8x64xf32>
    %504 = math.tanh %503 : vector<8x64xf32>
    %505 = vector.extract_strided_slice %502 {offsets = [0, 0], sizes = [8, 64], strides = [1, 1]} : vector<8x192xf32> to vector<8x64xf32>
    %506 = vector.extract_strided_slice %502 {offsets = [0, 64], sizes = [8, 64], strides = [1, 1]} : vector<8x192xf32> to vector<8x64xf32>
    %507 = vector.extract_strided_slice %502 {offsets = [0, 128], sizes = [8, 64], strides = [1, 1]} : vector<8x192xf32> to vector<8x64xf32>
    %508 = arith.mulf %506, %492 : vector<8x64xf32>
    %509 = arith.mulf %505, %504 : vector<8x64xf32>
    %510 = arith.addf %508, %509 : vector<8x64xf32>
    %511 = math.tanh %510 : vector<8x64xf32>
    %512 = arith.mulf %507, %511 : vector<8x64xf32>
    %cst_72 = arith.constant dense<0.000000e+00> : vector<8x256xf32>
    %513 = tpu.matmul %512, %420, %cst_72 {dimension_numbers = #tpu.dot_dimension_numbers<[1], [0], [0], [1], [0, 0, 1, 1], [], []>} : vector<8x64xf32>, vector<64x256xf32>, vector<8x256xf32> -> vector<8x256xf32>
    %514 = arith.addf %417, %513 : vector<8x256xf32>
    %515 = vector.extract_strided_slice %514 {offsets = [0, 0], sizes = [8, 192], strides = [1, 1]} : vector<8x256xf32> to vector<8x192xf32>
    %516 = arith.negf %515 : vector<8x192xf32>
    %517 = math.exp %516 : vector<8x192xf32>
    %cst_73 = arith.constant 1.000000e+00 : f32
    %518 = vector.broadcast %cst_73 : f32 to vector<8x192xf32>
    %519 = arith.addf %518, %517 : vector<8x192xf32>
    %520 = arith.divf %518, %519 : vector<8x192xf32>
    %521 = vector.extract_strided_slice %514 {offsets = [0, 192], sizes = [8, 64], strides = [1, 1]} : vector<8x256xf32> to vector<8x64xf32>
    %522 = math.tanh %521 : vector<8x64xf32>
    %523 = vector.extract_strided_slice %520 {offsets = [0, 0], sizes = [8, 64], strides = [1, 1]} : vector<8x192xf32> to vector<8x64xf32>
    %524 = vector.extract_strided_slice %520 {offsets = [0, 64], sizes = [8, 64], strides = [1, 1]} : vector<8x192xf32> to vector<8x64xf32>
    %525 = vector.extract_strided_slice %520 {offsets = [0, 128], sizes = [8, 64], strides = [1, 1]} : vector<8x192xf32> to vector<8x64xf32>
    %526 = arith.mulf %524, %510 : vector<8x64xf32>
    %527 = arith.mulf %523, %522 : vector<8x64xf32>
    %528 = arith.addf %526, %527 : vector<8x64xf32>
    %529 = math.tanh %528 : vector<8x64xf32>
    %530 = arith.mulf %525, %529 : vector<8x64xf32>
    %cst_74 = arith.constant dense<0.000000e+00> : vector<8x256xf32>
    %531 = tpu.matmul %530, %420, %cst_74 {dimension_numbers = #tpu.dot_dimension_numbers<[1], [0], [0], [1], [0, 0, 1, 1], [], []>} : vector<8x64xf32>, vector<64x256xf32>, vector<8x256xf32> -> vector<8x256xf32>
    %532 = arith.addf %418, %531 : vector<8x256xf32>
    %533 = vector.extract_strided_slice %532 {offsets = [0, 0], sizes = [8, 192], strides = [1, 1]} : vector<8x256xf32> to vector<8x192xf32>
    %534 = arith.negf %533 : vector<8x192xf32>
    %535 = math.exp %534 : vector<8x192xf32>
    %cst_75 = arith.constant 1.000000e+00 : f32
    %536 = vector.broadcast %cst_75 : f32 to vector<8x192xf32>
    %537 = arith.addf %536, %535 : vector<8x192xf32>
    %538 = arith.divf %536, %537 : vector<8x192xf32>
    %539 = vector.extract_strided_slice %532 {offsets = [0, 192], sizes = [8, 64], strides = [1, 1]} : vector<8x256xf32> to vector<8x64xf32>
    %540 = math.tanh %539 : vector<8x64xf32>
    %541 = vector.extract_strided_slice %538 {offsets = [0, 0], sizes = [8, 64], strides = [1, 1]} : vector<8x192xf32> to vector<8x64xf32>
    %542 = vector.extract_strided_slice %538 {offsets = [0, 64], sizes = [8, 64], strides = [1, 1]} : vector<8x192xf32> to vector<8x64xf32>
    %543 = vector.extract_strided_slice %538 {offsets = [0, 128], sizes = [8, 64], strides = [1, 1]} : vector<8x192xf32> to vector<8x64xf32>
    %544 = arith.mulf %542, %528 : vector<8x64xf32>
    %545 = arith.mulf %541, %540 : vector<8x64xf32>
    %546 = arith.addf %544, %545 : vector<8x64xf32>
    %547 = math.tanh %546 : vector<8x64xf32>
    %548 = arith.mulf %543, %547 : vector<8x64xf32>
    %cst_76 = arith.constant dense<0.000000e+00> : vector<8x256xf32>
    %549 = tpu.matmul %548, %420, %cst_76 {dimension_numbers = #tpu.dot_dimension_numbers<[1], [0], [0], [1], [0, 0, 1, 1], [], []>} : vector<8x64xf32>, vector<64x256xf32>, vector<8x256xf32> -> vector<8x256xf32>
    %550 = arith.addf %419, %549 : vector<8x256xf32>
    %551 = vector.extract_strided_slice %550 {offsets = [0, 0], sizes = [8, 192], strides = [1, 1]} : vector<8x256xf32> to vector<8x192xf32>
    %552 = arith.negf %551 : vector<8x192xf32>
    %553 = math.exp %552 : vector<8x192xf32>
    %cst_77 = arith.constant 1.000000e+00 : f32
    %554 = vector.broadcast %cst_77 : f32 to vector<8x192xf32>
    %555 = arith.addf %554, %553 : vector<8x192xf32>
    %556 = arith.divf %554, %555 : vector<8x192xf32>
    %557 = vector.extract_strided_slice %550 {offsets = [0, 192], sizes = [8, 64], strides = [1, 1]} : vector<8x256xf32> to vector<8x64xf32>
    %558 = math.tanh %557 : vector<8x64xf32>
    %559 = vector.extract_strided_slice %556 {offsets = [0, 0], sizes = [8, 64], strides = [1, 1]} : vector<8x192xf32> to vector<8x64xf32>
    %560 = vector.extract_strided_slice %556 {offsets = [0, 64], sizes = [8, 64], strides = [1, 1]} : vector<8x192xf32> to vector<8x64xf32>
    %561 = vector.extract_strided_slice %556 {offsets = [0, 128], sizes = [8, 64], strides = [1, 1]} : vector<8x192xf32> to vector<8x64xf32>
    %562 = arith.mulf %560, %546 : vector<8x64xf32>
    %563 = arith.mulf %559, %558 : vector<8x64xf32>
    %564 = arith.addf %562, %563 : vector<8x64xf32>
    %565 = math.tanh %564 : vector<8x64xf32>
    %566 = arith.mulf %561, %565 : vector<8x64xf32>
    %567 = vector.extract_strided_slice %440 {offsets = [0, 0], sizes = [8, 32], strides = [1, 1]} : vector<8x64xf32> to vector<8x32xf32>
    %568 = vector.extract_strided_slice %566 {offsets = [0, 0], sizes = [8, 32], strides = [1, 1]} : vector<8x64xf32> to vector<8x32xf32>
    %569 = tpu.concatenate %567, %568 in 1 : vector<8x32xf32>, vector<8x32xf32> -> vector<8x64xf32>
    %c0_78 = arith.constant 0 : index
    %c0_79 = arith.constant 0 : index
    %570 = vector.load %arg12[%c0_78, %c0_79] : memref<64x128xf32, #tpu.memory_space<vmem>>, vector<64x128xf32>
    %cst_80 = arith.constant dense<0.000000e+00> : vector<8x128xf32>
    %571 = tpu.matmul %569, %570, %cst_80 {dimension_numbers = #tpu.dot_dimension_numbers<[1], [0], [0], [1], [0, 0, 1, 1], [], []>} : vector<8x64xf32>, vector<64x128xf32>, vector<8x128xf32> -> vector<8x128xf32>
    %c0_81 = arith.constant 0 : index
    %c0_82 = arith.constant 0 : index
    %572 = vector.load %arg13[%c0_81, %c0_82] : memref<1x128xf32, #tpu.memory_space<vmem>>, vector<1x128xf32>
    %573 = vector.broadcast %572 : vector<1x128xf32> to vector<8x128xf32>
    %574 = arith.addf %571, %573 : vector<8x128xf32>
    %c0_83 = arith.constant 0 : index
    %c0_84 = arith.constant 0 : index
    %575 = vector.load %arg14[%c0_83, %c0_84] : memref<8x128xf32, #tpu.memory_space<vmem>>, vector<8x128xf32>
    tpu.vector_store %arg14[%c0_83, %c0_84], %574 {strides = array<i32>} : memref<8x128xf32, #tpu.memory_space<vmem>>, vector<8x128xf32>,
    return
  }
  func.func @transform_0(%arg0: i32) -> (i32, i32) {
    %c0_i32 = arith.constant 0 : i32
    %c0_i32_0 = arith.constant 0 : i32
    return %arg0, %c0_i32 : i32, i32
  }
  func.func @transform_1(%arg0: i32) -> (i32, i32) {
    %c0_i32 = arith.constant 0 : i32
    %c0_i32_0 = arith.constant 0 : i32
    %c0_i32_1 = arith.constant 0 : i32
    return %c0_i32, %c0_i32_0 : i32, i32
  }
  func.func @transform_2(%arg0: i32) -> (i32, i32) {
    %c0_i32 = arith.constant 0 : i32
    %c0_i32_0 = arith.constant 0 : i32
    %c0_i32_1 = arith.constant 0 : i32
    return %c0_i32, %c0_i32_0 : i32, i32
  }
  func.func @transform_3(%arg0: i32) -> (i32, i32) {
    %c0_i32 = arith.constant 0 : i32
    %c0_i32_0 = arith.constant 0 : i32
    %c0_i32_1 = arith.constant 0 : i32
    return %c0_i32, %c0_i32_0 : i32, i32
  }
  func.func @transform_4(%arg0: i32) -> (i32, i32) {
    %c0_i32 = arith.constant 0 : i32
    %c0_i32_0 = arith.constant 0 : i32
    %c0_i32_1 = arith.constant 0 : i32
    return %c0_i32, %c0_i32_0 : i32, i32
  }
  func.func @transform_5(%arg0: i32) -> (i32, i32) {
    %c0_i32 = arith.constant 0 : i32
    %c0_i32_0 = arith.constant 0 : i32
    %c0_i32_1 = arith.constant 0 : i32
    return %c0_i32, %c0_i32_0 : i32, i32
  }
  func.func @transform_6(%arg0: i32) -> (i32, i32) {
    %c0_i32 = arith.constant 0 : i32
    %c0_i32_0 = arith.constant 0 : i32
    %c0_i32_1 = arith.constant 0 : i32
    return %c0_i32, %c0_i32_0 : i32, i32
  }
  func.func @transform_7(%arg0: i32) -> (i32, i32) {
    %c0_i32 = arith.constant 0 : i32
    %c0_i32_0 = arith.constant 0 : i32
    %c0_i32_1 = arith.constant 0 : i32
    return %c0_i32, %c0_i32_0 : i32, i32
  }
  func.func @transform_8(%arg0: i32) -> (i32, i32) {
    %c0_i32 = arith.constant 0 : i32
    %c0_i32_0 = arith.constant 0 : i32
    %c0_i32_1 = arith.constant 0 : i32
    return %c0_i32, %c0_i32_0 : i32, i32
  }
  func.func @transform_9(%arg0: i32) -> (i32, i32) {
    %c0_i32 = arith.constant 0 : i32
    %c0_i32_0 = arith.constant 0 : i32
    %c0_i32_1 = arith.constant 0 : i32
    return %c0_i32, %c0_i32_0 : i32, i32
  }
  func.func @transform_10(%arg0: i32) -> (i32, i32) {
    %c0_i32 = arith.constant 0 : i32
    %c0_i32_0 = arith.constant 0 : i32
    %c0_i32_1 = arith.constant 0 : i32
    return %c0_i32, %c0_i32_0 : i32, i32
  }
  func.func @transform_11(%arg0: i32) -> (i32, i32) {
    %c0_i32 = arith.constant 0 : i32
    %c0_i32_0 = arith.constant 0 : i32
    %c0_i32_1 = arith.constant 0 : i32
    return %c0_i32, %c0_i32_0 : i32, i32
  }
  func.func @transform_12(%arg0: i32) -> (i32, i32) {
    %c0_i32 = arith.constant 0 : i32
    %c0_i32_0 = arith.constant 0 : i32
    %c0_i32_1 = arith.constant 0 : i32
    return %c0_i32, %c0_i32_0 : i32, i32
  }
  func.func @transform_13(%arg0: i32) -> (i32, i32) {
    %c0_i32 = arith.constant 0 : i32
    %c0_i32_0 = arith.constant 0 : i32
    return %arg0, %c0_i32 : i32, i32
  }
}

</mosaic_0001>

<llo_original>
// kernel: simple_lstm_forward.1
$region0: #{simple_lstm_forward.1}
  #allocation0 [shape = 'u32[]', space=smem, size = 0x4, offset = 0x4, fixed_abs, tag = 'smem constant byte address 0x4 - core index']
  #allocation1 [shape = 'u32[144,128]{1,0:T(1,128)}', space=vmem, size = 0x12000, scoped, tag = 'internal scratch']
  %s0 = inlined_call_operand.vmem [shape: s32[128,1], index: 0, kind: input, shape index: {}]
  %s1 = inlined_call_operand.hbm [shape: f32[32,32], index: 1, kind: input, shape index: {}]
  %s2 = inlined_call_operand.hbm [shape: f32[32,256], index: 2, kind: input, shape index: {}]
  %s3 = inlined_call_operand.hbm [shape: f32[64,256], index: 3, kind: input, shape index: {}]
  %s4 = inlined_call_operand.vmem [shape: f32[1,256], index: 4, kind: input, shape index: {}]
  %s5 = inlined_call_operand.hbm [shape: f32[64,256], index: 5, kind: input, shape index: {}]
  %s6 = inlined_call_operand.hbm [shape: f32[64,256], index: 6, kind: input, shape index: {}]
  %s7 = inlined_call_operand.vmem [shape: f32[1,256], index: 7, kind: input, shape index: {}]
  %s8 = inlined_call_operand.hbm [shape: f32[64,256], index: 8, kind: input, shape index: {}]
  %s9 = inlined_call_operand.vmem [shape: f32[64,256], index: 9, kind: input, shape index: {}]
  %s10 = inlined_call_operand.vmem [shape: f32[1,256], index: 10, kind: input, shape index: {}]
  %s11 = inlined_call_operand.vmem [shape: f32[64,128], index: 11, kind: input, shape index: {}]
  %s12 = inlined_call_operand.vmem [shape: f32[1,128], index: 12, kind: input, shape index: {}]
  %s13 = inlined_call_operand.vmem [shape: f32[16,128], index: 13, kind: output, shape index: {}]
  %s14 = sld [smem:[#allocation0]]
  $region109: #{simple_lstm_forward.1} parent=0
    _
  %s16 = ssub.s32 1, %s14
  %s17 = scalar_select 0, %s16, %s14
  $region1: #{simple_lstm_forward.1} parent=0
    #allocation2 [shape = 'u8[16384]{0}', space=vmem, size = 0x4000, scoped, tag = 'input window, operand 1, single buffered']
    #allocation3 [shape = 's32[2]{0}', space=sflag, size = 0x8, scoped, tag = 'scoped memory for simple_lstm_forward.1']
    #allocation4 [shape = 'u8[32768]{0}', space=vmem, size = 0x8000, scoped, tag = 'input window, operand 2, single buffered']
    #allocation5 [shape = 's32[1]{0}', space=sflag, size = 0x4, scoped, tag = 'scoped memory for simple_lstm_forward.1']
    #allocation6 [shape = 'u8[65536]{0}', space=vmem, size = 0x10000, scoped, tag = 'input window, operand 3, single buffered']
    #allocation7 [shape = 'u8[65536]{0}', space=vmem, size = 0x10000, scoped, tag = 'input window, operand 5, single buffered']
    #allocation8 [shape = 's32[1]{0}', space=sflag, size = 0x4, scoped, tag = 'scoped memory for simple_lstm_forward.1']
    #allocation9 [shape = 'u8[65536]{0}', space=vmem, size = 0x10000, scoped, tag = 'input window, operand 6, single buffered']
    #allocation10 [shape = 'u8[65536]{0}', space=vmem, size = 0x10000, scoped, tag = 'input window, operand 8, single buffered']
    #allocation11 [shape = 's32[1]{0}', space=sflag, size = 0x4, scoped, tag = 'scoped memory for simple_lstm_forward.1']
    %18 = vsyncpa [#allocation3], 0
    %19 = vsyncpa [#allocation5], 0
    %20 = vsyncpa [#allocation8], 0
    %21 = vsyncpa [#allocation11], 0
    loop: start=0, step=1, limit=4
    $region2: #{simple_lstm_forward.1} parent=1 // loop_pre_header
      _
    $region3: #{simple_lstm_forward.1} parent=1 // loop_header
      %s23 = sphi 0, %s27
      %p24 = scmp.ge.s32.totalorder %s23, 4
      %s33 = sphi 0, %s35
      %s36 = sphi 0, %s33
      %s37 = sphi 0, %s36
      %s53 = sphi 0, %s37
      %s57 = sphi 0, %s57
      %s59 = sphi 0, %s57
      %s60 = sphi 0, %s59
      %s74 = sphi 0, %s60
      %s78 = sphi 0, %s78
      %s80 = sphi 0, %s78
      %s81 = sphi 0, %s80
      %s95 = sphi 0, %s81
      %s99 = sphi 0, %s99
      %s101 = sphi 0, %s99
      %s102 = sphi 0, %s101
      %s116 = sphi 0, %s102
      %s120 = sphi 0, %s120
      %s122 = sphi 0, %s120
      %s123 = sphi 0, %s122
      %s137 = sphi 0, %s123
      %s141 = sphi 0, %s141
      %s143 = sphi 0, %s141
      %s144 = sphi 0, %s143
      %s158 = sphi 0, %s144
      %s162 = sphi 0, %s162
      %s164 = sphi 0, %s162
      %s165 = sphi 0, %s164
      %s179 = sphi 0, %s165
      %s183 = sphi 0, %s183
      %s185 = sphi 0, %s183
      %s186 = sphi 0, %s185
      %s200 = sphi 0, %s186
      %s204 = sphi 0, %s204
      %s206 = sphi 0, %s204
      %s207 = sphi 0, %s206
      %s221 = sphi 0, %s207
      %s225 = sphi 0, %s225
      %s227 = sphi 0, %s225
      %s228 = sphi 0, %s227
      %s242 = sphi 0, %s228
      %s246 = sphi 0, %s246
      %s248 = sphi 0, %s246
      %s249 = sphi 0, %s248
      %s263 = sphi 0, %s249
      %s267 = sphi 0, %s267
      %s269 = sphi 0, %s267
      %s270 = sphi 0, %s269
      %s284 = sphi 0, %s270
      %s288 = sphi 0, %s288
      %s290 = sphi 0, %s288
      %s291 = sphi 0, %s290
      %s305 = sphi 0, %s291
      %s311 = sphi 0, %s313
      %s314 = sphi 0, %s311
      %s315 = sphi 0, %s314
      %s331 = sphi 0, %s315
    $region4: #{simple_lstm_forward.1} parent=1 // loop_header_branch
      %26 = sbr.rel (%p24) target = $region8
    $region5: #{simple_lstm_forward.1} parent=1 // loop_body
      %s28 = ssub.s32 %s23, 1
      %s29 = ssub.s32 %s23, 2
      %s30 = sadd.s32 %s23, 1
      %s31 = ssub.s32 %s23, %s30
      %p32 = scmp.eq.s32.totalorder %s31, 0
      %s34 = sadd.s32 %s33, 1
      %s35 = scalar_select %p32, %s33, %s34
      %p38 = pneg %p32
      %p39 = scmp.eq.s32.totalorder %s23, 1
      %p40 = por %p38, %p39
      %p41 = scmp.ne.s32.totalorder %s33, %s36
      %p42 = scmp.eq.s32.totalorder %s23, 0
      %p43 = por %p41, %p42
      %p44 = scmp.ne.s32.totalorder %s33, %s36
      %p45 = scmp.eq.s32.totalorder %s28, 1
      %p46 = por %p44, %p45
      %p47 = scmp.ne.s32.totalorder %s36, %s37
      %p48 = scmp.eq.s32.totalorder %s28, 0
      %p49 = por %p47, %p48
      %p50 = scmp.ne.s32.totalorder %s36, %s37
      %p51 = scmp.eq.s32.totalorder %s29, 1
      %p52 = por %p50, %p51
      %p54 = scmp.ne.s32.totalorder %s37, %s53
      %p55 = scmp.eq.s32.totalorder %s29, 0
      %p56 = por %p54, %p55
      %s58 = sadd.s32 %s57, 1
      %p61 = scmp.eq.s32.totalorder %s23, 1
      %p62 = scmp.ne.s32.totalorder %s57, %s59
      %p63 = scmp.eq.s32.totalorder %s23, 0
      %p64 = por %p62, %p63
      %p65 = scmp.ne.s32.totalorder %s57, %s59
      %p66 = scmp.eq.s32.totalorder %s28, 1
      %p67 = por %p65, %p66
      %p68 = scmp.ne.s32.totalorder %s59, %s60
      %p69 = scmp.eq.s32.totalorder %s28, 0
      %p70 = por %p68, %p69
      %p71 = scmp.ne.s32.totalorder %s59, %s60
      %p72 = scmp.eq.s32.totalorder %s29, 1
      %p73 = por %p71, %p72
      %p75 = scmp.ne.s32.totalorder %s60, %s74
      %p76 = scmp.eq.s32.totalorder %s29, 0
      %p77 = por %p75, %p76
      %s79 = sadd.s32 %s78, 1
      %p82 = scmp.eq.s32.totalorder %s23, 1
      %p83 = scmp.ne.s32.totalorder %s78, %s80
      %p84 = scmp.eq.s32.totalorder %s23, 0
      %p85 = por %p83, %p84
      %p86 = scmp.ne.s32.totalorder %s78, %s80
      %p87 = scmp.eq.s32.totalorder %s28, 1
      %p88 = por %p86, %p87
      %p89 = scmp.ne.s32.totalorder %s80, %s81
      %p90 = scmp.eq.s32.totalorder %s28, 0
      %p91 = por %p89, %p90
      %p92 = scmp.ne.s32.totalorder %s80, %s81
      %p93 = scmp.eq.s32.totalorder %s29, 1
      %p94 = por %p92, %p93
      %p96 = scmp.ne.s32.totalorder %s81, %s95
      %p97 = scmp.eq.s32.totalorder %s29, 0
      %p98 = por %p96, %p97
      %s100 = sadd.s32 %s99, 1
      %p103 = scmp.eq.s32.totalorder %s23, 1
      %p104 = scmp.ne.s32.totalorder %s99, %s101
      %p105 = scmp.eq.s32.totalorder %s23, 0
      %p106 = por %p104, %p105
      %p107 = scmp.ne.s32.totalorder %s99, %s101
      %p108 = scmp.eq.s32.totalorder %s28, 1
      %p109 = por %p107, %p108
      %p110 = scmp.ne.s32.totalorder %s101, %s102
      %p111 = scmp.eq.s32.totalorder %s28, 0
      %p112 = por %p110, %p111
      %p113 = scmp.ne.s32.totalorder %s101, %s102
      %p114 = scmp.eq.s32.totalorder %s29, 1
      %p115 = por %p113, %p114
      %p117 = scmp.ne.s32.totalorder %s102, %s116
      %p118 = scmp.eq.s32.totalorder %s29, 0
      %p119 = por %p117, %p118
      %s121 = sadd.s32 %s120, 1
      %p124 = scmp.eq.s32.totalorder %s23, 1
      %p125 = scmp.ne.s32.totalorder %s120, %s122
      %p126 = scmp.eq.s32.totalorder %s23, 0
      %p127 = por %p125, %p126
      %p128 = scmp.ne.s32.totalorder %s120, %s122
      %p129 = scmp.eq.s32.totalorder %s28, 1
      %p130 = por %p128, %p129
      %p131 = scmp.ne.s32.totalorder %s122, %s123
      %p132 = scmp.eq.s32.totalorder %s28, 0
      %p133 = por %p131, %p132
      %p134 = scmp.ne.s32.totalorder %s122, %s123
      %p135 = scmp.eq.s32.totalorder %s29, 1
      %p136 = por %p134, %p135
      %p138 = scmp.ne.s32.totalorder %s123, %s137
      %p139 = scmp.eq.s32.totalorder %s29, 0
      %p140 = por %p138, %p139
      %s142 = sadd.s32 %s141, 1
      %p145 = scmp.eq.s32.totalorder %s23, 1
      %p146 = scmp.ne.s32.totalorder %s141, %s143
      %p147 = scmp.eq.s32.totalorder %s23, 0
      %p148 = por %p146, %p147
      %p149 = scmp.ne.s32.totalorder %s141, %s143
      %p150 = scmp.eq.s32.totalorder %s28, 1
      %p151 = por %p149, %p150
      %p152 = scmp.ne.s32.totalorder %s143, %s144
      %p153 = scmp.eq.s32.totalorder %s28, 0
      %p154 = por %p152, %p153
      %p155 = scmp.ne.s32.totalorder %s143, %s144
      %p156 = scmp.eq.s32.totalorder %s29, 1
      %p157 = por %p155, %p156
      %p159 = scmp.ne.s32.totalorder %s144, %s158
      %p160 = scmp.eq.s32.totalorder %s29, 0
      %p161 = por %p159, %p160
      %s163 = sadd.s32 %s162, 1
      %p166 = scmp.eq.s32.totalorder %s23, 1
      %p167 = scmp.ne.s32.totalorder %s162, %s164
      %p168 = scmp.eq.s32.totalorder %s23, 0
      %p169 = por %p167, %p168
      %p170 = scmp.ne.s32.totalorder %s162, %s164
      %p171 = scmp.eq.s32.totalorder %s28, 1
      %p172 = por %p170, %p171
      %p173 = scmp.ne.s32.totalorder %s164, %s165
      %p174 = scmp.eq.s32.totalorder %s28, 0
      %p175 = por %p173, %p174
      %p176 = scmp.ne.s32.totalorder %s164, %s165
      %p177 = scmp.eq.s32.totalorder %s29, 1
      %p178 = por %p176, %p177
      %p180 = scmp.ne.s32.totalorder %s165, %s179
      %p181 = scmp.eq.s32.totalorder %s29, 0
      %p182 = por %p180, %p181
      %s184 = sadd.s32 %s183, 1
      %p187 = scmp.eq.s32.totalorder %s23, 1
      %p188 = scmp.ne.s32.totalorder %s183, %s185
      %p189 = scmp.eq.s32.totalorder %s23, 0
      %p190 = por %p188, %p189
      %p191 = scmp.ne.s32.totalorder %s183, %s185
      %p192 = scmp.eq.s32.totalorder %s28, 1
      %p193 = por %p191, %p192
      %p194 = scmp.ne.s32.totalorder %s185, %s186
      %p195 = scmp.eq.s32.totalorder %s28, 0
      %p196 = por %p194, %p195
      %p197 = scmp.ne.s32.totalorder %s185, %s186
      %p198 = scmp.eq.s32.totalorder %s29, 1
      %p199 = por %p197, %p198
      %p201 = scmp.ne.s32.totalorder %s186, %s200
      %p202 = scmp.eq.s32.totalorder %s29, 0
      %p203 = por %p201, %p202
      %s205 = sadd.s32 %s204, 1
      %p208 = scmp.eq.s32.totalorder %s23, 1
      %p209 = scmp.ne.s32.totalorder %s204, %s206
      %p210 = scmp.eq.s32.totalorder %s23, 0
      %p211 = por %p209, %p210
      %p212 = scmp.ne.s32.totalorder %s204, %s206
      %p213 = scmp.eq.s32.totalorder %s28, 1
      %p214 = por %p212, %p213
      %p215 = scmp.ne.s32.totalorder %s206, %s207
      %p216 = scmp.eq.s32.totalorder %s28, 0
      %p217 = por %p215, %p216
      %p218 = scmp.ne.s32.totalorder %s206, %s207
      %p219 = scmp.eq.s32.totalorder %s29, 1
      %p220 = por %p218, %p219
      %p222 = scmp.ne.s32.totalorder %s207, %s221
      %p223 = scmp.eq.s32.totalorder %s29, 0
      %p224 = por %p222, %p223
      %s226 = sadd.s32 %s225, 1
      %p229 = scmp.eq.s32.totalorder %s23, 1
      %p230 = scmp.ne.s32.totalorder %s225, %s227
      %p231 = scmp.eq.s32.totalorder %s23, 0
      %p232 = por %p230, %p231
      %p233 = scmp.ne.s32.totalorder %s225, %s227
      %p234 = scmp.eq.s32.totalorder %s28, 1
      %p235 = por %p233, %p234
      %p236 = scmp.ne.s32.totalorder %s227, %s228
      %p237 = scmp.eq.s32.totalorder %s28, 0
      %p238 = por %p236, %p237
      %p239 = scmp.ne.s32.totalorder %s227, %s228
      %p240 = scmp.eq.s32.totalorder %s29, 1
      %p241 = por %p239, %p240
      %p243 = scmp.ne.s32.totalorder %s228, %s242
      %p244 = scmp.eq.s32.totalorder %s29, 0
      %p245 = por %p243, %p244
      %s247 = sadd.s32 %s246, 1
      %p250 = scmp.eq.s32.totalorder %s23, 1
      %p251 = scmp.ne.s32.totalorder %s246, %s248
      %p252 = scmp.eq.s32.totalorder %s23, 0
      %p253 = por %p251, %p252
      %p254 = scmp.ne.s32.totalorder %s246, %s248
      %p255 = scmp.eq.s32.totalorder %s28, 1
      %p256 = por %p254, %p255
      %p257 = scmp.ne.s32.totalorder %s248, %s249
      %p258 = scmp.eq.s32.totalorder %s28, 0
      %p259 = por %p257, %p258
      %p260 = scmp.ne.s32.totalorder %s248, %s249
      %p261 = scmp.eq.s32.totalorder %s29, 1
      %p262 = por %p260, %p261
      %p264 = scmp.ne.s32.totalorder %s249, %s263
      %p265 = scmp.eq.s32.totalorder %s29, 0
      %p266 = por %p264, %p265
      %s268 = sadd.s32 %s267, 1
      %p271 = scmp.eq.s32.totalorder %s23, 1
      %p272 = scmp.ne.s32.totalorder %s267, %s269
      %p273 = scmp.eq.s32.totalorder %s23, 0
      %p274 = por %p272, %p273
      %p275 = scmp.ne.s32.totalorder %s267, %s269
      %p276 = scmp.eq.s32.totalorder %s28, 1
      %p277 = por %p275, %p276
      %p278 = scmp.ne.s32.totalorder %s269, %s270
      %p279 = scmp.eq.s32.totalorder %s28, 0
      %p280 = por %p278, %p279
      %p281 = scmp.ne.s32.totalorder %s269, %s270
      %p282 = scmp.eq.s32.totalorder %s29, 1
      %p283 = por %p281, %p282
      %p285 = scmp.ne.s32.totalorder %s270, %s284
      %p286 = scmp.eq.s32.totalorder %s29, 0
      %p287 = por %p285, %p286
      %s289 = sadd.s32 %s288, 1
      %p292 = scmp.eq.s32.totalorder %s23, 1
      %p293 = scmp.ne.s32.totalorder %s288, %s290
      %p294 = scmp.eq.s32.totalorder %s23, 0
      %p295 = por %p293, %p294
      %p296 = scmp.ne.s32.totalorder %s288, %s290
      %p297 = scmp.eq.s32.totalorder %s28, 1
      %p298 = por %p296, %p297
      %p299 = scmp.ne.s32.totalorder %s290, %s291
      %p300 = scmp.eq.s32.totalorder %s28, 0
      %p301 = por %p299, %p300
      %p302 = scmp.ne.s32.totalorder %s290, %s291
      %p303 = scmp.eq.s32.totalorder %s29, 1
      %p304 = por %p302, %p303
      %p306 = scmp.ne.s32.totalorder %s291, %s305
      %p307 = scmp.eq.s32.totalorder %s29, 0
      %p308 = por %p306, %p307
      %s309 = ssub.s32 %s23, %s30
      %p310 = scmp.eq.s32.totalorder %s309, 0
      %s312 = sadd.s32 %s311, 1
      %s313 = scalar_select %p310, %s311, %s312
      %p316 = pneg %p310
      %p317 = scmp.eq.s32.totalorder %s23, 1
      %p318 = por %p316, %p317
      %p319 = scmp.ne.s32.totalorder %s311, %s314
      %p320 = scmp.eq.s32.totalorder %s23, 0
      %p321 = por %p319, %p320
      %p322 = scmp.ne.s32.totalorder %s311, %s314
      %p323 = scmp.eq.s32.totalorder %s28, 1
      %p324 = por %p322, %p323
      %p325 = scmp.ne.s32.totalorder %s314, %s315
      %p326 = scmp.eq.s32.totalorder %s28, 0
      %p327 = por %p325, %p326
      %p328 = scmp.ne.s32.totalorder %s314, %s315
      %p329 = scmp.eq.s32.totalorder %s29, 1
      %p330 = por %p328, %p329
      %p332 = scmp.ne.s32.totalorder %s315, %s331
      %p333 = scmp.eq.s32.totalorder %s29, 0
      %p334 = por %p332, %p333
      %p335 = scmp.le.s32.totalorder 1, %s23
      %p336 = scmp.lt.s32.totalorder %s23, 3
      %p337 = pnand %p335, %p336
      %p338 = pneg %p337
      // Predicated region
      $region9: #{simple_lstm_forward.1} parent=5 // pred_check
        _
      $region10: #{simple_lstm_forward.1} parent=5 // pred_check_branch
        %340 = sbr.rel (%p337) target = $region12
      $region11: #{simple_lstm_forward.1} parent=5 // pred_region
        %s341 = ssub.s32 %s23, 1
        // Predicated region
        $region13: #{simple_lstm_forward.1} parent=11 // pred_check
          %p342 = pneg %p70
        $region14: #{simple_lstm_forward.1} parent=11 // pred_check_branch
          %344 = sbr.rel (%p342) target = $region16
        $region15: #{simple_lstm_forward.1} parent=11 // pred_region
          %s346 = ssub.s32 512, 512
          %347 = vsyncadd [#allocation3], %s346
          %s348 = sshll.u32 [#allocation2], 4
          %s349 = int_to_ptr.vmem [resolvable:$true] %s348
          %354 = dma.hbm_to_vmem [thread:$0]  %s1, 512, %s349, [#allocation3], 128, 128, 8
        $region16: #{simple_lstm_forward.1} parent=11 // pred_fallthru
          _
        // Predicated region
        $region17: #{simple_lstm_forward.1} parent=11 // pred_check
          %p355 = pneg %p91
        $region18: #{simple_lstm_forward.1} parent=11 // pred_check_branch
          %357 = sbr.rel (%p355) target = $region20
        $region19: #{simple_lstm_forward.1} parent=11 // pred_region
          %s359 = ssub.s32 1024, 1024
          %360 = vsyncadd [#allocation5], %s359
          %s361 = sshll.u32 [#allocation4], 4
          %s362 = int_to_ptr.vmem [resolvable:$true] %s361
          %367 = dma.hbm_to_vmem [thread:$0]  %s2, 1024, %s362, [#allocation5], 256, 256, 16
        $region20: #{simple_lstm_forward.1} parent=11 // pred_fallthru
          _
        // Predicated region
        $region21: #{simple_lstm_forward.1} parent=11 // pred_check
          %p368 = pneg %p112
        $region22: #{simple_lstm_forward.1} parent=11 // pred_check_branch
          %370 = sbr.rel (%p368) target = $region24
        $region23: #{simple_lstm_forward.1} parent=11 // pred_region
          %s372 = ssub.s32 2048, 2048
          %373 = vsyncadd [#allocation5], %s372
          %s374 = sshll.u32 [#allocation6], 4
          %s375 = int_to_ptr.vmem [resolvable:$true] %s374
          %380 = dma.hbm_to_vmem [thread:$0]  %s3, 2048, %s375, [#allocation5], 256, 256, 16
        $region24: #{simple_lstm_forward.1} parent=11 // pred_fallthru
          _
        // Predicated region
        $region25: #{simple_lstm_forward.1} parent=11 // pred_check
          %p381 = pneg %p133
        $region26: #{simple_lstm_forward.1} parent=11 // pred_check_branch
          %383 = sbr.rel (%p381) target = $region28
        $region27: #{simple_lstm_forward.1} parent=11 // pred_region
          _
        $region28: #{simple_lstm_forward.1} parent=11 // pred_fallthru
          _
        // Predicated region
        $region29: #{simple_lstm_forward.1} parent=11 // pred_check
          %p384 = pneg %p154
        $region30: #{simple_lstm_forward.1} parent=11 // pred_check_branch
          %386 = sbr.rel (%p384) target = $region32
        $region31: #{simple_lstm_forward.1} parent=11 // pred_region
          %s388 = ssub.s32 2048, 2048
          %389 = vsyncadd [#allocation8], %s388
          %s390 = sshll.u32 [#allocation7], 4
          %s391 = int_to_ptr.vmem [resolvable:$true] %s390
          %396 = dma.hbm_to_vmem [thread:$0]  %s5, 2048, %s391, [#allocation8], 256, 256, 16
        $region32: #{simple_lstm_forward.1} parent=11 // pred_fallthru
          _
        // Predicated region
        $region33: #{simple_lstm_forward.1} parent=11 // pred_check
          %p397 = pneg %p175
        $region34: #{simple_lstm_forward.1} parent=11 // pred_check_branch
          %399 = sbr.rel (%p397) target = $region36
        $region35: #{simple_lstm_forward.1} parent=11 // pred_region
          %s401 = ssub.s32 2048, 2048
          %402 = vsyncadd [#allocation8], %s401
          %s403 = sshll.u32 [#allocation9], 4
          %s404 = int_to_ptr.vmem [resolvable:$true] %s403
          %409 = dma.hbm_to_vmem [thread:$0]  %s6, 2048, %s404, [#allocation8], 256, 256, 16
        $region36: #{simple_lstm_forward.1} parent=11 // pred_fallthru
          _
        // Predicated region
        $region37: #{simple_lstm_forward.1} parent=11 // pred_check
          %p410 = pneg %p196
        $region38: #{simple_lstm_forward.1} parent=11 // pred_check_branch
          %412 = sbr.rel (%p410) target = $region40
        $region39: #{simple_lstm_forward.1} parent=11 // pred_region
          _
        $region40: #{simple_lstm_forward.1} parent=11 // pred_fallthru
          _
        // Predicated region
        $region41: #{simple_lstm_forward.1} parent=11 // pred_check
          %p413 = pneg %p217
        $region42: #{simple_lstm_forward.1} parent=11 // pred_check_branch
          %415 = sbr.rel (%p413) target = $region44
        $region43: #{simple_lstm_forward.1} parent=11 // pred_region
          %s417 = ssub.s32 2048, 2048
          %418 = vsyncadd [#allocation11], %s417
          %s419 = sshll.u32 [#allocation10], 4
          %s420 = int_to_ptr.vmem [resolvable:$true] %s419
          %425 = dma.hbm_to_vmem [thread:$0]  %s8, 2048, %s420, [#allocation11], 256, 256, 16
        $region44: #{simple_lstm_forward.1} parent=11 // pred_fallthru
          _
        // Predicated region
        $region45: #{simple_lstm_forward.1} parent=11 // pred_check
          %p426 = pneg %p238
        $region46: #{simple_lstm_forward.1} parent=11 // pred_check_branch
          %428 = sbr.rel (%p426) target = $region48
        $region47: #{simple_lstm_forward.1} parent=11 // pred_region
          _
        $region48: #{simple_lstm_forward.1} parent=11 // pred_fallthru
          _
        // Predicated region
        $region49: #{simple_lstm_forward.1} parent=11 // pred_check
          %p429 = pneg %p259
        $region50: #{simple_lstm_forward.1} parent=11 // pred_check_branch
          %431 = sbr.rel (%p429) target = $region52
        $region51: #{simple_lstm_forward.1} parent=11 // pred_region
          _
        $region52: #{simple_lstm_forward.1} parent=11 // pred_fallthru
          _
        // Predicated region
        $region53: #{simple_lstm_forward.1} parent=11 // pred_check
          %p432 = pneg %p280
        $region54: #{simple_lstm_forward.1} parent=11 // pred_check_branch
          %434 = sbr.rel (%p432) target = $region56
        $region55: #{simple_lstm_forward.1} parent=11 // pred_region
          _
        $region56: #{simple_lstm_forward.1} parent=11 // pred_fallthru
          _
        // Predicated region
        $region57: #{simple_lstm_forward.1} parent=11 // pred_check
          %p435 = pneg %p301
        $region58: #{simple_lstm_forward.1} parent=11 // pred_check_branch
          %437 = sbr.rel (%p435) target = $region60
        $region59: #{simple_lstm_forward.1} parent=11 // pred_region
          _
        $region60: #{simple_lstm_forward.1} parent=11 // pred_fallthru
          _
      $region12: #{simple_lstm_forward.1} parent=5 // pred_fallthru
        _
      %p438 = scmp.lt.s32.totalorder %s23, 2
      // Predicated region
      $region61: #{simple_lstm_forward.1} parent=5 // pred_check
        %p439 = pneg %p438
      $region62: #{simple_lstm_forward.1} parent=5 // pred_check_branch
        %441 = sbr.rel (%p439) target = $region64
      $region63: #{simple_lstm_forward.1} parent=5 // pred_region
        // Predicated region
        $region65: #{simple_lstm_forward.1} parent=63 // pred_check
          %p442 = pneg %p43
        $region66: #{simple_lstm_forward.1} parent=63 // pred_check_branch
          %444 = sbr.rel (%p442) target = $region68
        $region67: #{simple_lstm_forward.1} parent=63 // pred_region
          %s445 = smul.u32 8, %s23
          %p446 = scmp.lt.s32.totalorder %s445, 15
          %s447 = scalar_select %p446, %s445, 15
          %s448 = smul.addr %s447, 8
          %s449 = scalar_lea.vmem %s0, %s448
          %s450 = smul.u32 8, %s23
        $region68: #{simple_lstm_forward.1} parent=63 // pred_fallthru
          _
      $region64: #{simple_lstm_forward.1} parent=5 // pred_fallthru
        _
      %p451 = scmp.le.s32.totalorder 1, %s23
      %p452 = scmp.lt.s32.totalorder %s23, 3
      %p453 = pnand %p451, %p452
      %p454 = pneg %p453
      // Predicated region
      $region69: #{simple_lstm_forward.1} parent=5 // pred_check
        _
      $region70: #{simple_lstm_forward.1} parent=5 // pred_check_branch
        %456 = sbr.rel (%p453) target = $region72
      $region71: #{simple_lstm_forward.1} parent=5 // pred_region
        %s457 = ssub.s32 %s23, 1
        // Predicated region
        $region73: #{simple_lstm_forward.1} parent=71 // pred_check
          %p458 = pneg %p70
        $region74: #{simple_lstm_forward.1} parent=71 // pred_check_branch
          %460 = sbr.rel (%p458) target = $region76
        $region75: #{simple_lstm_forward.1} parent=71 // pred_region
          %461 = dma.done [#allocation3], 512
        $region76: #{simple_lstm_forward.1} parent=71 // pred_fallthru
          _
        // Predicated region
        $region77: #{simple_lstm_forward.1} parent=71 // pred_check
          %p462 = pneg %p91
        $region78: #{simple_lstm_forward.1} parent=71 // pred_check_branch
          %464 = sbr.rel (%p462) target = $region80
        $region79: #{simple_lstm_forward.1} parent=71 // pred_region
          %465 = dma.done [#allocation5], 1024
        $region80: #{simple_lstm_forward.1} parent=71 // pred_fallthru
          _
        // Predicated region
        $region81: #{simple_lstm_forward.1} parent=71 // pred_check
          %p466 = pneg %p112
        $region82: #{simple_lstm_forward.1} parent=71 // pred_check_branch
          %468 = sbr.rel (%p466) target = $region84
        $region83: #{simple_lstm_forward.1} parent=71 // pred_region
          %469 = dma.done [#allocation5], 2048
        $region84: #{simple_lstm_forward.1} parent=71 // pred_fallthru
          _
        // Predicated region
        $region85: #{simple_lstm_forward.1} parent=71 // pred_check
          %p470 = pneg %p154
        $region86: #{simple_lstm_forward.1} parent=71 // pred_check_branch
          %472 = sbr.rel (%p470) target = $region88
        $region87: #{simple_lstm_forward.1} parent=71 // pred_region
          %473 = dma.done [#allocation8], 2048
        $region88: #{simple_lstm_forward.1} parent=71 // pred_fallthru
          _
        // Predicated region
        $region89: #{simple_lstm_forward.1} parent=71 // pred_check
          %p474 = pneg %p175
        $region90: #{simple_lstm_forward.1} parent=71 // pred_check_branch
          %476 = sbr.rel (%p474) target = $region92
        $region91: #{simple_lstm_forward.1} parent=71 // pred_region
          %477 = dma.done [#allocation8], 2048
        $region92: #{simple_lstm_forward.1} parent=71 // pred_fallthru
          _
        // Predicated region
        $region93: #{simple_lstm_forward.1} parent=71 // pred_check
          %p478 = pneg %p217
        $region94: #{simple_lstm_forward.1} parent=71 // pred_check_branch
          %480 = sbr.rel (%p478) target = $region96
        $region95: #{simple_lstm_forward.1} parent=71 // pred_region
          %481 = dma.done [#allocation11], 2048
        $region96: #{simple_lstm_forward.1} parent=71 // pred_fallthru
          _
        %s482 = smul.u32 8, %s28
        %p483 = scmp.lt.s32.totalorder %s482, 15
        %s484 = scalar_select %p483, %s482, 15
        %s485 = smul.addr %s484, 8
        %s486 = scalar_lea.vmem %s0, %s485
        %p487 = pneg %p49
        %p488 = pneg %p46
        %p489 = pneg %p70
        %p490 = pneg %p67
        %p491 = pneg %p91
        %p492 = pneg %p88
        %p493 = pneg %p112
        %p494 = pneg %p109
        %p495 = pneg %p133
        %p496 = pneg %p130
        %p497 = pneg %p154
        %p498 = pneg %p151
        %p499 = pneg %p175
        %p500 = pneg %p172
        %p501 = pneg %p196
        %p502 = pneg %p193
        %p503 = pneg %p217
        %p504 = pneg %p214
        %p505 = pneg %p238
        %p506 = pneg %p235
        %p507 = pneg %p259
        %p508 = pneg %p256
        %p509 = pneg %p280
        %p510 = pneg %p277
        %p511 = pneg %p301
        %p512 = pneg %p298
        %p513 = pneg %p327
        %p514 = pneg %p324
        %p515 = scmp.lt.s32.totalorder %s28, 1
        %s516 = scalar_select %p515, %s28, 1
        %s517 = smul.addr %s516, 8
        %s518 = scalar_lea.vmem %s13, %s517
        %s519 = smul.u32 8, %s28
        %p520 = scmp.lt.s32.totalorder %s519, 15
        %s521 = scalar_select %p520, %s519, 15
        %s522 = smul.addr %s521, 8
        %s523 = scalar_lea.vmem %s0, %s522
        %s524 = smul.u32 8, %s28
        %p525 = scmp.lt.s32.totalorder %s28, 1
        %s526 = scalar_select %p525, %s28, 1
        %s527 = smul.addr %s526, 8
        %s528 = scalar_lea.vmem %s13, %s527
        %v529 = vld [vmem:[%s523] sm:$0xff]
        %v530 = vld [vmem:[%s523 + $0x8] sm:$0xff]
        %v531 = vld [vmem:[%s523 + $0x10] sm:$0xff]
        %v532 = vld [vmem:[%s523 + $0x18] sm:$0xff]
        %v533 = vld [vmem:[%s523 + $0x20] sm:$0xff]
        %v534 = vld [vmem:[%s523 + $0x28] sm:$0xff]
        %v535 = vld [vmem:[%s523 + $0x30] sm:$0xff]
        %v536 = vld [vmem:[%s523 + $0x38] sm:$0xff]
        %v537 = vlaneseq
        %v538 = vand.u32 %v537, 127
        %539 = vset.pattern.permute.xlu0 0
        %540 = vperm.xlu0 %539, %v529
        %v541 = vpop.permute.xlu0 %540
        %542 = vset.pattern.permute.xlu0 0
        %543 = vperm.xlu0 %542, %v530
        %v544 = vpop.permute.xlu0 %543
        %545 = vset.pattern.permute.xlu0 0
        %546 = vperm.xlu0 %545, %v531
        %v547 = vpop.permute.xlu0 %546
        %548 = vset.pattern.permute.xlu0 0
        %549 = vperm.xlu0 %548, %v532
        %v550 = vpop.permute.xlu0 %549
        %551 = vset.pattern.permute.xlu0 0
        %552 = vperm.xlu0 %551, %v533
        %v553 = vpop.permute.xlu0 %552
        %554 = vset.pattern.permute.xlu0 0
        %555 = vperm.xlu0 %554, %v534
        %v556 = vpop.permute.xlu0 %555
        %557 = vset.pattern.permute.xlu0 0
        %558 = vperm.xlu0 %557, %v535
        %v559 = vpop.permute.xlu0 %558
        %560 = vset.pattern.permute.xlu0 0
        %561 = vperm.xlu0 %560, %v536
        %v562 = vpop.permute.xlu0 %561
        %vm563 = vcmp.eq.s32.totalorder %v541, %v538
        %vm564 = vcmp.eq.s32.totalorder %v544, %v538
        %vm565 = vcmp.eq.s32.totalorder %v547, %v538
        %vm566 = vcmp.eq.s32.totalorder %v550, %v538
        %vm567 = vcmp.eq.s32.totalorder %v553, %v538
        %vm568 = vcmp.eq.s32.totalorder %v556, %v538
        %vm569 = vcmp.eq.s32.totalorder %v559, %v538
        %vm570 = vcmp.eq.s32.totalorder %v562, %v538
        %v571 = vsel %vm563, 1, 0
        %v572 = vsel %vm564, 1, 0
        %v573 = vsel %vm565, 1, 0
        %v574 = vsel %vm566, 1, 0
        %v575 = vsel %vm567, 1, 0
        %v576 = vsel %vm568, 1, 0
        %v577 = vsel %vm569, 1, 0
        %v578 = vsel %vm570, 1, 0
        %v579 = vcvt.s32.f32 %v571
        %v580 = vcvt.s32.f32 %v572
        %v581 = vcvt.s32.f32 %v573
        %v582 = vcvt.s32.f32 %v574
        %v583 = vcvt.s32.f32 %v575
        %v584 = vcvt.s32.f32 %v576
        %v585 = vcvt.s32.f32 %v577
        %v586 = vcvt.s32.f32 %v578
        %v587 = vld [vmem:[#allocation2] sm:$0xff]
        %v588 = vld [vmem:[#allocation2 + $0x8] sm:$0xff]
        %v589 = vld [vmem:[#allocation2 + $0x10] sm:$0xff]
        %v590 = vld [vmem:[#allocation2 + $0x18] sm:$0xff]
        %vm591 = vcmask 261120
        %v593 = vsel %vm591, %v579, 0
        %v596 = vsel %vm591, %v580, 0
        %v599 = vsel %vm591, %v581, 0
        %v602 = vsel %vm591, %v582, 0
        %v605 = vsel %vm591, %v583, 0
        %v608 = vsel %vm591, %v584, 0
        %v611 = vsel %vm591, %v585, 0
        %v614 = vsel %vm591, %v586, 0
        %616 = vmatprep.subr.mxu0 0.0
        %617 = vmatpush1.msra.mxu0 0.0
        %618 = vmatprep.subr.mxu0 0.0
        %619 = vmatpush1.msra.mxu0 0.0
        %620 = vmatprep.subr.mxu0 0.0
        %621 = vmatpush1.msra.mxu0 0.0
        %622 = vmatprep.subr.mxu0 0.0
        %623 = vmatpush1.msra.mxu0 0.0
        %624 = vmatprep.subr.mxu0 0.0
        %625 = vmatpush1.msra.mxu0 0.0
        %626 = vmatprep.subr.mxu0 0.0
        %627 = vmatpush1.msra.mxu0 0.0
        %628 = vmatprep.subr.mxu0 0.0
        %629 = vmatpush1.msra.mxu0 0.0
        %630 = vmatprep.subr.mxu0 0.0
        %631 = vmatpush1.msra.mxu0 0.0
        %632 = vmatprep.subr.mxu0 0.0
        %633 = vmatpush1.msra.mxu0 0.0
        %634 = vmatprep.subr.mxu0 0.0
        %635 = vmatpush1.msra.mxu0 0.0
        %636 = vmatprep.subr.mxu0 0.0
        %637 = vmatpush1.msra.mxu0 0.0
        %638 = vmatprep.subr.mxu0 0.0
        %639 = vmatpush1.msra.mxu0 0.0
        %640 = vmatprep.subr.mxu0 0.0
        %641 = vmatpush1.msra.mxu0 %v590
        %642 = vmatprep.subr.mxu0 0.0
        %643 = vmatpush1.msra.mxu0 %v589
        %644 = vmatprep.subr.mxu0 0.0
        %645 = vmatpush1.msra.mxu0 %v588
        %646 = vmatprep.subr.mxu0 0.0
        %647 = vmatpush1.msra.mxu0 %v587
        %648 = vmatprep.subr.mxu0 0.0
        %649 = vmatpush2.msra.mxu0 0.0
        %650 = vmatprep.subr.mxu0 0.0
        %651 = vmatpush2.msra.mxu0 0.0
        %652 = vmatprep.subr.mxu0 0.0
        %653 = vmatpush2.msra.mxu0 0.0
        %654 = vmatprep.subr.mxu0 0.0
        %655 = vmatpush2.msra.mxu0 0.0
        %656 = vmatprep.subr.mxu0 0.0
        %657 = vmatpush2.msra.mxu0 0.0
        %658 = vmatprep.subr.mxu0 0.0
        %659 = vmatpush2.msra.mxu0 0.0
        %660 = vmatprep.subr.mxu0 0.0
        %661 = vmatpush2.msra.mxu0 0.0
        %662 = vmatprep.subr.mxu0 0.0
        %663 = vmatpush2.msra.mxu0 0.0
        %664 = vmatprep.subr.mxu0 0.0
        %665 = vmatpush2.msra.mxu0 0.0
        %666 = vmatprep.subr.mxu0 0.0
        %667 = vmatpush2.msra.mxu0 0.0
        %668 = vmatprep.subr.mxu0 0.0
        %669 = vmatpush2.msra.mxu0 0.0
        %670 = vmatprep.subr.mxu0 0.0
        %671 = vmatpush2.msra.mxu0 0.0
        %672 = vmatprep.subr.mxu0 0.0
        %673 = vmatpush2.msra.mxu0 0.0
        %674 = vmatprep.subr.mxu0 0.0
        %675 = vmatpush2.msra.mxu0 0.0
        %676 = vmatprep.subr.mxu0 0.0
        %677 = vmatpush2.msra.mxu0 0.0
        %678 = vmatprep.subr.mxu0 0.0
        %679 = vmatpush2.msra.mxu0 0.0
        %680 = vmatprep.mubr.f32.mxu0 0.0
        %681 = vmatmul.mubr.f32.gmra.mxu0 %v593
        %v682 = vpop.f32.mrf.mxu0
        %v683 = vadd.f32 0.0, %v682
        %v684 = vpop.f32.mrf.mxu0
        %685 = vmatprep.mubr.f32.mxu0 0.0
        %686 = vmatmul.mubr.f32.gmra.mxu0 %v596
        %v687 = vpop.f32.mrf.mxu0
        %v688 = vadd.f32 0.0, %v687
        %v689 = vpop.f32.mrf.mxu0
        %690 = vmatprep.mubr.f32.mxu0 0.0
        %691 = vmatmul.mubr.f32.gmra.mxu0 %v599
        %v692 = vpop.f32.mrf.mxu0
        %v693 = vadd.f32 0.0, %v692
        %v694 = vpop.f32.mrf.mxu0
        %695 = vmatprep.mubr.f32.mxu0 0.0
        %696 = vmatmul.mubr.f32.gmra.mxu0 %v602
        %v697 = vpop.f32.mrf.mxu0
        %v698 = vadd.f32 0.0, %v697
        %v699 = vpop.f32.mrf.mxu0
        %700 = vmatprep.mubr.f32.mxu0 0.0
        %701 = vmatmul.mubr.f32.gmra.mxu0 %v605
        %v702 = vpop.f32.mrf.mxu0
        %v703 = vadd.f32 0.0, %v702
        %v704 = vpop.f32.mrf.mxu0
        %705 = vmatprep.mubr.f32.mxu0 0.0
        %706 = vmatmul.mubr.f32.gmra.mxu0 %v608
        %v707 = vpop.f32.mrf.mxu0
        %v708 = vadd.f32 0.0, %v707
        %v709 = vpop.f32.mrf.mxu0
        %710 = vmatprep.mubr.f32.mxu0 0.0
        %711 = vmatmul.mubr.f32.gmra.mxu0 %v611
        %v712 = vpop.f32.mrf.mxu0
        %v713 = vadd.f32 0.0, %v712
        %v714 = vpop.f32.mrf.mxu0
        %715 = vmatprep.mubr.f32.mxu0 0.0
        %716 = vmatmul.mubr.f32.gmra.mxu0 %v614
        %v717 = vpop.f32.mrf.mxu0
        %v718 = vadd.f32 0.0, %v717
        %v719 = vpop.f32.mrf.mxu0
        %720 = vdwg.mxu0
        %v721 = vadd.s32 %v538, 128
        %v722 = vand.u32 %v538, 63
        %v723 = vand.u32 %v721, 63
        %vm724 = vcmp.lt.s32.totalorder %v722, 32
        %vm725 = vcmp.lt.s32.totalorder %v723, 32
        %v726 = vld [vmem:[#allocation4] sm:$0xff]
        %v727 = vld [vmem:[#allocation4 + $0x8] sm:$0xff]
        %v728 = vld [vmem:[#allocation4 + $0x10] sm:$0xff]
        %v729 = vld [vmem:[#allocation4 + $0x18] sm:$0xff]
        %v730 = vld [vmem:[#allocation4 + $0x20] sm:$0xff]
        %v731 = vld [vmem:[#allocation4 + $0x28] sm:$0xff]
        %v732 = vld [vmem:[#allocation4 + $0x30] sm:$0xff]
        %v733 = vld [vmem:[#allocation4 + $0x38] sm:$0xff]
        %v734 = vld [vmem:[%s4] sm:$0x3]
        %v736 = vlaneseq
        %v737 = vshrl.u32 %v736, 7
        %v738 = vsub.s32 0, %v737
        %v739 = vrot.slane %v734, %v738
        %v740 = vlaneseq
        %v741 = vshrl.u32 %v740, 7
        %v742 = vsub.s32 1, %v741
        %v743 = vrot.slane %v734, %v742
        %v747 = vsel %vm591, %v683, 0
        %v750 = vsel %vm591, %v688, 0
        %v753 = vsel %vm591, %v693, 0
        %v756 = vsel %vm591, %v698, 0
        %v759 = vsel %vm591, %v703, 0
        %v762 = vsel %vm591, %v708, 0
        %v765 = vsel %vm591, %v713, 0
        %v768 = vsel %vm591, %v718, 0
        %770 = vmatprep.subr.mxu0 0.0
        %771 = vmatpush1.msra.mxu0 0.0
        %772 = vmatprep.subr.mxu0 0.0
        %773 = vmatpush1.msra.mxu0 0.0
        %774 = vmatprep.subr.mxu0 0.0
        %775 = vmatpush1.msra.mxu0 0.0
        %776 = vmatprep.subr.mxu0 0.0
        %777 = vmatpush1.msra.mxu0 0.0
        %778 = vmatprep.subr.mxu0 0.0
        %779 = vmatpush1.msra.mxu0 0.0
        %780 = vmatprep.subr.mxu0 0.0
        %781 = vmatpush1.msra.mxu0 0.0
        %782 = vmatprep.subr.mxu0 0.0
        %783 = vmatpush1.msra.mxu0 0.0
        %784 = vmatprep.subr.mxu0 0.0
        %785 = vmatpush1.msra.mxu0 0.0
        %786 = vmatprep.subr.mxu0 0.0
        %787 = vmatpush1.msra.mxu0 0.0
        %788 = vmatprep.subr.mxu0 0.0
        %789 = vmatpush1.msra.mxu0 0.0
        %790 = vmatprep.subr.mxu0 0.0
        %791 = vmatpush1.msra.mxu0 0.0
        %792 = vmatprep.subr.mxu0 0.0
        %793 = vmatpush1.msra.mxu0 0.0
        %794 = vmatprep.subr.mxu0 %v733
        %795 = vmatpush1.msra.mxu0 %v732
        %796 = vmatprep.subr.mxu0 %v731
        %797 = vmatpush1.msra.mxu0 %v730
        %798 = vmatprep.subr.mxu0 %v729
        %799 = vmatpush1.msra.mxu0 %v728
        %800 = vmatprep.subr.mxu0 %v727
        %801 = vmatpush1.msra.mxu0 %v726
        %802 = vmatprep.subr.mxu0 0.0
        %803 = vmatpush2.msra.mxu0 0.0
        %804 = vmatprep.subr.mxu0 0.0
        %805 = vmatpush2.msra.mxu0 0.0
        %806 = vmatprep.subr.mxu0 0.0
        %807 = vmatpush2.msra.mxu0 0.0
        %808 = vmatprep.subr.mxu0 0.0
        %809 = vmatpush2.msra.mxu0 0.0
        %810 = vmatprep.subr.mxu0 0.0
        %811 = vmatpush2.msra.mxu0 0.0
        %812 = vmatprep.subr.mxu0 0.0
        %813 = vmatpush2.msra.mxu0 0.0
        %814 = vmatprep.subr.mxu0 0.0
        %815 = vmatpush2.msra.mxu0 0.0
        %816 = vmatprep.subr.mxu0 0.0
        %817 = vmatpush2.msra.mxu0 0.0
        %818 = vmatprep.subr.mxu0 0.0
        %819 = vmatpush2.msra.mxu0 0.0
        %820 = vmatprep.subr.mxu0 0.0
        %821 = vmatpush2.msra.mxu0 0.0
        %822 = vmatprep.subr.mxu0 0.0
        %823 = vmatpush2.msra.mxu0 0.0
        %824 = vmatprep.subr.mxu0 0.0
        %825 = vmatpush2.msra.mxu0 0.0
        %826 = vmatprep.subr.mxu0 0.0
        %827 = vmatpush2.msra.mxu0 0.0
        %828 = vmatprep.subr.mxu0 0.0
        %829 = vmatpush2.msra.mxu0 0.0
        %830 = vmatprep.subr.mxu0 0.0
        %831 = vmatpush2.msra.mxu0 0.0
        %832 = vmatprep.subr.mxu0 0.0
        %833 = vmatpush2.msra.mxu0 0.0
        %834 = vmatprep.mubr.f32.mxu0 0.0
        %835 = vmatmul.mubr.f32.gmra.mxu0 %v747
        %v836 = vpop.f32.mrf.mxu0
        %v837 = vadd.f32 %v739, %v836
        %v838 = vpop.f32.mrf.mxu0
        %v839 = vadd.f32 %v743, %v838
        %840 = vmatprep.mubr.f32.mxu0 0.0
        %841 = vmatmul.mubr.f32.gmra.mxu0 %v750
        %v842 = vpop.f32.mrf.mxu0
        %v843 = vadd.f32 %v739, %v842
        %v844 = vpop.f32.mrf.mxu0
        %v845 = vadd.f32 %v743, %v844
        %846 = vmatprep.mubr.f32.mxu0 0.0
        %847 = vmatmul.mubr.f32.gmra.mxu0 %v753
        %v848 = vpop.f32.mrf.mxu0
        %v849 = vadd.f32 %v739, %v848
        %v850 = vpop.f32.mrf.mxu0
        %v851 = vadd.f32 %v743, %v850
        %852 = vmatprep.mubr.f32.mxu0 0.0
        %853 = vmatmul.mubr.f32.gmra.mxu0 %v756
        %v854 = vpop.f32.mrf.mxu0
        %v855 = vadd.f32 %v739, %v854
        %v856 = vpop.f32.mrf.mxu0
        %v857 = vadd.f32 %v743, %v856
        %858 = vmatprep.mubr.f32.mxu0 0.0
        %859 = vmatmul.mubr.f32.gmra.mxu0 %v759
        %v860 = vpop.f32.mrf.mxu0
        %v861 = vadd.f32 %v739, %v860
        %v862 = vpop.f32.mrf.mxu0
        %v863 = vadd.f32 %v743, %v862
        %864 = vmatprep.mubr.f32.mxu0 0.0
        %865 = vmatmul.mubr.f32.gmra.mxu0 %v762
        %v866 = vpop.f32.mrf.mxu0
        %v867 = vadd.f32 %v739, %v866
        %v868 = vpop.f32.mrf.mxu0
        %v869 = vadd.f32 %v743, %v868
        %870 = vmatprep.mubr.f32.mxu0 0.0
        %871 = vmatmul.mubr.f32.gmra.mxu0 %v765
        %v872 = vpop.f32.mrf.mxu0
        %v873 = vadd.f32 %v739, %v872
        %v874 = vpop.f32.mrf.mxu0
        %v875 = vadd.f32 %v743, %v874
        %876 = vmatprep.mubr.f32.mxu0 0.0
        %877 = vmatmul.mubr.f32.gmra.mxu0 %v768
        %v878 = vpop.f32.mrf.mxu0
        %v879 = vadd.f32 %v739, %v878
        %v880 = vpop.f32.mrf.mxu0
        %v881 = vadd.f32 %v743, %v880
        %882 = vdwg.mxu0
        %v883 = vsel %vm724, %v837, %v879
        %v884 = vsel %vm725, %v839, %v881
        %v885 = vsel %vm724, %v843, %v873
        %v886 = vsel %vm725, %v845, %v875
        %v887 = vsel %vm724, %v849, %v867
        %v888 = vsel %vm725, %v851, %v869
        %v889 = vsel %vm724, %v855, %v861
        %v890 = vsel %vm725, %v857, %v863
        %v891 = vsel %vm724, %v861, %v855
        %v892 = vsel %vm725, %v863, %v857
        %v893 = vsel %vm724, %v867, %v849
        %v894 = vsel %vm725, %v869, %v851
        %v895 = vsel %vm724, %v873, %v843
        %v896 = vsel %vm725, %v875, %v845
        %v897 = vsel %vm724, %v879, %v837
        %v898 = vsel %vm725, %v881, %v839
        %v899 = vld [vmem:[#allocation6] sm:$0xff]
        %v900 = vld [vmem:[#allocation6 + $0x8] sm:$0xff]
        %v901 = vld [vmem:[#allocation6 + $0x10] sm:$0xff]
        %v902 = vld [vmem:[#allocation6 + $0x18] sm:$0xff]
        %v903 = vld [vmem:[#allocation6 + $0x20] sm:$0xff]
        %v904 = vld [vmem:[#allocation6 + $0x28] sm:$0xff]
        %v905 = vld [vmem:[#allocation6 + $0x30] sm:$0xff]
        %v906 = vld [vmem:[#allocation6 + $0x38] sm:$0xff]
        %v907 = vld [vmem:[#allocation6 + $0x40] sm:$0xff]
        %v908 = vld [vmem:[#allocation6 + $0x48] sm:$0xff]
        %v909 = vld [vmem:[#allocation6 + $0x50] sm:$0xff]
        %v910 = vld [vmem:[#allocation6 + $0x58] sm:$0xff]
        %v911 = vld [vmem:[#allocation6 + $0x60] sm:$0xff]
        %v912 = vld [vmem:[#allocation6 + $0x68] sm:$0xff]
        %v913 = vld [vmem:[#allocation6 + $0x70] sm:$0xff]
        %v914 = vld [vmem:[#allocation6 + $0x78] sm:$0xff]
        %vm915 = vcmask 523264
        %v917 = vsel %vm915, 0.0, 0
        %919 = vmatprep.subr.mxu0 0.0
        %920 = vmatpush1.msra.mxu0 0.0
        %921 = vmatprep.subr.mxu0 0.0
        %922 = vmatpush1.msra.mxu0 0.0
        %923 = vmatprep.subr.mxu0 0.0
        %924 = vmatpush1.msra.mxu0 0.0
        %925 = vmatprep.subr.mxu0 0.0
        %926 = vmatpush1.msra.mxu0 0.0
        %927 = vmatprep.subr.mxu0 0.0
        %928 = vmatpush1.msra.mxu0 0.0
        %929 = vmatprep.subr.mxu0 0.0
        %930 = vmatpush1.msra.mxu0 0.0
        %931 = vmatprep.subr.mxu0 0.0
        %932 = vmatpush1.msra.mxu0 0.0
        %933 = vmatprep.subr.mxu0 0.0
        %934 = vmatpush1.msra.mxu0 0.0
        %935 = vmatprep.subr.mxu0 %v914
        %936 = vmatpush1.msra.mxu0 %v913
        %937 = vmatprep.subr.mxu0 %v912
        %938 = vmatpush1.msra.mxu0 %v911
        %939 = vmatprep.subr.mxu0 %v910
        %940 = vmatpush1.msra.mxu0 %v909
        %941 = vmatprep.subr.mxu0 %v908
        %942 = vmatpush1.msra.mxu0 %v907
        %943 = vmatprep.subr.mxu0 %v906
        %944 = vmatpush1.msra.mxu0 %v905
        %945 = vmatprep.subr.mxu0 %v904
        %946 = vmatpush1.msra.mxu0 %v903
        %947 = vmatprep.subr.mxu0 %v902
        %948 = vmatpush1.msra.mxu0 %v901
        %949 = vmatprep.subr.mxu0 %v900
        %950 = vmatpush1.msra.mxu0 %v899
        %951 = vmatprep.subr.mxu0 0.0
        %952 = vmatpush2.msra.mxu0 0.0
        %953 = vmatprep.subr.mxu0 0.0
        %954 = vmatpush2.msra.mxu0 0.0
        %955 = vmatprep.subr.mxu0 0.0
        %956 = vmatpush2.msra.mxu0 0.0
        %957 = vmatprep.subr.mxu0 0.0
        %958 = vmatpush2.msra.mxu0 0.0
        %959 = vmatprep.subr.mxu0 0.0
        %960 = vmatpush2.msra.mxu0 0.0
        %961 = vmatprep.subr.mxu0 0.0
        %962 = vmatpush2.msra.mxu0 0.0
        %963 = vmatprep.subr.mxu0 0.0
        %964 = vmatpush2.msra.mxu0 0.0
        %965 = vmatprep.subr.mxu0 0.0
        %966 = vmatpush2.msra.mxu0 0.0
        %967 = vmatprep.subr.mxu0 0.0
        %968 = vmatpush2.msra.mxu0 0.0
        %969 = vmatprep.subr.mxu0 0.0
        %970 = vmatpush2.msra.mxu0 0.0
        %971 = vmatprep.subr.mxu0 0.0
        %972 = vmatpush2.msra.mxu0 0.0
        %973 = vmatprep.subr.mxu0 0.0
        %974 = vmatpush2.msra.mxu0 0.0
        %975 = vmatprep.subr.mxu0 0.0
        %976 = vmatpush2.msra.mxu0 0.0
        %977 = vmatprep.subr.mxu0 0.0
        %978 = vmatpush2.msra.mxu0 0.0
        %979 = vmatprep.subr.mxu0 0.0
        %980 = vmatpush2.msra.mxu0 0.0
        %981 = vmatprep.subr.mxu0 0.0
        %982 = vmatpush2.msra.mxu0 0.0
        %983 = vmatprep.mubr.f32.mxu0 0.0
        %984 = vmatmul.mubr.f32.gmra.mxu0 %v917
        %v985 = vpop.f32.mrf.mxu0
        %v986 = vadd.f32 0.0, %v985
        %v987 = vpop.f32.mrf.mxu0
        %v988 = vadd.f32 0.0, %v987
        %989 = vdwg.mxu0
        %v990 = vadd.f32 %v883, %v986
        %v991 = vadd.f32 %v884, %v988
        %v992 = vxor.u32 %v990, 2147483648
        %v993 = vxor.u32 %v991, 2147483648
        %v994 = vmul.f32 %v992, 1.442695
        %v995 = vpow.pop %v994
        %v996 = vmul.f32 %v993, 1.442695
        %v997 = vpow.pop %v996
        %v998 = vadd.f32 %v995, 1.0
        %v999 = vadd.f32 %v997, 1.0
        %v1000 = vrcp.pop %v998
        %v1001 = vmul.f32 1.0, %v1000
        %v1002 = vrcp.pop %v999
        %v1003 = vmul.f32 1.0, %v1002
        %v1004 = vtanh.pop %v991
        %v1005 = vmul.f32 %v1001, 0.0
        %1007 = vrot.lane.b32.xlu0 %v1004, 64
        %v1008 = vpop.permute.xlu0 %1007
        %v1010 = vmul.f32 %v1001, %v1008
        %1012 = vrot.lane.b32.xlu0 %v1010, 64
        %v1013 = vpop.permute.xlu0 %1012
        %v1015 = vadd.f32 %v1005, %v1013
        %v1016 = vtanh.pop %v1015
        %1018 = vrot.lane.b32.xlu0 %v1016, 64
        %v1019 = vpop.permute.xlu0 %1018
        %v1021 = vmul.f32 %v1003, %v1019
        %v1023 = vsel %vm915, %v1021, 0
        %1025 = vmatprep.subr.mxu0 0.0
        %1026 = vmatpush1.msra.mxu0 0.0
        %1027 = vmatprep.subr.mxu0 0.0
        %1028 = vmatpush1.msra.mxu0 0.0
        %1029 = vmatprep.subr.mxu0 0.0
        %1030 = vmatpush1.msra.mxu0 0.0
        %1031 = vmatprep.subr.mxu0 0.0
        %1032 = vmatpush1.msra.mxu0 0.0
        %1033 = vmatprep.subr.mxu0 0.0
        %1034 = vmatpush1.msra.mxu0 0.0
        %1035 = vmatprep.subr.mxu0 0.0
        %1036 = vmatpush1.msra.mxu0 0.0
        %1037 = vmatprep.subr.mxu0 0.0
        %1038 = vmatpush1.msra.mxu0 0.0
        %1039 = vmatprep.subr.mxu0 0.0
        %1040 = vmatpush1.msra.mxu0 0.0
        %1041 = vmatprep.subr.mxu0 %v914
        %1042 = vmatpush1.msra.mxu0 %v913
        %1043 = vmatprep.subr.mxu0 %v912
        %1044 = vmatpush1.msra.mxu0 %v911
        %1045 = vmatprep.subr.mxu0 %v910
        %1046 = vmatpush1.msra.mxu0 %v909
        %1047 = vmatprep.subr.mxu0 %v908
        %1048 = vmatpush1.msra.mxu0 %v907
        %1049 = vmatprep.subr.mxu0 %v906
        %1050 = vmatpush1.msra.mxu0 %v905
        %1051 = vmatprep.subr.mxu0 %v904
        %1052 = vmatpush1.msra.mxu0 %v903
        %1053 = vmatprep.subr.mxu0 %v902
        %1054 = vmatpush1.msra.mxu0 %v901
        %1055 = vmatprep.subr.mxu0 %v900
        %1056 = vmatpush1.msra.mxu0 %v899
        %1057 = vmatprep.subr.mxu0 0.0
        %1058 = vmatpush2.msra.mxu0 0.0
        %1059 = vmatprep.subr.mxu0 0.0
        %1060 = vmatpush2.msra.mxu0 0.0
        %1061 = vmatprep.subr.mxu0 0.0
        %1062 = vmatpush2.msra.mxu0 0.0
        %1063 = vmatprep.subr.mxu0 0.0
        %1064 = vmatpush2.msra.mxu0 0.0
        %1065 = vmatprep.subr.mxu0 0.0
        %1066 = vmatpush2.msra.mxu0 0.0
        %1067 = vmatprep.subr.mxu0 0.0
        %1068 = vmatpush2.msra.mxu0 0.0
        %1069 = vmatprep.subr.mxu0 0.0
        %1070 = vmatpush2.msra.mxu0 0.0
        %1071 = vmatprep.subr.mxu0 0.0
        %1072 = vmatpush2.msra.mxu0 0.0
        %1073 = vmatprep.subr.mxu0 0.0
        %1074 = vmatpush2.msra.mxu0 0.0
        %1075 = vmatprep.subr.mxu0 0.0
        %1076 = vmatpush2.msra.mxu0 0.0
        %1077 = vmatprep.subr.mxu0 0.0
        %1078 = vmatpush2.msra.mxu0 0.0
        %1079 = vmatprep.subr.mxu0 0.0
        %1080 = vmatpush2.msra.mxu0 0.0
        %1081 = vmatprep.subr.mxu0 0.0
        %1082 = vmatpush2.msra.mxu0 0.0
        %1083 = vmatprep.subr.mxu0 0.0
        %1084 = vmatpush2.msra.mxu0 0.0
        %1085 = vmatprep.subr.mxu0 0.0
        %1086 = vmatpush2.msra.mxu0 0.0
        %1087 = vmatprep.subr.mxu0 0.0
        %1088 = vmatpush2.msra.mxu0 0.0
        %1089 = vmatprep.mubr.f32.mxu0 0.0
        %1090 = vmatmul.mubr.f32.gmra.mxu0 %v1023
        %v1091 = vpop.f32.mrf.mxu0
        %v1092 = vadd.f32 0.0, %v1091
        %v1093 = vpop.f32.mrf.mxu0
        %v1094 = vadd.f32 0.0, %v1093
        %1095 = vdwg.mxu0
        %v1096 = vadd.f32 %v885, %v1092
        %v1097 = vadd.f32 %v886, %v1094
        %v1098 = vxor.u32 %v1096, 2147483648
        %v1099 = vxor.u32 %v1097, 2147483648
        %v1100 = vmul.f32 %v1098, 1.442695
        %v1101 = vpow.pop %v1100
        %v1102 = vmul.f32 %v1099, 1.442695
        %v1103 = vpow.pop %v1102
        %v1104 = vadd.f32 %v1101, 1.0
        %v1105 = vadd.f32 %v1103, 1.0
        %v1106 = vrcp.pop %v1104
        %v1107 = vmul.f32 1.0, %v1106
        %v1108 = vrcp.pop %v1105
        %v1109 = vmul.f32 1.0, %v1108
        %v1110 = vtanh.pop %v1097
        %v1111 = vmul.f32 %v1107, %v1015
        %1113 = vrot.lane.b32.xlu0 %v1110, 64
        %v1114 = vpop.permute.xlu0 %1113
        %v1116 = vmul.f32 %v1107, %v1114
        %1118 = vrot.lane.b32.xlu0 %v1116, 64
        %v1119 = vpop.permute.xlu0 %1118
        %v1121 = vadd.f32 %v1111, %v1119
        %v1122 = vtanh.pop %v1121
        %1124 = vrot.lane.b32.xlu0 %v1122, 64
        %v1125 = vpop.permute.xlu0 %1124
        %v1127 = vmul.f32 %v1109, %v1125
        %v1129 = vsel %vm915, %v1127, 0
        %1131 = vmatprep.subr.mxu0 0.0
        %1132 = vmatpush1.msra.mxu0 0.0
        %1133 = vmatprep.subr.mxu0 0.0
        %1134 = vmatpush1.msra.mxu0 0.0
        %1135 = vmatprep.subr.mxu0 0.0
        %1136 = vmatpush1.msra.mxu0 0.0
        %1137 = vmatprep.subr.mxu0 0.0
        %1138 = vmatpush1.msra.mxu0 0.0
        %1139 = vmatprep.subr.mxu0 0.0
        %1140 = vmatpush1.msra.mxu0 0.0
        %1141 = vmatprep.subr.mxu0 0.0
        %1142 = vmatpush1.msra.mxu0 0.0
        %1143 = vmatprep.subr.mxu0 0.0
        %1144 = vmatpush1.msra.mxu0 0.0
        %1145 = vmatprep.subr.mxu0 0.0
        %1146 = vmatpush1.msra.mxu0 0.0
        %1147 = vmatprep.subr.mxu0 %v914
        %1148 = vmatpush1.msra.mxu0 %v913
        %1149 = vmatprep.subr.mxu0 %v912
        %1150 = vmatpush1.msra.mxu0 %v911
        %1151 = vmatprep.subr.mxu0 %v910
        %1152 = vmatpush1.msra.mxu0 %v909
        %1153 = vmatprep.subr.mxu0 %v908
        %1154 = vmatpush1.msra.mxu0 %v907
        %1155 = vmatprep.subr.mxu0 %v906
        %1156 = vmatpush1.msra.mxu0 %v905
        %1157 = vmatprep.subr.mxu0 %v904
        %1158 = vmatpush1.msra.mxu0 %v903
        %1159 = vmatprep.subr.mxu0 %v902
        %1160 = vmatpush1.msra.mxu0 %v901
        %1161 = vmatprep.subr.mxu0 %v900
        %1162 = vmatpush1.msra.mxu0 %v899
        %1163 = vmatprep.subr.mxu0 0.0
        %1164 = vmatpush2.msra.mxu0 0.0
        %1165 = vmatprep.subr.mxu0 0.0
        %1166 = vmatpush2.msra.mxu0 0.0
        %1167 = vmatprep.subr.mxu0 0.0
        %1168 = vmatpush2.msra.mxu0 0.0
        %1169 = vmatprep.subr.mxu0 0.0
        %1170 = vmatpush2.msra.mxu0 0.0
        %1171 = vmatprep.subr.mxu0 0.0
        %1172 = vmatpush2.msra.mxu0 0.0
        %1173 = vmatprep.subr.mxu0 0.0
        %1174 = vmatpush2.msra.mxu0 0.0
        %1175 = vmatprep.subr.mxu0 0.0
        %1176 = vmatpush2.msra.mxu0 0.0
        %1177 = vmatprep.subr.mxu0 0.0
        %1178 = vmatpush2.msra.mxu0 0.0
        %1179 = vmatprep.subr.mxu0 0.0
        %1180 = vmatpush2.msra.mxu0 0.0
        %1181 = vmatprep.subr.mxu0 0.0
        %1182 = vmatpush2.msra.mxu0 0.0
        %1183 = vmatprep.subr.mxu0 0.0
        %1184 = vmatpush2.msra.mxu0 0.0
        %1185 = vmatprep.subr.mxu0 0.0
        %1186 = vmatpush2.msra.mxu0 0.0
        %1187 = vmatprep.subr.mxu0 0.0
        %1188 = vmatpush2.msra.mxu0 0.0
        %1189 = vmatprep.subr.mxu0 0.0
        %1190 = vmatpush2.msra.mxu0 0.0
        %1191 = vmatprep.subr.mxu0 0.0
        %1192 = vmatpush2.msra.mxu0 0.0
        %1193 = vmatprep.subr.mxu0 0.0
        %1194 = vmatpush2.msra.mxu0 0.0
        %1195 = vmatprep.mubr.f32.mxu0 0.0
        %1196 = vmatmul.mubr.f32.gmra.mxu0 %v1129
        %v1197 = vpop.f32.mrf.mxu0
        %v1198 = vadd.f32 0.0, %v1197
        %v1199 = vpop.f32.mrf.mxu0
        %v1200 = vadd.f32 0.0, %v1199
        %1201 = vdwg.mxu0
        %v1202 = vadd.f32 %v887, %v1198
        %v1203 = vadd.f32 %v888, %v1200
        %v1204 = vxor.u32 %v1202, 2147483648
        %v1205 = vxor.u32 %v1203, 2147483648
        %v1206 = vmul.f32 %v1204, 1.442695
        %v1207 = vpow.pop %v1206
        %v1208 = vmul.f32 %v1205, 1.442695
        %v1209 = vpow.pop %v1208
        %v1210 = vadd.f32 %v1207, 1.0
        %v1211 = vadd.f32 %v1209, 1.0
        %v1212 = vrcp.pop %v1210
        %v1213 = vmul.f32 1.0, %v1212
        %v1214 = vrcp.pop %v1211
        %v1215 = vmul.f32 1.0, %v1214
        %v1216 = vtanh.pop %v1203
        %v1217 = vmul.f32 %v1213, %v1121
        %1219 = vrot.lane.b32.xlu0 %v1216, 64
        %v1220 = vpop.permute.xlu0 %1219
        %v1222 = vmul.f32 %v1213, %v1220
        %1224 = vrot.lane.b32.xlu0 %v1222, 64
        %v1225 = vpop.permute.xlu0 %1224
        %v1227 = vadd.f32 %v1217, %v1225
        %v1228 = vtanh.pop %v1227
        %1230 = vrot.lane.b32.xlu0 %v1228, 64
        %v1231 = vpop.permute.xlu0 %1230
        %v1233 = vmul.f32 %v1215, %v1231
        %v1235 = vsel %vm915, %v1233, 0
        %1237 = vmatprep.subr.mxu0 0.0
        %1238 = vmatpush1.msra.mxu0 0.0
        %1239 = vmatprep.subr.mxu0 0.0
        %1240 = vmatpush1.msra.mxu0 0.0
        %1241 = vmatprep.subr.mxu0 0.0
        %1242 = vmatpush1.msra.mxu0 0.0
        %1243 = vmatprep.subr.mxu0 0.0
        %1244 = vmatpush1.msra.mxu0 0.0
        %1245 = vmatprep.subr.mxu0 0.0
        %1246 = vmatpush1.msra.mxu0 0.0
        %1247 = vmatprep.subr.mxu0 0.0
        %1248 = vmatpush1.msra.mxu0 0.0
        %1249 = vmatprep.subr.mxu0 0.0
        %1250 = vmatpush1.msra.mxu0 0.0
        %1251 = vmatprep.subr.mxu0 0.0
        %1252 = vmatpush1.msra.mxu0 0.0
        %1253 = vmatprep.subr.mxu0 %v914
        %1254 = vmatpush1.msra.mxu0 %v913
        %1255 = vmatprep.subr.mxu0 %v912
        %1256 = vmatpush1.msra.mxu0 %v911
        %1257 = vmatprep.subr.mxu0 %v910
        %1258 = vmatpush1.msra.mxu0 %v909
        %1259 = vmatprep.subr.mxu0 %v908
        %1260 = vmatpush1.msra.mxu0 %v907
        %1261 = vmatprep.subr.mxu0 %v906
        %1262 = vmatpush1.msra.mxu0 %v905
        %1263 = vmatprep.subr.mxu0 %v904
        %1264 = vmatpush1.msra.mxu0 %v903
        %1265 = vmatprep.subr.mxu0 %v902
        %1266 = vmatpush1.msra.mxu0 %v901
        %1267 = vmatprep.subr.mxu0 %v900
        %1268 = vmatpush1.msra.mxu0 %v899
        %1269 = vmatprep.subr.mxu0 0.0
        %1270 = vmatpush2.msra.mxu0 0.0
        %1271 = vmatprep.subr.mxu0 0.0
        %1272 = vmatpush2.msra.mxu0 0.0
        %1273 = vmatprep.subr.mxu0 0.0
        %1274 = vmatpush2.msra.mxu0 0.0
        %1275 = vmatprep.subr.mxu0 0.0
        %1276 = vmatpush2.msra.mxu0 0.0
        %1277 = vmatprep.subr.mxu0 0.0
        %1278 = vmatpush2.msra.mxu0 0.0
        %1279 = vmatprep.subr.mxu0 0.0
        %1280 = vmatpush2.msra.mxu0 0.0
        %1281 = vmatprep.subr.mxu0 0.0
        %1282 = vmatpush2.msra.mxu0 0.0
        %1283 = vmatprep.subr.mxu0 0.0
        %1284 = vmatpush2.msra.mxu0 0.0
        %1285 = vmatprep.subr.mxu0 0.0
        %1286 = vmatpush2.msra.mxu0 0.0
        %1287 = vmatprep.subr.mxu0 0.0
        %1288 = vmatpush2.msra.mxu0 0.0
        %1289 = vmatprep.subr.mxu0 0.0
        %1290 = vmatpush2.msra.mxu0 0.0
        %1291 = vmatprep.subr.mxu0 0.0
        %1292 = vmatpush2.msra.mxu0 0.0
        %1293 = vmatprep.subr.mxu0 0.0
        %1294 = vmatpush2.msra.mxu0 0.0
        %1295 = vmatprep.subr.mxu0 0.0
        %1296 = vmatpush2.msra.mxu0 0.0
        %1297 = vmatprep.subr.mxu0 0.0
        %1298 = vmatpush2.msra.mxu0 0.0
        %1299 = vmatprep.subr.mxu0 0.0
        %1300 = vmatpush2.msra.mxu0 0.0
        %1301 = vmatprep.mubr.f32.mxu0 0.0
        %1302 = vmatmul.mubr.f32.gmra.mxu0 %v1235
        %v1303 = vpop.f32.mrf.mxu0
        %v1304 = vadd.f32 0.0, %v1303
        %v1305 = vpop.f32.mrf.mxu0
        %v1306 = vadd.f32 0.0, %v1305
        %1307 = vdwg.mxu0
        %v1308 = vadd.f32 %v889, %v1304
        %v1309 = vadd.f32 %v890, %v1306
        %v1310 = vxor.u32 %v1308, 2147483648
        %v1311 = vxor.u32 %v1309, 2147483648
        %v1312 = vmul.f32 %v1310, 1.442695
        %v1313 = vpow.pop %v1312
        %v1314 = vmul.f32 %v1311, 1.442695
        %v1315 = vpow.pop %v1314
        %v1316 = vadd.f32 %v1313, 1.0
        %v1317 = vadd.f32 %v1315, 1.0
        %v1318 = vrcp.pop %v1316
        %v1319 = vmul.f32 1.0, %v1318
        %v1320 = vrcp.pop %v1317
        %v1321 = vmul.f32 1.0, %v1320
        %v1322 = vtanh.pop %v1309
        %v1323 = vmul.f32 %v1319, %v1227
        %1325 = vrot.lane.b32.xlu0 %v1322, 64
        %v1326 = vpop.permute.xlu0 %1325
        %v1328 = vmul.f32 %v1319, %v1326
        %1330 = vrot.lane.b32.xlu0 %v1328, 64
        %v1331 = vpop.permute.xlu0 %1330
        %v1333 = vadd.f32 %v1323, %v1331
        %v1334 = vtanh.pop %v1333
        %1336 = vrot.lane.b32.xlu0 %v1334, 64
        %v1337 = vpop.permute.xlu0 %1336
        %v1339 = vmul.f32 %v1321, %v1337
        %v1341 = vsel %vm915, %v1339, 0
        %1343 = vmatprep.subr.mxu0 0.0
        %1344 = vmatpush1.msra.mxu0 0.0
        %1345 = vmatprep.subr.mxu0 0.0
        %1346 = vmatpush1.msra.mxu0 0.0
        %1347 = vmatprep.subr.mxu0 0.0
        %1348 = vmatpush1.msra.mxu0 0.0
        %1349 = vmatprep.subr.mxu0 0.0
        %1350 = vmatpush1.msra.mxu0 0.0
        %1351 = vmatprep.subr.mxu0 0.0
        %1352 = vmatpush1.msra.mxu0 0.0
        %1353 = vmatprep.subr.mxu0 0.0
        %1354 = vmatpush1.msra.mxu0 0.0
        %1355 = vmatprep.subr.mxu0 0.0
        %1356 = vmatpush1.msra.mxu0 0.0
        %1357 = vmatprep.subr.mxu0 0.0
        %1358 = vmatpush1.msra.mxu0 0.0
        %1359 = vmatprep.subr.mxu0 %v914
        %1360 = vmatpush1.msra.mxu0 %v913
        %1361 = vmatprep.subr.mxu0 %v912
        %1362 = vmatpush1.msra.mxu0 %v911
        %1363 = vmatprep.subr.mxu0 %v910
        %1364 = vmatpush1.msra.mxu0 %v909
        %1365 = vmatprep.subr.mxu0 %v908
        %1366 = vmatpush1.msra.mxu0 %v907
        %1367 = vmatprep.subr.mxu0 %v906
        %1368 = vmatpush1.msra.mxu0 %v905
        %1369 = vmatprep.subr.mxu0 %v904
        %1370 = vmatpush1.msra.mxu0 %v903
        %1371 = vmatprep.subr.mxu0 %v902
        %1372 = vmatpush1.msra.mxu0 %v901
        %1373 = vmatprep.subr.mxu0 %v900
        %1374 = vmatpush1.msra.mxu0 %v899
        %1375 = vmatprep.subr.mxu0 0.0
        %1376 = vmatpush2.msra.mxu0 0.0
        %1377 = vmatprep.subr.mxu0 0.0
        %1378 = vmatpush2.msra.mxu0 0.0
        %1379 = vmatprep.subr.mxu0 0.0
        %1380 = vmatpush2.msra.mxu0 0.0
        %1381 = vmatprep.subr.mxu0 0.0
        %1382 = vmatpush2.msra.mxu0 0.0
        %1383 = vmatprep.subr.mxu0 0.0
        %1384 = vmatpush2.msra.mxu0 0.0
        %1385 = vmatprep.subr.mxu0 0.0
        %1386 = vmatpush2.msra.mxu0 0.0
        %1387 = vmatprep.subr.mxu0 0.0
        %1388 = vmatpush2.msra.mxu0 0.0
        %1389 = vmatprep.subr.mxu0 0.0
        %1390 = vmatpush2.msra.mxu0 0.0
        %1391 = vmatprep.subr.mxu0 0.0
        %1392 = vmatpush2.msra.mxu0 0.0
        %1393 = vmatprep.subr.mxu0 0.0
        %1394 = vmatpush2.msra.mxu0 0.0
        %1395 = vmatprep.subr.mxu0 0.0
        %1396 = vmatpush2.msra.mxu0 0.0
        %1397 = vmatprep.subr.mxu0 0.0
        %1398 = vmatpush2.msra.mxu0 0.0
        %1399 = vmatprep.subr.mxu0 0.0
        %1400 = vmatpush2.msra.mxu0 0.0
        %1401 = vmatprep.subr.mxu0 0.0
        %1402 = vmatpush2.msra.mxu0 0.0
        %1403 = vmatprep.subr.mxu0 0.0
        %1404 = vmatpush2.msra.mxu0 0.0
        %1405 = vmatprep.subr.mxu0 0.0
        %1406 = vmatpush2.msra.mxu0 0.0
        %1407 = vmatprep.mubr.f32.mxu0 0.0
        %1408 = vmatmul.mubr.f32.gmra.mxu0 %v1341
        %v1409 = vpop.f32.mrf.mxu0
        %v1410 = vadd.f32 0.0, %v1409
        %v1411 = vpop.f32.mrf.mxu0
        %v1412 = vadd.f32 0.0, %v1411
        %1413 = vdwg.mxu0
        %v1414 = vadd.f32 %v891, %v1410
        %v1415 = vadd.f32 %v892, %v1412
        %v1416 = vxor.u32 %v1414, 2147483648
        %v1417 = vxor.u32 %v1415, 2147483648
        %v1418 = vmul.f32 %v1416, 1.442695
        %v1419 = vpow.pop %v1418
        %v1420 = vmul.f32 %v1417, 1.442695
        %v1421 = vpow.pop %v1420
        %v1422 = vadd.f32 %v1419, 1.0
        %v1423 = vadd.f32 %v1421, 1.0
        %v1424 = vrcp.pop %v1422
        %v1425 = vmul.f32 1.0, %v1424
        %v1426 = vrcp.pop %v1423
        %v1427 = vmul.f32 1.0, %v1426
        %v1428 = vtanh.pop %v1415
        %v1429 = vmul.f32 %v1425, %v1333
        %1431 = vrot.lane.b32.xlu0 %v1428, 64
        %v1432 = vpop.permute.xlu0 %1431
        %v1434 = vmul.f32 %v1425, %v1432
        %1436 = vrot.lane.b32.xlu0 %v1434, 64
        %v1437 = vpop.permute.xlu0 %1436
        %v1439 = vadd.f32 %v1429, %v1437
        %v1440 = vtanh.pop %v1439
        %1442 = vrot.lane.b32.xlu0 %v1440, 64
        %v1443 = vpop.permute.xlu0 %1442
        %v1445 = vmul.f32 %v1427, %v1443
        %v1447 = vsel %vm915, %v1445, 0
        %1449 = vmatprep.subr.mxu0 0.0
        %1450 = vmatpush1.msra.mxu0 0.0
        %1451 = vmatprep.subr.mxu0 0.0
        %1452 = vmatpush1.msra.mxu0 0.0
        %1453 = vmatprep.subr.mxu0 0.0
        %1454 = vmatpush1.msra.mxu0 0.0
        %1455 = vmatprep.subr.mxu0 0.0
        %1456 = vmatpush1.msra.mxu0 0.0
        %1457 = vmatprep.subr.mxu0 0.0
        %1458 = vmatpush1.msra.mxu0 0.0
        %1459 = vmatprep.subr.mxu0 0.0
        %1460 = vmatpush1.msra.mxu0 0.0
        %1461 = vmatprep.subr.mxu0 0.0
        %1462 = vmatpush1.msra.mxu0 0.0
        %1463 = vmatprep.subr.mxu0 0.0
        %1464 = vmatpush1.msra.mxu0 0.0
        %1465 = vmatprep.subr.mxu0 %v914
        %1466 = vmatpush1.msra.mxu0 %v913
        %1467 = vmatprep.subr.mxu0 %v912
        %1468 = vmatpush1.msra.mxu0 %v911
        %1469 = vmatprep.subr.mxu0 %v910
        %1470 = vmatpush1.msra.mxu0 %v909
        %1471 = vmatprep.subr.mxu0 %v908
        %1472 = vmatpush1.msra.mxu0 %v907
        %1473 = vmatprep.subr.mxu0 %v906
        %1474 = vmatpush1.msra.mxu0 %v905
        %1475 = vmatprep.subr.mxu0 %v904
        %1476 = vmatpush1.msra.mxu0 %v903
        %1477 = vmatprep.subr.mxu0 %v902
        %1478 = vmatpush1.msra.mxu0 %v901
        %1479 = vmatprep.subr.mxu0 %v900
        %1480 = vmatpush1.msra.mxu0 %v899
        %1481 = vmatprep.subr.mxu0 0.0
        %1482 = vmatpush2.msra.mxu0 0.0
        %1483 = vmatprep.subr.mxu0 0.0
        %1484 = vmatpush2.msra.mxu0 0.0
        %1485 = vmatprep.subr.mxu0 0.0
        %1486 = vmatpush2.msra.mxu0 0.0
        %1487 = vmatprep.subr.mxu0 0.0
        %1488 = vmatpush2.msra.mxu0 0.0
        %1489 = vmatprep.subr.mxu0 0.0
        %1490 = vmatpush2.msra.mxu0 0.0
        %1491 = vmatprep.subr.mxu0 0.0
        %1492 = vmatpush2.msra.mxu0 0.0
        %1493 = vmatprep.subr.mxu0 0.0
        %1494 = vmatpush2.msra.mxu0 0.0
        %1495 = vmatprep.subr.mxu0 0.0
        %1496 = vmatpush2.msra.mxu0 0.0
        %1497 = vmatprep.subr.mxu0 0.0
        %1498 = vmatpush2.msra.mxu0 0.0
        %1499 = vmatprep.subr.mxu0 0.0
        %1500 = vmatpush2.msra.mxu0 0.0
        %1501 = vmatprep.subr.mxu0 0.0
        %1502 = vmatpush2.msra.mxu0 0.0
        %1503 = vmatprep.subr.mxu0 0.0
        %1504 = vmatpush2.msra.mxu0 0.0
        %1505 = vmatprep.subr.mxu0 0.0
        %1506 = vmatpush2.msra.mxu0 0.0
        %1507 = vmatprep.subr.mxu0 0.0
        %1508 = vmatpush2.msra.mxu0 0.0
        %1509 = vmatprep.subr.mxu0 0.0
        %1510 = vmatpush2.msra.mxu0 0.0
        %1511 = vmatprep.subr.mxu0 0.0
        %1512 = vmatpush2.msra.mxu0 0.0
        %1513 = vmatprep.mubr.f32.mxu0 0.0
        %1514 = vmatmul.mubr.f32.gmra.mxu0 %v1447
        %v1515 = vpop.f32.mrf.mxu0
        %v1516 = vadd.f32 0.0, %v1515
        %v1517 = vpop.f32.mrf.mxu0
        %v1518 = vadd.f32 0.0, %v1517
        %1519 = vdwg.mxu0
        %v1520 = vadd.f32 %v893, %v1516
        %v1521 = vadd.f32 %v894, %v1518
        %v1522 = vxor.u32 %v1520, 2147483648
        %v1523 = vxor.u32 %v1521, 2147483648
        %v1524 = vmul.f32 %v1522, 1.442695
        %v1525 = vpow.pop %v1524
        %v1526 = vmul.f32 %v1523, 1.442695
        %v1527 = vpow.pop %v1526
        %v1528 = vadd.f32 %v1525, 1.0
        %v1529 = vadd.f32 %v1527, 1.0
        %v1530 = vrcp.pop %v1528
        %v1531 = vmul.f32 1.0, %v1530
        %v1532 = vrcp.pop %v1529
        %v1533 = vmul.f32 1.0, %v1532
        %v1534 = vtanh.pop %v1521
        %v1535 = vmul.f32 %v1531, %v1439
        %1537 = vrot.lane.b32.xlu0 %v1534, 64
        %v1538 = vpop.permute.xlu0 %1537
        %v1540 = vmul.f32 %v1531, %v1538
        %1542 = vrot.lane.b32.xlu0 %v1540, 64
        %v1543 = vpop.permute.xlu0 %1542
        %v1545 = vadd.f32 %v1535, %v1543
        %v1546 = vtanh.pop %v1545
        %1548 = vrot.lane.b32.xlu0 %v1546, 64
        %v1549 = vpop.permute.xlu0 %1548
        %v1551 = vmul.f32 %v1533, %v1549
        %v1553 = vsel %vm915, %v1551, 0
        %1555 = vmatprep.subr.mxu0 0.0
        %1556 = vmatpush1.msra.mxu0 0.0
        %1557 = vmatprep.subr.mxu0 0.0
        %1558 = vmatpush1.msra.mxu0 0.0
        %1559 = vmatprep.subr.mxu0 0.0
        %1560 = vmatpush1.msra.mxu0 0.0
        %1561 = vmatprep.subr.mxu0 0.0
        %1562 = vmatpush1.msra.mxu0 0.0
        %1563 = vmatprep.subr.mxu0 0.0
        %1564 = vmatpush1.msra.mxu0 0.0
        %1565 = vmatprep.subr.mxu0 0.0
        %1566 = vmatpush1.msra.mxu0 0.0
        %1567 = vmatprep.subr.mxu0 0.0
        %1568 = vmatpush1.msra.mxu0 0.0
        %1569 = vmatprep.subr.mxu0 0.0
        %1570 = vmatpush1.msra.mxu0 0.0
        %1571 = vmatprep.subr.mxu0 %v914
        %1572 = vmatpush1.msra.mxu0 %v913
        %1573 = vmatprep.subr.mxu0 %v912
        %1574 = vmatpush1.msra.mxu0 %v911
        %1575 = vmatprep.subr.mxu0 %v910
        %1576 = vmatpush1.msra.mxu0 %v909
        %1577 = vmatprep.subr.mxu0 %v908
        %1578 = vmatpush1.msra.mxu0 %v907
        %1579 = vmatprep.subr.mxu0 %v906
        %1580 = vmatpush1.msra.mxu0 %v905
        %1581 = vmatprep.subr.mxu0 %v904
        %1582 = vmatpush1.msra.mxu0 %v903
        %1583 = vmatprep.subr.mxu0 %v902
        %1584 = vmatpush1.msra.mxu0 %v901
        %1585 = vmatprep.subr.mxu0 %v900
        %1586 = vmatpush1.msra.mxu0 %v899
        %1587 = vmatprep.subr.mxu0 0.0
        %1588 = vmatpush2.msra.mxu0 0.0
        %1589 = vmatprep.subr.mxu0 0.0
        %1590 = vmatpush2.msra.mxu0 0.0
        %1591 = vmatprep.subr.mxu0 0.0
        %1592 = vmatpush2.msra.mxu0 0.0
        %1593 = vmatprep.subr.mxu0 0.0
        %1594 = vmatpush2.msra.mxu0 0.0
        %1595 = vmatprep.subr.mxu0 0.0
        %1596 = vmatpush2.msra.mxu0 0.0
        %1597 = vmatprep.subr.mxu0 0.0
        %1598 = vmatpush2.msra.mxu0 0.0
        %1599 = vmatprep.subr.mxu0 0.0
        %1600 = vmatpush2.msra.mxu0 0.0
        %1601 = vmatprep.subr.mxu0 0.0
        %1602 = vmatpush2.msra.mxu0 0.0
        %1603 = vmatprep.subr.mxu0 0.0
        %1604 = vmatpush2.msra.mxu0 0.0
        %1605 = vmatprep.subr.mxu0 0.0
        %1606 = vmatpush2.msra.mxu0 0.0
        %1607 = vmatprep.subr.mxu0 0.0
        %1608 = vmatpush2.msra.mxu0 0.0
        %1609 = vmatprep.subr.mxu0 0.0
        %1610 = vmatpush2.msra.mxu0 0.0
        %1611 = vmatprep.subr.mxu0 0.0
        %1612 = vmatpush2.msra.mxu0 0.0
        %1613 = vmatprep.subr.mxu0 0.0
        %1614 = vmatpush2.msra.mxu0 0.0
        %1615 = vmatprep.subr.mxu0 0.0
        %1616 = vmatpush2.msra.mxu0 0.0
        %1617 = vmatprep.subr.mxu0 0.0
        %1618 = vmatpush2.msra.mxu0 0.0
        %1619 = vmatprep.mubr.f32.mxu0 0.0
        %1620 = vmatmul.mubr.f32.gmra.mxu0 %v1553
        %v1621 = vpop.f32.mrf.mxu0
        %v1622 = vadd.f32 0.0, %v1621
        %v1623 = vpop.f32.mrf.mxu0
        %v1624 = vadd.f32 0.0, %v1623
        %1625 = vdwg.mxu0
        %v1626 = vadd.f32 %v895, %v1622
        %v1627 = vadd.f32 %v896, %v1624
        %v1628 = vxor.u32 %v1626, 2147483648
        %v1629 = vxor.u32 %v1627, 2147483648
        %v1630 = vmul.f32 %v1628, 1.442695
        %v1631 = vpow.pop %v1630
        %v1632 = vmul.f32 %v1629, 1.442695
        %v1633 = vpow.pop %v1632
        %v1634 = vadd.f32 %v1631, 1.0
        %v1635 = vadd.f32 %v1633, 1.0
        %v1636 = vrcp.pop %v1634
        %v1637 = vmul.f32 1.0, %v1636
        %v1638 = vrcp.pop %v1635
        %v1639 = vmul.f32 1.0, %v1638
        %v1640 = vtanh.pop %v1627
        %v1641 = vmul.f32 %v1637, %v1545
        %1643 = vrot.lane.b32.xlu0 %v1640, 64
        %v1644 = vpop.permute.xlu0 %1643
        %v1646 = vmul.f32 %v1637, %v1644
        %1648 = vrot.lane.b32.xlu0 %v1646, 64
        %v1649 = vpop.permute.xlu0 %1648
        %v1651 = vadd.f32 %v1641, %v1649
        %v1652 = vtanh.pop %v1651
        %1654 = vrot.lane.b32.xlu0 %v1652, 64
        %v1655 = vpop.permute.xlu0 %1654
        %v1657 = vmul.f32 %v1639, %v1655
        %v1659 = vsel %vm915, %v1657, 0
        %1661 = vmatprep.subr.mxu0 0.0
        %1662 = vmatpush1.msra.mxu0 0.0
        %1663 = vmatprep.subr.mxu0 0.0
        %1664 = vmatpush1.msra.mxu0 0.0
        %1665 = vmatprep.subr.mxu0 0.0
        %1666 = vmatpush1.msra.mxu0 0.0
        %1667 = vmatprep.subr.mxu0 0.0
        %1668 = vmatpush1.msra.mxu0 0.0
        %1669 = vmatprep.subr.mxu0 0.0
        %1670 = vmatpush1.msra.mxu0 0.0
        %1671 = vmatprep.subr.mxu0 0.0
        %1672 = vmatpush1.msra.mxu0 0.0
        %1673 = vmatprep.subr.mxu0 0.0
        %1674 = vmatpush1.msra.mxu0 0.0
        %1675 = vmatprep.subr.mxu0 0.0
        %1676 = vmatpush1.msra.mxu0 0.0
        %1677 = vmatprep.subr.mxu0 %v914
        %1678 = vmatpush1.msra.mxu0 %v913
        %1679 = vmatprep.subr.mxu0 %v912
        %1680 = vmatpush1.msra.mxu0 %v911
        %1681 = vmatprep.subr.mxu0 %v910
        %1682 = vmatpush1.msra.mxu0 %v909
        %1683 = vmatprep.subr.mxu0 %v908
        %1684 = vmatpush1.msra.mxu0 %v907
        %1685 = vmatprep.subr.mxu0 %v906
        %1686 = vmatpush1.msra.mxu0 %v905
        %1687 = vmatprep.subr.mxu0 %v904
        %1688 = vmatpush1.msra.mxu0 %v903
        %1689 = vmatprep.subr.mxu0 %v902
        %1690 = vmatpush1.msra.mxu0 %v901
        %1691 = vmatprep.subr.mxu0 %v900
        %1692 = vmatpush1.msra.mxu0 %v899
        %1693 = vmatprep.subr.mxu0 0.0
        %1694 = vmatpush2.msra.mxu0 0.0
        %1695 = vmatprep.subr.mxu0 0.0
        %1696 = vmatpush2.msra.mxu0 0.0
        %1697 = vmatprep.subr.mxu0 0.0
        %1698 = vmatpush2.msra.mxu0 0.0
        %1699 = vmatprep.subr.mxu0 0.0
        %1700 = vmatpush2.msra.mxu0 0.0
        %1701 = vmatprep.subr.mxu0 0.0
        %1702 = vmatpush2.msra.mxu0 0.0
        %1703 = vmatprep.subr.mxu0 0.0
        %1704 = vmatpush2.msra.mxu0 0.0
        %1705 = vmatprep.subr.mxu0 0.0
        %1706 = vmatpush2.msra.mxu0 0.0
        %1707 = vmatprep.subr.mxu0 0.0
        %1708 = vmatpush2.msra.mxu0 0.0
        %1709 = vmatprep.subr.mxu0 0.0
        %1710 = vmatpush2.msra.mxu0 0.0
        %1711 = vmatprep.subr.mxu0 0.0
        %1712 = vmatpush2.msra.mxu0 0.0
        %1713 = vmatprep.subr.mxu0 0.0
        %1714 = vmatpush2.msra.mxu0 0.0
        %1715 = vmatprep.subr.mxu0 0.0
        %1716 = vmatpush2.msra.mxu0 0.0
        %1717 = vmatprep.subr.mxu0 0.0
        %1718 = vmatpush2.msra.mxu0 0.0
        %1719 = vmatprep.subr.mxu0 0.0
        %1720 = vmatpush2.msra.mxu0 0.0
        %1721 = vmatprep.subr.mxu0 0.0
        %1722 = vmatpush2.msra.mxu0 0.0
        %1723 = vmatprep.subr.mxu0 0.0
        %1724 = vmatpush2.msra.mxu0 0.0
        %1725 = vmatprep.mubr.f32.mxu0 0.0
        %1726 = vmatmul.mubr.f32.gmra.mxu0 %v1659
        %v1727 = vpop.f32.mrf.mxu0
        %v1728 = vadd.f32 0.0, %v1727
        %v1729 = vpop.f32.mrf.mxu0
        %v1730 = vadd.f32 0.0, %v1729
        %1731 = vdwg.mxu0
        %v1732 = vadd.f32 %v897, %v1728
        %v1733 = vadd.f32 %v898, %v1730
        %v1734 = vxor.u32 %v1732, 2147483648
        %v1735 = vxor.u32 %v1733, 2147483648
        %v1736 = vmul.f32 %v1734, 1.442695
        %v1737 = vpow.pop %v1736
        %v1738 = vmul.f32 %v1735, 1.442695
        %v1739 = vpow.pop %v1738
        %v1740 = vadd.f32 %v1737, 1.0
        %v1741 = vadd.f32 %v1739, 1.0
        %v1742 = vrcp.pop %v1740
        %v1743 = vmul.f32 1.0, %v1742
        %v1744 = vrcp.pop %v1741
        %v1745 = vmul.f32 1.0, %v1744
        %v1746 = vtanh.pop %v1733
        %v1747 = vmul.f32 %v1743, %v1651
        %1749 = vrot.lane.b32.xlu0 %v1746, 64
        %v1750 = vpop.permute.xlu0 %1749
        %v1752 = vmul.f32 %v1743, %v1750
        %1754 = vrot.lane.b32.xlu0 %v1752, 64
        %v1755 = vpop.permute.xlu0 %1754
        %v1757 = vadd.f32 %v1747, %v1755
        %v1758 = vtanh.pop %v1757
        %1760 = vrot.lane.b32.xlu0 %v1758, 64
        %v1761 = vpop.permute.xlu0 %1760
        %v1763 = vmul.f32 %v1745, %v1761
        %v1764 = vsel %vm591, %v1021, %v1763
        %v1765 = vsel %vm591, %v1127, %v1657
        %v1766 = vsel %vm591, %v1233, %v1551
        %v1767 = vsel %vm591, %v1339, %v1445
        %v1768 = vsel %vm591, %v1445, %v1339
        %v1769 = vsel %vm591, %v1551, %v1233
        %v1770 = vsel %vm591, %v1657, %v1127
        %v1771 = vsel %vm591, %v1763, %v1021
        %v1772 = vld [vmem:[#allocation7] sm:$0xff]
        %v1773 = vld [vmem:[#allocation7 + $0x8] sm:$0xff]
        %v1774 = vld [vmem:[#allocation7 + $0x10] sm:$0xff]
        %v1775 = vld [vmem:[#allocation7 + $0x18] sm:$0xff]
        %v1776 = vld [vmem:[#allocation7 + $0x20] sm:$0xff]
        %v1777 = vld [vmem:[#allocation7 + $0x28] sm:$0xff]
        %v1778 = vld [vmem:[#allocation7 + $0x30] sm:$0xff]
        %v1779 = vld [vmem:[#allocation7 + $0x38] sm:$0xff]
        %v1780 = vld [vmem:[#allocation7 + $0x40] sm:$0xff]
        %v1781 = vld [vmem:[#allocation7 + $0x48] sm:$0xff]
        %v1782 = vld [vmem:[#allocation7 + $0x50] sm:$0xff]
        %v1783 = vld [vmem:[#allocation7 + $0x58] sm:$0xff]
        %v1784 = vld [vmem:[#allocation7 + $0x60] sm:$0xff]
        %v1785 = vld [vmem:[#allocation7 + $0x68] sm:$0xff]
        %v1786 = vld [vmem:[#allocation7 + $0x70] sm:$0xff]
        %v1787 = vld [vmem:[#allocation7 + $0x78] sm:$0xff]
        %v1788 = vld [vmem:[%s7] sm:$0x3]
        %v1790 = vlaneseq
        %v1791 = vshrl.u32 %v1790, 7
        %v1792 = vsub.s32 0, %v1791
        %v1793 = vrot.slane %v1788, %v1792
        %v1794 = vlaneseq
        %v1795 = vshrl.u32 %v1794, 7
        %v1796 = vsub.s32 1, %v1795
        %v1797 = vrot.slane %v1788, %v1796
        %v1801 = vsel %vm915, %v1764, 0
        %v1804 = vsel %vm915, %v1765, 0
        %v1807 = vsel %vm915, %v1766, 0
        %v1810 = vsel %vm915, %v1767, 0
        %v1813 = vsel %vm915, %v1768, 0
        %v1816 = vsel %vm915, %v1769, 0
        %v1819 = vsel %vm915, %v1770, 0
        %v1822 = vsel %vm915, %v1771, 0
        %1824 = vmatprep.subr.mxu0 0.0
        %1825 = vmatpush1.msra.mxu0 0.0
        %1826 = vmatprep.subr.mxu0 0.0
        %1827 = vmatpush1.msra.mxu0 0.0
        %1828 = vmatprep.subr.mxu0 0.0
        %1829 = vmatpush1.msra.mxu0 0.0
        %1830 = vmatprep.subr.mxu0 0.0
        %1831 = vmatpush1.msra.mxu0 0.0
        %1832 = vmatprep.subr.mxu0 0.0
        %1833 = vmatpush1.msra.mxu0 0.0
        %1834 = vmatprep.subr.mxu0 0.0
        %1835 = vmatpush1.msra.mxu0 0.0
        %1836 = vmatprep.subr.mxu0 0.0
        %1837 = vmatpush1.msra.mxu0 0.0
        %1838 = vmatprep.subr.mxu0 0.0
        %1839 = vmatpush1.msra.mxu0 0.0
        %1840 = vmatprep.subr.mxu0 %v1787
        %1841 = vmatpush1.msra.mxu0 %v1786
        %1842 = vmatprep.subr.mxu0 %v1785
        %1843 = vmatpush1.msra.mxu0 %v1784
        %1844 = vmatprep.subr.mxu0 %v1783
        %1845 = vmatpush1.msra.mxu0 %v1782
        %1846 = vmatprep.subr.mxu0 %v1781
        %1847 = vmatpush1.msra.mxu0 %v1780
        %1848 = vmatprep.subr.mxu0 %v1779
        %1849 = vmatpush1.msra.mxu0 %v1778
        %1850 = vmatprep.subr.mxu0 %v1777
        %1851 = vmatpush1.msra.mxu0 %v1776
        %1852 = vmatprep.subr.mxu0 %v1775
        %1853 = vmatpush1.msra.mxu0 %v1774
        %1854 = vmatprep.subr.mxu0 %v1773
        %1855 = vmatpush1.msra.mxu0 %v1772
        %1856 = vmatprep.subr.mxu0 0.0
        %1857 = vmatpush2.msra.mxu0 0.0
        %1858 = vmatprep.subr.mxu0 0.0
        %1859 = vmatpush2.msra.mxu0 0.0
        %1860 = vmatprep.subr.mxu0 0.0
        %1861 = vmatpush2.msra.mxu0 0.0
        %1862 = vmatprep.subr.mxu0 0.0
        %1863 = vmatpush2.msra.mxu0 0.0
        %1864 = vmatprep.subr.mxu0 0.0
        %1865 = vmatpush2.msra.mxu0 0.0
        %1866 = vmatprep.subr.mxu0 0.0
        %1867 = vmatpush2.msra.mxu0 0.0
        %1868 = vmatprep.subr.mxu0 0.0
        %1869 = vmatpush2.msra.mxu0 0.0
        %1870 = vmatprep.subr.mxu0 0.0
        %1871 = vmatpush2.msra.mxu0 0.0
        %1872 = vmatprep.subr.mxu0 0.0
        %1873 = vmatpush2.msra.mxu0 0.0
        %1874 = vmatprep.subr.mxu0 0.0
        %1875 = vmatpush2.msra.mxu0 0.0
        %1876 = vmatprep.subr.mxu0 0.0
        %1877 = vmatpush2.msra.mxu0 0.0
        %1878 = vmatprep.subr.mxu0 0.0
        %1879 = vmatpush2.msra.mxu0 0.0
        %1880 = vmatprep.subr.mxu0 0.0
        %1881 = vmatpush2.msra.mxu0 0.0
        %1882 = vmatprep.subr.mxu0 0.0
        %1883 = vmatpush2.msra.mxu0 0.0
        %1884 = vmatprep.subr.mxu0 0.0
        %1885 = vmatpush2.msra.mxu0 0.0
        %1886 = vmatprep.subr.mxu0 0.0
        %1887 = vmatpush2.msra.mxu0 0.0
        %1888 = vmatprep.mubr.f32.mxu0 0.0
        %1889 = vmatmul.mubr.f32.gmra.mxu0 %v1801
        %v1890 = vpop.f32.mrf.mxu0
        %v1891 = vadd.f32 %v1793, %v1890
        %v1892 = vpop.f32.mrf.mxu0
        %v1893 = vadd.f32 %v1797, %v1892
        %1894 = vmatprep.mubr.f32.mxu0 0.0
        %1895 = vmatmul.mubr.f32.gmra.mxu0 %v1804
        %v1896 = vpop.f32.mrf.mxu0
        %v1897 = vadd.f32 %v1793, %v1896
        %v1898 = vpop.f32.mrf.mxu0
        %v1899 = vadd.f32 %v1797, %v1898
        %1900 = vmatprep.mubr.f32.mxu0 0.0
        %1901 = vmatmul.mubr.f32.gmra.mxu0 %v1807
        %v1902 = vpop.f32.mrf.mxu0
        %v1903 = vadd.f32 %v1793, %v1902
        %v1904 = vpop.f32.mrf.mxu0
        %v1905 = vadd.f32 %v1797, %v1904
        %1906 = vmatprep.mubr.f32.mxu0 0.0
        %1907 = vmatmul.mubr.f32.gmra.mxu0 %v1810
        %v1908 = vpop.f32.mrf.mxu0
        %v1909 = vadd.f32 %v1793, %v1908
        %v1910 = vpop.f32.mrf.mxu0
        %v1911 = vadd.f32 %v1797, %v1910
        %1912 = vmatprep.mubr.f32.mxu0 0.0
        %1913 = vmatmul.mubr.f32.gmra.mxu0 %v1813
        %v1914 = vpop.f32.mrf.mxu0
        %v1915 = vadd.f32 %v1793, %v1914
        %v1916 = vpop.f32.mrf.mxu0
        %v1917 = vadd.f32 %v1797, %v1916
        %1918 = vmatprep.mubr.f32.mxu0 0.0
        %1919 = vmatmul.mubr.f32.gmra.mxu0 %v1816
        %v1920 = vpop.f32.mrf.mxu0
        %v1921 = vadd.f32 %v1793, %v1920
        %v1922 = vpop.f32.mrf.mxu0
        %v1923 = vadd.f32 %v1797, %v1922
        %1924 = vmatprep.mubr.f32.mxu0 0.0
        %1925 = vmatmul.mubr.f32.gmra.mxu0 %v1819
        %v1926 = vpop.f32.mrf.mxu0
        %v1927 = vadd.f32 %v1793, %v1926
        %v1928 = vpop.f32.mrf.mxu0
        %v1929 = vadd.f32 %v1797, %v1928
        %1930 = vmatprep.mubr.f32.mxu0 0.0
        %1931 = vmatmul.mubr.f32.gmra.mxu0 %v1822
        %v1932 = vpop.f32.mrf.mxu0
        %v1933 = vadd.f32 %v1793, %v1932
        %v1934 = vpop.f32.mrf.mxu0
        %v1935 = vadd.f32 %v1797, %v1934
        %1936 = vdwg.mxu0
        %v1937 = vsel %vm724, %v1891, %v1933
        %v1938 = vsel %vm725, %v1893, %v1935
        %v1939 = vsel %vm724, %v1897, %v1927
        %v1940 = vsel %vm725, %v1899, %v1929
        %v1941 = vsel %vm724, %v1903, %v1921
        %v1942 = vsel %vm725, %v1905, %v1923
        %v1943 = vsel %vm724, %v1909, %v1915
        %v1944 = vsel %vm725, %v1911, %v1917
        %v1945 = vsel %vm724, %v1915, %v1909
        %v1946 = vsel %vm725, %v1917, %v1911
        %v1947 = vsel %vm724, %v1921, %v1903
        %v1948 = vsel %vm725, %v1923, %v1905
        %v1949 = vsel %vm724, %v1927, %v1897
        %v1950 = vsel %vm725, %v1929, %v1899
        %v1951 = vsel %vm724, %v1933, %v1891
        %v1952 = vsel %vm725, %v1935, %v1893
        %v1953 = vld [vmem:[#allocation9] sm:$0xff]
        %v1954 = vld [vmem:[#allocation9 + $0x8] sm:$0xff]
        %v1955 = vld [vmem:[#allocation9 + $0x10] sm:$0xff]
        %v1956 = vld [vmem:[#allocation9 + $0x18] sm:$0xff]
        %v1957 = vld [vmem:[#allocation9 + $0x20] sm:$0xff]
        %v1958 = vld [vmem:[#allocation9 + $0x28] sm:$0xff]
        %v1959 = vld [vmem:[#allocation9 + $0x30] sm:$0xff]
        %v1960 = vld [vmem:[#allocation9 + $0x38] sm:$0xff]
        %v1961 = vld [vmem:[#allocation9 + $0x40] sm:$0xff]
        %v1962 = vld [vmem:[#allocation9 + $0x48] sm:$0xff]
        %v1963 = vld [vmem:[#allocation9 + $0x50] sm:$0xff]
        %v1964 = vld [vmem:[#allocation9 + $0x58] sm:$0xff]
        %v1965 = vld [vmem:[#allocation9 + $0x60] sm:$0xff]
        %v1966 = vld [vmem:[#allocation9 + $0x68] sm:$0xff]
        %v1967 = vld [vmem:[#allocation9 + $0x70] sm:$0xff]
        %v1968 = vld [vmem:[#allocation9 + $0x78] sm:$0xff]
        %1969 = vmatprep.subr.mxu0 0.0
        %1970 = vmatpush1.msra.mxu0 0.0
        %1971 = vmatprep.subr.mxu0 0.0
        %1972 = vmatpush1.msra.mxu0 0.0
        %1973 = vmatprep.subr.mxu0 0.0
        %1974 = vmatpush1.msra.mxu0 0.0
        %1975 = vmatprep.subr.mxu0 0.0
        %1976 = vmatpush1.msra.mxu0 0.0
        %1977 = vmatprep.subr.mxu0 0.0
        %1978 = vmatpush1.msra.mxu0 0.0
        %1979 = vmatprep.subr.mxu0 0.0
        %1980 = vmatpush1.msra.mxu0 0.0
        %1981 = vmatprep.subr.mxu0 0.0
        %1982 = vmatpush1.msra.mxu0 0.0
        %1983 = vmatprep.subr.mxu0 0.0
        %1984 = vmatpush1.msra.mxu0 0.0
        %1985 = vmatprep.subr.mxu0 %v1968
        %1986 = vmatpush1.msra.mxu0 %v1967
        %1987 = vmatprep.subr.mxu0 %v1966
        %1988 = vmatpush1.msra.mxu0 %v1965
        %1989 = vmatprep.subr.mxu0 %v1964
        %1990 = vmatpush1.msra.mxu0 %v1963
        %1991 = vmatprep.subr.mxu0 %v1962
        %1992 = vmatpush1.msra.mxu0 %v1961
        %1993 = vmatprep.subr.mxu0 %v1960
        %1994 = vmatpush1.msra.mxu0 %v1959
        %1995 = vmatprep.subr.mxu0 %v1958
        %1996 = vmatpush1.msra.mxu0 %v1957
        %1997 = vmatprep.subr.mxu0 %v1956
        %1998 = vmatpush1.msra.mxu0 %v1955
        %1999 = vmatprep.subr.mxu0 %v1954
        %2000 = vmatpush1.msra.mxu0 %v1953
        %2001 = vmatprep.subr.mxu0 0.0
        %2002 = vmatpush2.msra.mxu0 0.0
        %2003 = vmatprep.subr.mxu0 0.0
        %2004 = vmatpush2.msra.mxu0 0.0
        %2005 = vmatprep.subr.mxu0 0.0
        %2006 = vmatpush2.msra.mxu0 0.0
        %2007 = vmatprep.subr.mxu0 0.0
        %2008 = vmatpush2.msra.mxu0 0.0
        %2009 = vmatprep.subr.mxu0 0.0
        %2010 = vmatpush2.msra.mxu0 0.0
        %2011 = vmatprep.subr.mxu0 0.0
        %2012 = vmatpush2.msra.mxu0 0.0
        %2013 = vmatprep.subr.mxu0 0.0
        %2014 = vmatpush2.msra.mxu0 0.0
        %2015 = vmatprep.subr.mxu0 0.0
        %2016 = vmatpush2.msra.mxu0 0.0
        %2017 = vmatprep.subr.mxu0 0.0
        %2018 = vmatpush2.msra.mxu0 0.0
        %2019 = vmatprep.subr.mxu0 0.0
        %2020 = vmatpush2.msra.mxu0 0.0
        %2021 = vmatprep.subr.mxu0 0.0
        %2022 = vmatpush2.msra.mxu0 0.0
        %2023 = vmatprep.subr.mxu0 0.0
        %2024 = vmatpush2.msra.mxu0 0.0
        %2025 = vmatprep.subr.mxu0 0.0
        %2026 = vmatpush2.msra.mxu0 0.0
        %2027 = vmatprep.subr.mxu0 0.0
        %2028 = vmatpush2.msra.mxu0 0.0
        %2029 = vmatprep.subr.mxu0 0.0
        %2030 = vmatpush2.msra.mxu0 0.0
        %2031 = vmatprep.subr.mxu0 0.0
        %2032 = vmatpush2.msra.mxu0 0.0
        %2033 = vmatprep.mubr.f32.mxu0 0.0
        %2034 = vmatmul.mubr.f32.gmra.mxu0 %v917
        %v2035 = vpop.f32.mrf.mxu0
        %v2036 = vadd.f32 0.0, %v2035
        %v2037 = vpop.f32.mrf.mxu0
        %v2038 = vadd.f32 0.0, %v2037
        %2039 = vdwg.mxu0
        %v2040 = vadd.f32 %v1937, %v2036
        %v2041 = vadd.f32 %v1938, %v2038
        %v2042 = vxor.u32 %v2040, 2147483648
        %v2043 = vxor.u32 %v2041, 2147483648
        %v2044 = vmul.f32 %v2042, 1.442695
        %v2045 = vpow.pop %v2044
        %v2046 = vmul.f32 %v2043, 1.442695
        %v2047 = vpow.pop %v2046
        %v2048 = vadd.f32 %v2045, 1.0
        %v2049 = vadd.f32 %v2047, 1.0
        %v2050 = vrcp.pop %v2048
        %v2051 = vmul.f32 1.0, %v2050
        %v2052 = vrcp.pop %v2049
        %v2053 = vmul.f32 1.0, %v2052
        %v2054 = vtanh.pop %v2041
        %v2055 = vmul.f32 %v2051, 0.0
        %2057 = vrot.lane.b32.xlu0 %v2054, 64
        %v2058 = vpop.permute.xlu0 %2057
        %v2060 = vmul.f32 %v2051, %v2058
        %2062 = vrot.lane.b32.xlu0 %v2060, 64
        %v2063 = vpop.permute.xlu0 %2062
        %v2065 = vadd.f32 %v2055, %v2063
        %v2066 = vtanh.pop %v2065
        %2068 = vrot.lane.b32.xlu0 %v2066, 64
        %v2069 = vpop.permute.xlu0 %2068
        %v2071 = vmul.f32 %v2053, %v2069
        %v2073 = vsel %vm915, %v2071, 0
        %2075 = vmatprep.subr.mxu0 0.0
        %2076 = vmatpush1.msra.mxu0 0.0
        %2077 = vmatprep.subr.mxu0 0.0
        %2078 = vmatpush1.msra.mxu0 0.0
        %2079 = vmatprep.subr.mxu0 0.0
        %2080 = vmatpush1.msra.mxu0 0.0
        %2081 = vmatprep.subr.mxu0 0.0
        %2082 = vmatpush1.msra.mxu0 0.0
        %2083 = vmatprep.subr.mxu0 0.0
        %2084 = vmatpush1.msra.mxu0 0.0
        %2085 = vmatprep.subr.mxu0 0.0
        %2086 = vmatpush1.msra.mxu0 0.0
        %2087 = vmatprep.subr.mxu0 0.0
        %2088 = vmatpush1.msra.mxu0 0.0
        %2089 = vmatprep.subr.mxu0 0.0
        %2090 = vmatpush1.msra.mxu0 0.0
        %2091 = vmatprep.subr.mxu0 %v1968
        %2092 = vmatpush1.msra.mxu0 %v1967
        %2093 = vmatprep.subr.mxu0 %v1966
        %2094 = vmatpush1.msra.mxu0 %v1965
        %2095 = vmatprep.subr.mxu0 %v1964
        %2096 = vmatpush1.msra.mxu0 %v1963
        %2097 = vmatprep.subr.mxu0 %v1962
        %2098 = vmatpush1.msra.mxu0 %v1961
        %2099 = vmatprep.subr.mxu0 %v1960
        %2100 = vmatpush1.msra.mxu0 %v1959
        %2101 = vmatprep.subr.mxu0 %v1958
        %2102 = vmatpush1.msra.mxu0 %v1957
        %2103 = vmatprep.subr.mxu0 %v1956
        %2104 = vmatpush1.msra.mxu0 %v1955
        %2105 = vmatprep.subr.mxu0 %v1954
        %2106 = vmatpush1.msra.mxu0 %v1953
        %2107 = vmatprep.subr.mxu0 0.0
        %2108 = vmatpush2.msra.mxu0 0.0
        %2109 = vmatprep.subr.mxu0 0.0
        %2110 = vmatpush2.msra.mxu0 0.0
        %2111 = vmatprep.subr.mxu0 0.0
        %2112 = vmatpush2.msra.mxu0 0.0
        %2113 = vmatprep.subr.mxu0 0.0
        %2114 = vmatpush2.msra.mxu0 0.0
        %2115 = vmatprep.subr.mxu0 0.0
        %2116 = vmatpush2.msra.mxu0 0.0
        %2117 = vmatprep.subr.mxu0 0.0
        %2118 = vmatpush2.msra.mxu0 0.0
        %2119 = vmatprep.subr.mxu0 0.0
        %2120 = vmatpush2.msra.mxu0 0.0
        %2121 = vmatprep.subr.mxu0 0.0
        %2122 = vmatpush2.msra.mxu0 0.0
        %2123 = vmatprep.subr.mxu0 0.0
        %2124 = vmatpush2.msra.mxu0 0.0
        %2125 = vmatprep.subr.mxu0 0.0
        %2126 = vmatpush2.msra.mxu0 0.0
        %2127 = vmatprep.subr.mxu0 0.0
        %2128 = vmatpush2.msra.mxu0 0.0
        %2129 = vmatprep.subr.mxu0 0.0
        %2130 = vmatpush2.msra.mxu0 0.0
        %2131 = vmatprep.subr.mxu0 0.0
        %2132 = vmatpush2.msra.mxu0 0.0
        %2133 = vmatprep.subr.mxu0 0.0
        %2134 = vmatpush2.msra.mxu0 0.0
        %2135 = vmatprep.subr.mxu0 0.0
        %2136 = vmatpush2.msra.mxu0 0.0
        %2137 = vmatprep.subr.mxu0 0.0
        %2138 = vmatpush2.msra.mxu0 0.0
        %2139 = vmatprep.mubr.f32.mxu0 0.0
        %2140 = vmatmul.mubr.f32.gmra.mxu0 %v2073
        %v2141 = vpop.f32.mrf.mxu0
        %v2142 = vadd.f32 0.0, %v2141
        %v2143 = vpop.f32.mrf.mxu0
        %v2144 = vadd.f32 0.0, %v2143
        %2145 = vdwg.mxu0
        %v2146 = vadd.f32 %v1939, %v2142
        %v2147 = vadd.f32 %v1940, %v2144
        %v2148 = vxor.u32 %v2146, 2147483648
        %v2149 = vxor.u32 %v2147, 2147483648
        %v2150 = vmul.f32 %v2148, 1.442695
        %v2151 = vpow.pop %v2150
        %v2152 = vmul.f32 %v2149, 1.442695
        %v2153 = vpow.pop %v2152
        %v2154 = vadd.f32 %v2151, 1.0
        %v2155 = vadd.f32 %v2153, 1.0
        %v2156 = vrcp.pop %v2154
        %v2157 = vmul.f32 1.0, %v2156
        %v2158 = vrcp.pop %v2155
        %v2159 = vmul.f32 1.0, %v2158
        %v2160 = vtanh.pop %v2147
        %v2161 = vmul.f32 %v2157, %v2065
        %2163 = vrot.lane.b32.xlu0 %v2160, 64
        %v2164 = vpop.permute.xlu0 %2163
        %v2166 = vmul.f32 %v2157, %v2164
        %2168 = vrot.lane.b32.xlu0 %v2166, 64
        %v2169 = vpop.permute.xlu0 %2168
        %v2171 = vadd.f32 %v2161, %v2169
        %v2172 = vtanh.pop %v2171
        %2174 = vrot.lane.b32.xlu0 %v2172, 64
        %v2175 = vpop.permute.xlu0 %2174
        %v2177 = vmul.f32 %v2159, %v2175
        %v2179 = vsel %vm915, %v2177, 0
        %2181 = vmatprep.subr.mxu0 0.0
        %2182 = vmatpush1.msra.mxu0 0.0
        %2183 = vmatprep.subr.mxu0 0.0
        %2184 = vmatpush1.msra.mxu0 0.0
        %2185 = vmatprep.subr.mxu0 0.0
        %2186 = vmatpush1.msra.mxu0 0.0
        %2187 = vmatprep.subr.mxu0 0.0
        %2188 = vmatpush1.msra.mxu0 0.0
        %2189 = vmatprep.subr.mxu0 0.0
        %2190 = vmatpush1.msra.mxu0 0.0
        %2191 = vmatprep.subr.mxu0 0.0
        %2192 = vmatpush1.msra.mxu0 0.0
        %2193 = vmatprep.subr.mxu0 0.0
        %2194 = vmatpush1.msra.mxu0 0.0
        %2195 = vmatprep.subr.mxu0 0.0
        %2196 = vmatpush1.msra.mxu0 0.0
        %2197 = vmatprep.subr.mxu0 %v1968
        %2198 = vmatpush1.msra.mxu0 %v1967
        %2199 = vmatprep.subr.mxu0 %v1966
        %2200 = vmatpush1.msra.mxu0 %v1965
        %2201 = vmatprep.subr.mxu0 %v1964
        %2202 = vmatpush1.msra.mxu0 %v1963
        %2203 = vmatprep.subr.mxu0 %v1962
        %2204 = vmatpush1.msra.mxu0 %v1961
        %2205 = vmatprep.subr.mxu0 %v1960
        %2206 = vmatpush1.msra.mxu0 %v1959
        %2207 = vmatprep.subr.mxu0 %v1958
        %2208 = vmatpush1.msra.mxu0 %v1957
        %2209 = vmatprep.subr.mxu0 %v1956
        %2210 = vmatpush1.msra.mxu0 %v1955
        %2211 = vmatprep.subr.mxu0 %v1954
        %2212 = vmatpush1.msra.mxu0 %v1953
        %2213 = vmatprep.subr.mxu0 0.0
        %2214 = vmatpush2.msra.mxu0 0.0
        %2215 = vmatprep.subr.mxu0 0.0
        %2216 = vmatpush2.msra.mxu0 0.0
        %2217 = vmatprep.subr.mxu0 0.0
        %2218 = vmatpush2.msra.mxu0 0.0
        %2219 = vmatprep.subr.mxu0 0.0
        %2220 = vmatpush2.msra.mxu0 0.0
        %2221 = vmatprep.subr.mxu0 0.0
        %2222 = vmatpush2.msra.mxu0 0.0
        %2223 = vmatprep.subr.mxu0 0.0
        %2224 = vmatpush2.msra.mxu0 0.0
        %2225 = vmatprep.subr.mxu0 0.0
        %2226 = vmatpush2.msra.mxu0 0.0
        %2227 = vmatprep.subr.mxu0 0.0
        %2228 = vmatpush2.msra.mxu0 0.0
        %2229 = vmatprep.subr.mxu0 0.0
        %2230 = vmatpush2.msra.mxu0 0.0
        %2231 = vmatprep.subr.mxu0 0.0
        %2232 = vmatpush2.msra.mxu0 0.0
        %2233 = vmatprep.subr.mxu0 0.0
        %2234 = vmatpush2.msra.mxu0 0.0
        %2235 = vmatprep.subr.mxu0 0.0
        %2236 = vmatpush2.msra.mxu0 0.0
        %2237 = vmatprep.subr.mxu0 0.0
        %2238 = vmatpush2.msra.mxu0 0.0
        %2239 = vmatprep.subr.mxu0 0.0
        %2240 = vmatpush2.msra.mxu0 0.0
        %2241 = vmatprep.subr.mxu0 0.0
        %2242 = vmatpush2.msra.mxu0 0.0
        %2243 = vmatprep.subr.mxu0 0.0
        %2244 = vmatpush2.msra.mxu0 0.0
        %2245 = vmatprep.mubr.f32.mxu0 0.0
        %2246 = vmatmul.mubr.f32.gmra.mxu0 %v2179
        %v2247 = vpop.f32.mrf.mxu0
        %v2248 = vadd.f32 0.0, %v2247
        %v2249 = vpop.f32.mrf.mxu0
        %v2250 = vadd.f32 0.0, %v2249
        %2251 = vdwg.mxu0
        %v2252 = vadd.f32 %v1941, %v2248
        %v2253 = vadd.f32 %v1942, %v2250
        %v2254 = vxor.u32 %v2252, 2147483648
        %v2255 = vxor.u32 %v2253, 2147483648
        %v2256 = vmul.f32 %v2254, 1.442695
        %v2257 = vpow.pop %v2256
        %v2258 = vmul.f32 %v2255, 1.442695
        %v2259 = vpow.pop %v2258
        %v2260 = vadd.f32 %v2257, 1.0
        %v2261 = vadd.f32 %v2259, 1.0
        %v2262 = vrcp.pop %v2260
        %v2263 = vmul.f32 1.0, %v2262
        %v2264 = vrcp.pop %v2261
        %v2265 = vmul.f32 1.0, %v2264
        %v2266 = vtanh.pop %v2253
        %v2267 = vmul.f32 %v2263, %v2171
        %2269 = vrot.lane.b32.xlu0 %v2266, 64
        %v2270 = vpop.permute.xlu0 %2269
        %v2272 = vmul.f32 %v2263, %v2270
        %2274 = vrot.lane.b32.xlu0 %v2272, 64
        %v2275 = vpop.permute.xlu0 %2274
        %v2277 = vadd.f32 %v2267, %v2275
        %v2278 = vtanh.pop %v2277
        %2280 = vrot.lane.b32.xlu0 %v2278, 64
        %v2281 = vpop.permute.xlu0 %2280
        %v2283 = vmul.f32 %v2265, %v2281
        %v2285 = vsel %vm915, %v2283, 0
        %2287 = vmatprep.subr.mxu0 0.0
        %2288 = vmatpush1.msra.mxu0 0.0
        %2289 = vmatprep.subr.mxu0 0.0
        %2290 = vmatpush1.msra.mxu0 0.0
        %2291 = vmatprep.subr.mxu0 0.0
        %2292 = vmatpush1.msra.mxu0 0.0
        %2293 = vmatprep.subr.mxu0 0.0
        %2294 = vmatpush1.msra.mxu0 0.0
        %2295 = vmatprep.subr.mxu0 0.0
        %2296 = vmatpush1.msra.mxu0 0.0
        %2297 = vmatprep.subr.mxu0 0.0
        %2298 = vmatpush1.msra.mxu0 0.0
        %2299 = vmatprep.subr.mxu0 0.0
        %2300 = vmatpush1.msra.mxu0 0.0
        %2301 = vmatprep.subr.mxu0 0.0
        %2302 = vmatpush1.msra.mxu0 0.0
        %2303 = vmatprep.subr.mxu0 %v1968
        %2304 = vmatpush1.msra.mxu0 %v1967
        %2305 = vmatprep.subr.mxu0 %v1966
        %2306 = vmatpush1.msra.mxu0 %v1965
        %2307 = vmatprep.subr.mxu0 %v1964
        %2308 = vmatpush1.msra.mxu0 %v1963
        %2309 = vmatprep.subr.mxu0 %v1962
        %2310 = vmatpush1.msra.mxu0 %v1961
        %2311 = vmatprep.subr.mxu0 %v1960
        %2312 = vmatpush1.msra.mxu0 %v1959
        %2313 = vmatprep.subr.mxu0 %v1958
        %2314 = vmatpush1.msra.mxu0 %v1957
        %2315 = vmatprep.subr.mxu0 %v1956
        %2316 = vmatpush1.msra.mxu0 %v1955
        %2317 = vmatprep.subr.mxu0 %v1954
        %2318 = vmatpush1.msra.mxu0 %v1953
        %2319 = vmatprep.subr.mxu0 0.0
        %2320 = vmatpush2.msra.mxu0 0.0
        %2321 = vmatprep.subr.mxu0 0.0
        %2322 = vmatpush2.msra.mxu0 0.0
        %2323 = vmatprep.subr.mxu0 0.0
        %2324 = vmatpush2.msra.mxu0 0.0
        %2325 = vmatprep.subr.mxu0 0.0
        %2326 = vmatpush2.msra.mxu0 0.0
        %2327 = vmatprep.subr.mxu0 0.0
        %2328 = vmatpush2.msra.mxu0 0.0
        %2329 = vmatprep.subr.mxu0 0.0
        %2330 = vmatpush2.msra.mxu0 0.0
        %2331 = vmatprep.subr.mxu0 0.0
        %2332 = vmatpush2.msra.mxu0 0.0
        %2333 = vmatprep.subr.mxu0 0.0
        %2334 = vmatpush2.msra.mxu0 0.0
        %2335 = vmatprep.subr.mxu0 0.0
        %2336 = vmatpush2.msra.mxu0 0.0
        %2337 = vmatprep.subr.mxu0 0.0
        %2338 = vmatpush2.msra.mxu0 0.0
        %2339 = vmatprep.subr.mxu0 0.0
        %2340 = vmatpush2.msra.mxu0 0.0
        %2341 = vmatprep.subr.mxu0 0.0
        %2342 = vmatpush2.msra.mxu0 0.0
        %2343 = vmatprep.subr.mxu0 0.0
        %2344 = vmatpush2.msra.mxu0 0.0
        %2345 = vmatprep.subr.mxu0 0.0
        %2346 = vmatpush2.msra.mxu0 0.0
        %2347 = vmatprep.subr.mxu0 0.0
        %2348 = vmatpush2.msra.mxu0 0.0
        %2349 = vmatprep.subr.mxu0 0.0
        %2350 = vmatpush2.msra.mxu0 0.0
        %2351 = vmatprep.mubr.f32.mxu0 0.0
        %2352 = vmatmul.mubr.f32.gmra.mxu0 %v2285
        %v2353 = vpop.f32.mrf.mxu0
        %v2354 = vadd.f32 0.0, %v2353
        %v2355 = vpop.f32.mrf.mxu0
        %v2356 = vadd.f32 0.0, %v2355
        %2357 = vdwg.mxu0
        %v2358 = vadd.f32 %v1943, %v2354
        %v2359 = vadd.f32 %v1944, %v2356
        %v2360 = vxor.u32 %v2358, 2147483648
        %v2361 = vxor.u32 %v2359, 2147483648
        %v2362 = vmul.f32 %v2360, 1.442695
        %v2363 = vpow.pop %v2362
        %v2364 = vmul.f32 %v2361, 1.442695
        %v2365 = vpow.pop %v2364
        %v2366 = vadd.f32 %v2363, 1.0
        %v2367 = vadd.f32 %v2365, 1.0
        %v2368 = vrcp.pop %v2366
        %v2369 = vmul.f32 1.0, %v2368
        %v2370 = vrcp.pop %v2367
        %v2371 = vmul.f32 1.0, %v2370
        %v2372 = vtanh.pop %v2359
        %v2373 = vmul.f32 %v2369, %v2277
        %2375 = vrot.lane.b32.xlu0 %v2372, 64
        %v2376 = vpop.permute.xlu0 %2375
        %v2378 = vmul.f32 %v2369, %v2376
        %2380 = vrot.lane.b32.xlu0 %v2378, 64
        %v2381 = vpop.permute.xlu0 %2380
        %v2383 = vadd.f32 %v2373, %v2381
        %v2384 = vtanh.pop %v2383
        %2386 = vrot.lane.b32.xlu0 %v2384, 64
        %v2387 = vpop.permute.xlu0 %2386
        %v2389 = vmul.f32 %v2371, %v2387
        %v2391 = vsel %vm915, %v2389, 0
        %2393 = vmatprep.subr.mxu0 0.0
        %2394 = vmatpush1.msra.mxu0 0.0
        %2395 = vmatprep.subr.mxu0 0.0
        %2396 = vmatpush1.msra.mxu0 0.0
        %2397 = vmatprep.subr.mxu0 0.0
        %2398 = vmatpush1.msra.mxu0 0.0
        %2399 = vmatprep.subr.mxu0 0.0
        %2400 = vmatpush1.msra.mxu0 0.0
        %2401 = vmatprep.subr.mxu0 0.0
        %2402 = vmatpush1.msra.mxu0 0.0
        %2403 = vmatprep.subr.mxu0 0.0
        %2404 = vmatpush1.msra.mxu0 0.0
        %2405 = vmatprep.subr.mxu0 0.0
        %2406 = vmatpush1.msra.mxu0 0.0
        %2407 = vmatprep.subr.mxu0 0.0
        %2408 = vmatpush1.msra.mxu0 0.0
        %2409 = vmatprep.subr.mxu0 %v1968
        %2410 = vmatpush1.msra.mxu0 %v1967
        %2411 = vmatprep.subr.mxu0 %v1966
        %2412 = vmatpush1.msra.mxu0 %v1965
        %2413 = vmatprep.subr.mxu0 %v1964
        %2414 = vmatpush1.msra.mxu0 %v1963
        %2415 = vmatprep.subr.mxu0 %v1962
        %2416 = vmatpush1.msra.mxu0 %v1961
        %2417 = vmatprep.subr.mxu0 %v1960
        %2418 = vmatpush1.msra.mxu0 %v1959
        %2419 = vmatprep.subr.mxu0 %v1958
        %2420 = vmatpush1.msra.mxu0 %v1957
        %2421 = vmatprep.subr.mxu0 %v1956
        %2422 = vmatpush1.msra.mxu0 %v1955
        %2423 = vmatprep.subr.mxu0 %v1954
        %2424 = vmatpush1.msra.mxu0 %v1953
        %2425 = vmatprep.subr.mxu0 0.0
        %2426 = vmatpush2.msra.mxu0 0.0
        %2427 = vmatprep.subr.mxu0 0.0
        %2428 = vmatpush2.msra.mxu0 0.0
        %2429 = vmatprep.subr.mxu0 0.0
        %2430 = vmatpush2.msra.mxu0 0.0
        %2431 = vmatprep.subr.mxu0 0.0
        %2432 = vmatpush2.msra.mxu0 0.0
        %2433 = vmatprep.subr.mxu0 0.0
        %2434 = vmatpush2.msra.mxu0 0.0
        %2435 = vmatprep.subr.mxu0 0.0
        %2436 = vmatpush2.msra.mxu0 0.0
        %2437 = vmatprep.subr.mxu0 0.0
        %2438 = vmatpush2.msra.mxu0 0.0
        %2439 = vmatprep.subr.mxu0 0.0
        %2440 = vmatpush2.msra.mxu0 0.0
        %2441 = vmatprep.subr.mxu0 0.0
        %2442 = vmatpush2.msra.mxu0 0.0
        %2443 = vmatprep.subr.mxu0 0.0
        %2444 = vmatpush2.msra.mxu0 0.0
        %2445 = vmatprep.subr.mxu0 0.0
        %2446 = vmatpush2.msra.mxu0 0.0
        %2447 = vmatprep.subr.mxu0 0.0
        %2448 = vmatpush2.msra.mxu0 0.0
        %2449 = vmatprep.subr.mxu0 0.0
        %2450 = vmatpush2.msra.mxu0 0.0
        %2451 = vmatprep.subr.mxu0 0.0
        %2452 = vmatpush2.msra.mxu0 0.0
        %2453 = vmatprep.subr.mxu0 0.0
        %2454 = vmatpush2.msra.mxu0 0.0
        %2455 = vmatprep.subr.mxu0 0.0
        %2456 = vmatpush2.msra.mxu0 0.0
        %2457 = vmatprep.mubr.f32.mxu0 0.0
        %2458 = vmatmul.mubr.f32.gmra.mxu0 %v2391
        %v2459 = vpop.f32.mrf.mxu0
        %v2460 = vadd.f32 0.0, %v2459
        %v2461 = vpop.f32.mrf.mxu0
        %v2462 = vadd.f32 0.0, %v2461
        %2463 = vdwg.mxu0
        %v2464 = vadd.f32 %v1945, %v2460
        %v2465 = vadd.f32 %v1946, %v2462
        %v2466 = vxor.u32 %v2464, 2147483648
        %v2467 = vxor.u32 %v2465, 2147483648
        %v2468 = vmul.f32 %v2466, 1.442695
        %v2469 = vpow.pop %v2468
        %v2470 = vmul.f32 %v2467, 1.442695
        %v2471 = vpow.pop %v2470
        %v2472 = vadd.f32 %v2469, 1.0
        %v2473 = vadd.f32 %v2471, 1.0
        %v2474 = vrcp.pop %v2472
        %v2475 = vmul.f32 1.0, %v2474
        %v2476 = vrcp.pop %v2473
        %v2477 = vmul.f32 1.0, %v2476
        %v2478 = vtanh.pop %v2465
        %v2479 = vmul.f32 %v2475, %v2383
        %2481 = vrot.lane.b32.xlu0 %v2478, 64
        %v2482 = vpop.permute.xlu0 %2481
        %v2484 = vmul.f32 %v2475, %v2482
        %2486 = vrot.lane.b32.xlu0 %v2484, 64
        %v2487 = vpop.permute.xlu0 %2486
        %v2489 = vadd.f32 %v2479, %v2487
        %v2490 = vtanh.pop %v2489
        %2492 = vrot.lane.b32.xlu0 %v2490, 64
        %v2493 = vpop.permute.xlu0 %2492
        %v2495 = vmul.f32 %v2477, %v2493
        %v2497 = vsel %vm915, %v2495, 0
        %2499 = vmatprep.subr.mxu0 0.0
        %2500 = vmatpush1.msra.mxu0 0.0
        %2501 = vmatprep.subr.mxu0 0.0
        %2502 = vmatpush1.msra.mxu0 0.0
        %2503 = vmatprep.subr.mxu0 0.0
        %2504 = vmatpush1.msra.mxu0 0.0
        %2505 = vmatprep.subr.mxu0 0.0
        %2506 = vmatpush1.msra.mxu0 0.0
        %2507 = vmatprep.subr.mxu0 0.0
        %2508 = vmatpush1.msra.mxu0 0.0
        %2509 = vmatprep.subr.mxu0 0.0
        %2510 = vmatpush1.msra.mxu0 0.0
        %2511 = vmatprep.subr.mxu0 0.0
        %2512 = vmatpush1.msra.mxu0 0.0
        %2513 = vmatprep.subr.mxu0 0.0
        %2514 = vmatpush1.msra.mxu0 0.0
        %2515 = vmatprep.subr.mxu0 %v1968
        %2516 = vmatpush1.msra.mxu0 %v1967
        %2517 = vmatprep.subr.mxu0 %v1966
        %2518 = vmatpush1.msra.mxu0 %v1965
        %2519 = vmatprep.subr.mxu0 %v1964
        %2520 = vmatpush1.msra.mxu0 %v1963
        %2521 = vmatprep.subr.mxu0 %v1962
        %2522 = vmatpush1.msra.mxu0 %v1961
        %2523 = vmatprep.subr.mxu0 %v1960
        %2524 = vmatpush1.msra.mxu0 %v1959
        %2525 = vmatprep.subr.mxu0 %v1958
        %2526 = vmatpush1.msra.mxu0 %v1957
        %2527 = vmatprep.subr.mxu0 %v1956
        %2528 = vmatpush1.msra.mxu0 %v1955
        %2529 = vmatprep.subr.mxu0 %v1954
        %2530 = vmatpush1.msra.mxu0 %v1953
        %2531 = vmatprep.subr.mxu0 0.0
        %2532 = vmatpush2.msra.mxu0 0.0
        %2533 = vmatprep.subr.mxu0 0.0
        %2534 = vmatpush2.msra.mxu0 0.0
        %2535 = vmatprep.subr.mxu0 0.0
        %2536 = vmatpush2.msra.mxu0 0.0
        %2537 = vmatprep.subr.mxu0 0.0
        %2538 = vmatpush2.msra.mxu0 0.0
        %2539 = vmatprep.subr.mxu0 0.0
        %2540 = vmatpush2.msra.mxu0 0.0
        %2541 = vmatprep.subr.mxu0 0.0
        %2542 = vmatpush2.msra.mxu0 0.0
        %2543 = vmatprep.subr.mxu0 0.0
        %2544 = vmatpush2.msra.mxu0 0.0
        %2545 = vmatprep.subr.mxu0 0.0
        %2546 = vmatpush2.msra.mxu0 0.0
        %2547 = vmatprep.subr.mxu0 0.0
        %2548 = vmatpush2.msra.mxu0 0.0
        %2549 = vmatprep.subr.mxu0 0.0
        %2550 = vmatpush2.msra.mxu0 0.0
        %2551 = vmatprep.subr.mxu0 0.0
        %2552 = vmatpush2.msra.mxu0 0.0
        %2553 = vmatprep.subr.mxu0 0.0
        %2554 = vmatpush2.msra.mxu0 0.0
        %2555 = vmatprep.subr.mxu0 0.0
        %2556 = vmatpush2.msra.mxu0 0.0
        %2557 = vmatprep.subr.mxu0 0.0
        %2558 = vmatpush2.msra.mxu0 0.0
        %2559 = vmatprep.subr.mxu0 0.0
        %2560 = vmatpush2.msra.mxu0 0.0
        %2561 = vmatprep.subr.mxu0 0.0
        %2562 = vmatpush2.msra.mxu0 0.0
        %2563 = vmatprep.mubr.f32.mxu0 0.0
        %2564 = vmatmul.mubr.f32.gmra.mxu0 %v2497
        %v2565 = vpop.f32.mrf.mxu0
        %v2566 = vadd.f32 0.0, %v2565
        %v2567 = vpop.f32.mrf.mxu0
        %v2568 = vadd.f32 0.0, %v2567
        %2569 = vdwg.mxu0
        %v2570 = vadd.f32 %v1947, %v2566
        %v2571 = vadd.f32 %v1948, %v2568
        %v2572 = vxor.u32 %v2570, 2147483648
        %v2573 = vxor.u32 %v2571, 2147483648
        %v2574 = vmul.f32 %v2572, 1.442695
        %v2575 = vpow.pop %v2574
        %v2576 = vmul.f32 %v2573, 1.442695
        %v2577 = vpow.pop %v2576
        %v2578 = vadd.f32 %v2575, 1.0
        %v2579 = vadd.f32 %v2577, 1.0
        %v2580 = vrcp.pop %v2578
        %v2581 = vmul.f32 1.0, %v2580
        %v2582 = vrcp.pop %v2579
        %v2583 = vmul.f32 1.0, %v2582
        %v2584 = vtanh.pop %v2571
        %v2585 = vmul.f32 %v2581, %v2489
        %2587 = vrot.lane.b32.xlu0 %v2584, 64
        %v2588 = vpop.permute.xlu0 %2587
        %v2590 = vmul.f32 %v2581, %v2588
        %2592 = vrot.lane.b32.xlu0 %v2590, 64
        %v2593 = vpop.permute.xlu0 %2592
        %v2595 = vadd.f32 %v2585, %v2593
        %v2596 = vtanh.pop %v2595
        %2598 = vrot.lane.b32.xlu0 %v2596, 64
        %v2599 = vpop.permute.xlu0 %2598
        %v2601 = vmul.f32 %v2583, %v2599
        %v2603 = vsel %vm915, %v2601, 0
        %2605 = vmatprep.subr.mxu0 0.0
        %2606 = vmatpush1.msra.mxu0 0.0
        %2607 = vmatprep.subr.mxu0 0.0
        %2608 = vmatpush1.msra.mxu0 0.0
        %2609 = vmatprep.subr.mxu0 0.0
        %2610 = vmatpush1.msra.mxu0 0.0
        %2611 = vmatprep.subr.mxu0 0.0
        %2612 = vmatpush1.msra.mxu0 0.0
        %2613 = vmatprep.subr.mxu0 0.0
        %2614 = vmatpush1.msra.mxu0 0.0
        %2615 = vmatprep.subr.mxu0 0.0
        %2616 = vmatpush1.msra.mxu0 0.0
        %2617 = vmatprep.subr.mxu0 0.0
        %2618 = vmatpush1.msra.mxu0 0.0
        %2619 = vmatprep.subr.mxu0 0.0
        %2620 = vmatpush1.msra.mxu0 0.0
        %2621 = vmatprep.subr.mxu0 %v1968
        %2622 = vmatpush1.msra.mxu0 %v1967
        %2623 = vmatprep.subr.mxu0 %v1966
        %2624 = vmatpush1.msra.mxu0 %v1965
        %2625 = vmatprep.subr.mxu0 %v1964
        %2626 = vmatpush1.msra.mxu0 %v1963
        %2627 = vmatprep.subr.mxu0 %v1962
        %2628 = vmatpush1.msra.mxu0 %v1961
        %2629 = vmatprep.subr.mxu0 %v1960
        %2630 = vmatpush1.msra.mxu0 %v1959
        %2631 = vmatprep.subr.mxu0 %v1958
        %2632 = vmatpush1.msra.mxu0 %v1957
        %2633 = vmatprep.subr.mxu0 %v1956
        %2634 = vmatpush1.msra.mxu0 %v1955
        %2635 = vmatprep.subr.mxu0 %v1954
        %2636 = vmatpush1.msra.mxu0 %v1953
        %2637 = vmatprep.subr.mxu0 0.0
        %2638 = vmatpush2.msra.mxu0 0.0
        %2639 = vmatprep.subr.mxu0 0.0
        %2640 = vmatpush2.msra.mxu0 0.0
        %2641 = vmatprep.subr.mxu0 0.0
        %2642 = vmatpush2.msra.mxu0 0.0
        %2643 = vmatprep.subr.mxu0 0.0
        %2644 = vmatpush2.msra.mxu0 0.0
        %2645 = vmatprep.subr.mxu0 0.0
        %2646 = vmatpush2.msra.mxu0 0.0
        %2647 = vmatprep.subr.mxu0 0.0
        %2648 = vmatpush2.msra.mxu0 0.0
        %2649 = vmatprep.subr.mxu0 0.0
        %2650 = vmatpush2.msra.mxu0 0.0
        %2651 = vmatprep.subr.mxu0 0.0
        %2652 = vmatpush2.msra.mxu0 0.0
        %2653 = vmatprep.subr.mxu0 0.0
        %2654 = vmatpush2.msra.mxu0 0.0
        %2655 = vmatprep.subr.mxu0 0.0
        %2656 = vmatpush2.msra.mxu0 0.0
        %2657 = vmatprep.subr.mxu0 0.0
        %2658 = vmatpush2.msra.mxu0 0.0
        %2659 = vmatprep.subr.mxu0 0.0
        %2660 = vmatpush2.msra.mxu0 0.0
        %2661 = vmatprep.subr.mxu0 0.0
        %2662 = vmatpush2.msra.mxu0 0.0
        %2663 = vmatprep.subr.mxu0 0.0
        %2664 = vmatpush2.msra.mxu0 0.0
        %2665 = vmatprep.subr.mxu0 0.0
        %2666 = vmatpush2.msra.mxu0 0.0
        %2667 = vmatprep.subr.mxu0 0.0
        %2668 = vmatpush2.msra.mxu0 0.0
        %2669 = vmatprep.mubr.f32.mxu0 0.0
        %2670 = vmatmul.mubr.f32.gmra.mxu0 %v2603
        %v2671 = vpop.f32.mrf.mxu0
        %v2672 = vadd.f32 0.0, %v2671
        %v2673 = vpop.f32.mrf.mxu0
        %v2674 = vadd.f32 0.0, %v2673
        %2675 = vdwg.mxu0
        %v2676 = vadd.f32 %v1949, %v2672
        %v2677 = vadd.f32 %v1950, %v2674
        %v2678 = vxor.u32 %v2676, 2147483648
        %v2679 = vxor.u32 %v2677, 2147483648
        %v2680 = vmul.f32 %v2678, 1.442695
        %v2681 = vpow.pop %v2680
        %v2682 = vmul.f32 %v2679, 1.442695
        %v2683 = vpow.pop %v2682
        %v2684 = vadd.f32 %v2681, 1.0
        %v2685 = vadd.f32 %v2683, 1.0
        %v2686 = vrcp.pop %v2684
        %v2687 = vmul.f32 1.0, %v2686
        %v2688 = vrcp.pop %v2685
        %v2689 = vmul.f32 1.0, %v2688
        %v2690 = vtanh.pop %v2677
        %v2691 = vmul.f32 %v2687, %v2595
        %2693 = vrot.lane.b32.xlu0 %v2690, 64
        %v2694 = vpop.permute.xlu0 %2693
        %v2696 = vmul.f32 %v2687, %v2694
        %2698 = vrot.lane.b32.xlu0 %v2696, 64
        %v2699 = vpop.permute.xlu0 %2698
        %v2701 = vadd.f32 %v2691, %v2699
        %v2702 = vtanh.pop %v2701
        %2704 = vrot.lane.b32.xlu0 %v2702, 64
        %v2705 = vpop.permute.xlu0 %2704
        %v2707 = vmul.f32 %v2689, %v2705
        %v2709 = vsel %vm915, %v2707, 0
        %2711 = vmatprep.subr.mxu0 0.0
        %2712 = vmatpush1.msra.mxu0 0.0
        %2713 = vmatprep.subr.mxu0 0.0
        %2714 = vmatpush1.msra.mxu0 0.0
        %2715 = vmatprep.subr.mxu0 0.0
        %2716 = vmatpush1.msra.mxu0 0.0
        %2717 = vmatprep.subr.mxu0 0.0
        %2718 = vmatpush1.msra.mxu0 0.0
        %2719 = vmatprep.subr.mxu0 0.0
        %2720 = vmatpush1.msra.mxu0 0.0
        %2721 = vmatprep.subr.mxu0 0.0
        %2722 = vmatpush1.msra.mxu0 0.0
        %2723 = vmatprep.subr.mxu0 0.0
        %2724 = vmatpush1.msra.mxu0 0.0
        %2725 = vmatprep.subr.mxu0 0.0
        %2726 = vmatpush1.msra.mxu0 0.0
        %2727 = vmatprep.subr.mxu0 %v1968
        %2728 = vmatpush1.msra.mxu0 %v1967
        %2729 = vmatprep.subr.mxu0 %v1966
        %2730 = vmatpush1.msra.mxu0 %v1965
        %2731 = vmatprep.subr.mxu0 %v1964
        %2732 = vmatpush1.msra.mxu0 %v1963
        %2733 = vmatprep.subr.mxu0 %v1962
        %2734 = vmatpush1.msra.mxu0 %v1961
        %2735 = vmatprep.subr.mxu0 %v1960
        %2736 = vmatpush1.msra.mxu0 %v1959
        %2737 = vmatprep.subr.mxu0 %v1958
        %2738 = vmatpush1.msra.mxu0 %v1957
        %2739 = vmatprep.subr.mxu0 %v1956
        %2740 = vmatpush1.msra.mxu0 %v1955
        %2741 = vmatprep.subr.mxu0 %v1954
        %2742 = vmatpush1.msra.mxu0 %v1953
        %2743 = vmatprep.subr.mxu0 0.0
        %2744 = vmatpush2.msra.mxu0 0.0
        %2745 = vmatprep.subr.mxu0 0.0
        %2746 = vmatpush2.msra.mxu0 0.0
        %2747 = vmatprep.subr.mxu0 0.0
        %2748 = vmatpush2.msra.mxu0 0.0
        %2749 = vmatprep.subr.mxu0 0.0
        %2750 = vmatpush2.msra.mxu0 0.0
        %2751 = vmatprep.subr.mxu0 0.0
        %2752 = vmatpush2.msra.mxu0 0.0
        %2753 = vmatprep.subr.mxu0 0.0
        %2754 = vmatpush2.msra.mxu0 0.0
        %2755 = vmatprep.subr.mxu0 0.0
        %2756 = vmatpush2.msra.mxu0 0.0
        %2757 = vmatprep.subr.mxu0 0.0
        %2758 = vmatpush2.msra.mxu0 0.0
        %2759 = vmatprep.subr.mxu0 0.0
        %2760 = vmatpush2.msra.mxu0 0.0
        %2761 = vmatprep.subr.mxu0 0.0
        %2762 = vmatpush2.msra.mxu0 0.0
        %2763 = vmatprep.subr.mxu0 0.0
        %2764 = vmatpush2.msra.mxu0 0.0
        %2765 = vmatprep.subr.mxu0 0.0
        %2766 = vmatpush2.msra.mxu0 0.0
        %2767 = vmatprep.subr.mxu0 0.0
        %2768 = vmatpush2.msra.mxu0 0.0
        %2769 = vmatprep.subr.mxu0 0.0
        %2770 = vmatpush2.msra.mxu0 0.0
        %2771 = vmatprep.subr.mxu0 0.0
        %2772 = vmatpush2.msra.mxu0 0.0
        %2773 = vmatprep.subr.mxu0 0.0
        %2774 = vmatpush2.msra.mxu0 0.0
        %2775 = vmatprep.mubr.f32.mxu0 0.0
        %2776 = vmatmul.mubr.f32.gmra.mxu0 %v2709
        %v2777 = vpop.f32.mrf.mxu0
        %v2778 = vadd.f32 0.0, %v2777
        %v2779 = vpop.f32.mrf.mxu0
        %v2780 = vadd.f32 0.0, %v2779
        %2781 = vdwg.mxu0
        %v2782 = vadd.f32 %v1951, %v2778
        %v2783 = vadd.f32 %v1952, %v2780
        %v2784 = vxor.u32 %v2782, 2147483648
        %v2785 = vxor.u32 %v2783, 2147483648
        %v2786 = vmul.f32 %v2784, 1.442695
        %v2787 = vpow.pop %v2786
        %v2788 = vmul.f32 %v2785, 1.442695
        %v2789 = vpow.pop %v2788
        %v2790 = vadd.f32 %v2787, 1.0
        %v2791 = vadd.f32 %v2789, 1.0
        %v2792 = vrcp.pop %v2790
        %v2793 = vmul.f32 1.0, %v2792
        %v2794 = vrcp.pop %v2791
        %v2795 = vmul.f32 1.0, %v2794
        %v2796 = vtanh.pop %v2783
        %v2797 = vmul.f32 %v2793, %v2701
        %2799 = vrot.lane.b32.xlu0 %v2796, 64
        %v2800 = vpop.permute.xlu0 %2799
        %v2802 = vmul.f32 %v2793, %v2800
        %2804 = vrot.lane.b32.xlu0 %v2802, 64
        %v2805 = vpop.permute.xlu0 %2804
        %v2807 = vadd.f32 %v2797, %v2805
        %v2808 = vtanh.pop %v2807
        %2810 = vrot.lane.b32.xlu0 %v2808, 64
        %v2811 = vpop.permute.xlu0 %2810
        %v2813 = vmul.f32 %v2795, %v2811
        %v2814 = vsel %vm591, %v2071, %v2813
        %v2815 = vsel %vm591, %v2177, %v2707
        %v2816 = vsel %vm591, %v2283, %v2601
        %v2817 = vsel %vm591, %v2389, %v2495
        %v2818 = vsel %vm591, %v2495, %v2389
        %v2819 = vsel %vm591, %v2601, %v2283
        %v2820 = vsel %vm591, %v2707, %v2177
        %v2821 = vsel %vm591, %v2813, %v2071
        %v2822 = vld [vmem:[#allocation10] sm:$0xff]
        %v2823 = vld [vmem:[#allocation10 + $0x8] sm:$0xff]
        %v2824 = vld [vmem:[#allocation10 + $0x10] sm:$0xff]
        %v2825 = vld [vmem:[#allocation10 + $0x18] sm:$0xff]
        %v2826 = vld [vmem:[#allocation10 + $0x20] sm:$0xff]
        %v2827 = vld [vmem:[#allocation10 + $0x28] sm:$0xff]
        %v2828 = vld [vmem:[#allocation10 + $0x30] sm:$0xff]
        %v2829 = vld [vmem:[#allocation10 + $0x38] sm:$0xff]
        %v2830 = vld [vmem:[#allocation10 + $0x40] sm:$0xff]
        %v2831 = vld [vmem:[#allocation10 + $0x48] sm:$0xff]
        %v2832 = vld [vmem:[#allocation10 + $0x50] sm:$0xff]
        %v2833 = vld [vmem:[#allocation10 + $0x58] sm:$0xff]
        %v2834 = vld [vmem:[#allocation10 + $0x60] sm:$0xff]
        %v2835 = vld [vmem:[#allocation10 + $0x68] sm:$0xff]
        %v2836 = vld [vmem:[#allocation10 + $0x70] sm:$0xff]
        %v2837 = vld [vmem:[#allocation10 + $0x78] sm:$0xff]
        %v2838 = vld [vmem:[%s10] sm:$0x3]
        %v2840 = vlaneseq
        %v2841 = vshrl.u32 %v2840, 7
        %v2842 = vsub.s32 0, %v2841
        %v2843 = vrot.slane %v2838, %v2842
        %v2844 = vlaneseq
        %v2845 = vshrl.u32 %v2844, 7
        %v2846 = vsub.s32 1, %v2845
        %v2847 = vrot.slane %v2838, %v2846
        %v2851 = vsel %vm915, %v2814, 0
        %v2854 = vsel %vm915, %v2815, 0
        %v2857 = vsel %vm915, %v2816, 0
        %v2860 = vsel %vm915, %v2817, 0
        %v2863 = vsel %vm915, %v2818, 0
        %v2866 = vsel %vm915, %v2819, 0
        %v2869 = vsel %vm915, %v2820, 0
        %v2872 = vsel %vm915, %v2821, 0
        %2874 = vmatprep.subr.mxu0 0.0
        %2875 = vmatpush1.msra.mxu0 0.0
        %2876 = vmatprep.subr.mxu0 0.0
        %2877 = vmatpush1.msra.mxu0 0.0
        %2878 = vmatprep.subr.mxu0 0.0
        %2879 = vmatpush1.msra.mxu0 0.0
        %2880 = vmatprep.subr.mxu0 0.0
        %2881 = vmatpush1.msra.mxu0 0.0
        %2882 = vmatprep.subr.mxu0 0.0
        %2883 = vmatpush1.msra.mxu0 0.0
        %2884 = vmatprep.subr.mxu0 0.0
        %2885 = vmatpush1.msra.mxu0 0.0
        %2886 = vmatprep.subr.mxu0 0.0
        %2887 = vmatpush1.msra.mxu0 0.0
        %2888 = vmatprep.subr.mxu0 0.0
        %2889 = vmatpush1.msra.mxu0 0.0
        %2890 = vmatprep.subr.mxu0 %v2837
        %2891 = vmatpush1.msra.mxu0 %v2836
        %2892 = vmatprep.subr.mxu0 %v2835
        %2893 = vmatpush1.msra.mxu0 %v2834
        %2894 = vmatprep.subr.mxu0 %v2833
        %2895 = vmatpush1.msra.mxu0 %v2832
        %2896 = vmatprep.subr.mxu0 %v2831
        %2897 = vmatpush1.msra.mxu0 %v2830
        %2898 = vmatprep.subr.mxu0 %v2829
        %2899 = vmatpush1.msra.mxu0 %v2828
        %2900 = vmatprep.subr.mxu0 %v2827
        %2901 = vmatpush1.msra.mxu0 %v2826
        %2902 = vmatprep.subr.mxu0 %v2825
        %2903 = vmatpush1.msra.mxu0 %v2824
        %2904 = vmatprep.subr.mxu0 %v2823
        %2905 = vmatpush1.msra.mxu0 %v2822
        %2906 = vmatprep.subr.mxu0 0.0
        %2907 = vmatpush2.msra.mxu0 0.0
        %2908 = vmatprep.subr.mxu0 0.0
        %2909 = vmatpush2.msra.mxu0 0.0
        %2910 = vmatprep.subr.mxu0 0.0
        %2911 = vmatpush2.msra.mxu0 0.0
        %2912 = vmatprep.subr.mxu0 0.0
        %2913 = vmatpush2.msra.mxu0 0.0
        %2914 = vmatprep.subr.mxu0 0.0
        %2915 = vmatpush2.msra.mxu0 0.0
        %2916 = vmatprep.subr.mxu0 0.0
        %2917 = vmatpush2.msra.mxu0 0.0
        %2918 = vmatprep.subr.mxu0 0.0
        %2919 = vmatpush2.msra.mxu0 0.0
        %2920 = vmatprep.subr.mxu0 0.0
        %2921 = vmatpush2.msra.mxu0 0.0
        %2922 = vmatprep.subr.mxu0 0.0
        %2923 = vmatpush2.msra.mxu0 0.0
        %2924 = vmatprep.subr.mxu0 0.0
        %2925 = vmatpush2.msra.mxu0 0.0
        %2926 = vmatprep.subr.mxu0 0.0
        %2927 = vmatpush2.msra.mxu0 0.0
        %2928 = vmatprep.subr.mxu0 0.0
        %2929 = vmatpush2.msra.mxu0 0.0
        %2930 = vmatprep.subr.mxu0 0.0
        %2931 = vmatpush2.msra.mxu0 0.0
        %2932 = vmatprep.subr.mxu0 0.0
        %2933 = vmatpush2.msra.mxu0 0.0
        %2934 = vmatprep.subr.mxu0 0.0
        %2935 = vmatpush2.msra.mxu0 0.0
        %2936 = vmatprep.subr.mxu0 0.0
        %2937 = vmatpush2.msra.mxu0 0.0
        %2938 = vmatprep.mubr.f32.mxu0 0.0
        %2939 = vmatmul.mubr.f32.gmra.mxu0 %v2851
        %v2940 = vpop.f32.mrf.mxu0
        %v2941 = vadd.f32 %v2843, %v2940
        %v2942 = vpop.f32.mrf.mxu0
        %v2943 = vadd.f32 %v2847, %v2942
        %2944 = vmatprep.mubr.f32.mxu0 0.0
        %2945 = vmatmul.mubr.f32.gmra.mxu0 %v2854
        %v2946 = vpop.f32.mrf.mxu0
        %v2947 = vadd.f32 %v2843, %v2946
        %v2948 = vpop.f32.mrf.mxu0
        %v2949 = vadd.f32 %v2847, %v2948
        %2950 = vmatprep.mubr.f32.mxu0 0.0
        %2951 = vmatmul.mubr.f32.gmra.mxu0 %v2857
        %v2952 = vpop.f32.mrf.mxu0
        %v2953 = vadd.f32 %v2843, %v2952
        %v2954 = vpop.f32.mrf.mxu0
        %v2955 = vadd.f32 %v2847, %v2954
        %2956 = vmatprep.mubr.f32.mxu0 0.0
        %2957 = vmatmul.mubr.f32.gmra.mxu0 %v2860
        %v2958 = vpop.f32.mrf.mxu0
        %v2959 = vadd.f32 %v2843, %v2958
        %v2960 = vpop.f32.mrf.mxu0
        %v2961 = vadd.f32 %v2847, %v2960
        %2962 = vmatprep.mubr.f32.mxu0 0.0
        %2963 = vmatmul.mubr.f32.gmra.mxu0 %v2863
        %v2964 = vpop.f32.mrf.mxu0
        %v2965 = vadd.f32 %v2843, %v2964
        %v2966 = vpop.f32.mrf.mxu0
        %v2967 = vadd.f32 %v2847, %v2966
        %2968 = vmatprep.mubr.f32.mxu0 0.0
        %2969 = vmatmul.mubr.f32.gmra.mxu0 %v2866
        %v2970 = vpop.f32.mrf.mxu0
        %v2971 = vadd.f32 %v2843, %v2970
        %v2972 = vpop.f32.mrf.mxu0
        %v2973 = vadd.f32 %v2847, %v2972
        %2974 = vmatprep.mubr.f32.mxu0 0.0
        %2975 = vmatmul.mubr.f32.gmra.mxu0 %v2869
        %v2976 = vpop.f32.mrf.mxu0
        %v2977 = vadd.f32 %v2843, %v2976
        %v2978 = vpop.f32.mrf.mxu0
        %v2979 = vadd.f32 %v2847, %v2978
        %2980 = vmatprep.mubr.f32.mxu0 0.0
        %2981 = vmatmul.mubr.f32.gmra.mxu0 %v2872
        %v2982 = vpop.f32.mrf.mxu0
        %v2983 = vadd.f32 %v2843, %v2982
        %v2984 = vpop.f32.mrf.mxu0
        %v2985 = vadd.f32 %v2847, %v2984
        %2986 = vdwg.mxu0
        %v2987 = vsel %vm724, %v2941, %v2983
        %v2988 = vsel %vm725, %v2943, %v2985
        %v2989 = vsel %vm724, %v2947, %v2977
        %v2990 = vsel %vm725, %v2949, %v2979
        %v2991 = vsel %vm724, %v2953, %v2971
        %v2992 = vsel %vm725, %v2955, %v2973
        %v2993 = vsel %vm724, %v2959, %v2965
        %v2994 = vsel %vm725, %v2961, %v2967
        %v2995 = vsel %vm724, %v2965, %v2959
        %v2996 = vsel %vm725, %v2967, %v2961
        %v2997 = vsel %vm724, %v2971, %v2953
        %v2998 = vsel %vm725, %v2973, %v2955
        %v2999 = vsel %vm724, %v2977, %v2947
        %v3000 = vsel %vm725, %v2979, %v2949
        %v3001 = vsel %vm724, %v2983, %v2941
        %v3002 = vsel %vm725, %v2985, %v2943
        %v3003 = vld [vmem:[%s9] sm:$0xff]
        %v3004 = vld [vmem:[%s9 + $0x8] sm:$0xff]
        %v3005 = vld [vmem:[%s9 + $0x10] sm:$0xff]
        %v3006 = vld [vmem:[%s9 + $0x18] sm:$0xff]
        %v3007 = vld [vmem:[%s9 + $0x20] sm:$0xff]
        %v3008 = vld [vmem:[%s9 + $0x28] sm:$0xff]
        %v3009 = vld [vmem:[%s9 + $0x30] sm:$0xff]
        %v3010 = vld [vmem:[%s9 + $0x38] sm:$0xff]
        %v3011 = vld [vmem:[%s9 + $0x40] sm:$0xff]
        %v3012 = vld [vmem:[%s9 + $0x48] sm:$0xff]
        %v3013 = vld [vmem:[%s9 + $0x50] sm:$0xff]
        %v3014 = vld [vmem:[%s9 + $0x58] sm:$0xff]
        %v3015 = vld [vmem:[%s9 + $0x60] sm:$0xff]
        %v3016 = vld [vmem:[%s9 + $0x68] sm:$0xff]
        %v3017 = vld [vmem:[%s9 + $0x70] sm:$0xff]
        %v3018 = vld [vmem:[%s9 + $0x78] sm:$0xff]
        %3019 = vmatprep.subr.mxu0 0.0
        %3020 = vmatpush1.msra.mxu0 0.0
        %3021 = vmatprep.subr.mxu0 0.0
        %3022 = vmatpush1.msra.mxu0 0.0
        %3023 = vmatprep.subr.mxu0 0.0
        %3024 = vmatpush1.msra.mxu0 0.0
        %3025 = vmatprep.subr.mxu0 0.0
        %3026 = vmatpush1.msra.mxu0 0.0
        %3027 = vmatprep.subr.mxu0 0.0
        %3028 = vmatpush1.msra.mxu0 0.0
        %3029 = vmatprep.subr.mxu0 0.0
        %3030 = vmatpush1.msra.mxu0 0.0
        %3031 = vmatprep.subr.mxu0 0.0
        %3032 = vmatpush1.msra.mxu0 0.0
        %3033 = vmatprep.subr.mxu0 0.0
        %3034 = vmatpush1.msra.mxu0 0.0
        %3035 = vmatprep.subr.mxu0 %v3018
        %3036 = vmatpush1.msra.mxu0 %v3017
        %3037 = vmatprep.subr.mxu0 %v3016
        %3038 = vmatpush1.msra.mxu0 %v3015
        %3039 = vmatprep.subr.mxu0 %v3014
        %3040 = vmatpush1.msra.mxu0 %v3013
        %3041 = vmatprep.subr.mxu0 %v3012
        %3042 = vmatpush1.msra.mxu0 %v3011
        %3043 = vmatprep.subr.mxu0 %v3010
        %3044 = vmatpush1.msra.mxu0 %v3009
        %3045 = vmatprep.subr.mxu0 %v3008
        %3046 = vmatpush1.msra.mxu0 %v3007
        %3047 = vmatprep.subr.mxu0 %v3006
        %3048 = vmatpush1.msra.mxu0 %v3005
        %3049 = vmatprep.subr.mxu0 %v3004
        %3050 = vmatpush1.msra.mxu0 %v3003
        %3051 = vmatprep.subr.mxu0 0.0
        %3052 = vmatpush2.msra.mxu0 0.0
        %3053 = vmatprep.subr.mxu0 0.0
        %3054 = vmatpush2.msra.mxu0 0.0
        %3055 = vmatprep.subr.mxu0 0.0
        %3056 = vmatpush2.msra.mxu0 0.0
        %3057 = vmatprep.subr.mxu0 0.0
        %3058 = vmatpush2.msra.mxu0 0.0
        %3059 = vmatprep.subr.mxu0 0.0
        %3060 = vmatpush2.msra.mxu0 0.0
        %3061 = vmatprep.subr.mxu0 0.0
        %3062 = vmatpush2.msra.mxu0 0.0
        %3063 = vmatprep.subr.mxu0 0.0
        %3064 = vmatpush2.msra.mxu0 0.0
        %3065 = vmatprep.subr.mxu0 0.0
        %3066 = vmatpush2.msra.mxu0 0.0
        %3067 = vmatprep.subr.mxu0 0.0
        %3068 = vmatpush2.msra.mxu0 0.0
        %3069 = vmatprep.subr.mxu0 0.0
        %3070 = vmatpush2.msra.mxu0 0.0
        %3071 = vmatprep.subr.mxu0 0.0
        %3072 = vmatpush2.msra.mxu0 0.0
        %3073 = vmatprep.subr.mxu0 0.0
        %3074 = vmatpush2.msra.mxu0 0.0
        %3075 = vmatprep.subr.mxu0 0.0
        %3076 = vmatpush2.msra.mxu0 0.0
        %3077 = vmatprep.subr.mxu0 0.0
        %3078 = vmatpush2.msra.mxu0 0.0
        %3079 = vmatprep.subr.mxu0 0.0
        %3080 = vmatpush2.msra.mxu0 0.0
        %3081 = vmatprep.subr.mxu0 0.0
        %3082 = vmatpush2.msra.mxu0 0.0
        %3083 = vmatprep.mubr.f32.mxu0 0.0
        %3084 = vmatmul.mubr.f32.gmra.mxu0 %v917
        %v3085 = vpop.f32.mrf.mxu0
        %v3086 = vadd.f32 0.0, %v3085
        %v3087 = vpop.f32.mrf.mxu0
        %v3088 = vadd.f32 0.0, %v3087
        %3089 = vdwg.mxu0
        %v3090 = vadd.f32 %v2987, %v3086
        %v3091 = vadd.f32 %v2988, %v3088
        %v3092 = vxor.u32 %v3090, 2147483648
        %v3093 = vxor.u32 %v3091, 2147483648
        %v3094 = vmul.f32 %v3092, 1.442695
        %v3095 = vpow.pop %v3094
        %v3096 = vmul.f32 %v3093, 1.442695
        %v3097 = vpow.pop %v3096
        %v3098 = vadd.f32 %v3095, 1.0
        %v3099 = vadd.f32 %v3097, 1.0
        %v3100 = vrcp.pop %v3098
        %v3101 = vmul.f32 1.0, %v3100
        %v3102 = vrcp.pop %v3099
        %v3103 = vmul.f32 1.0, %v3102
        %v3104 = vtanh.pop %v3091
        %v3105 = vmul.f32 %v3101, 0.0
        %3107 = vrot.lane.b32.xlu0 %v3104, 64
        %v3108 = vpop.permute.xlu0 %3107
        %v3110 = vmul.f32 %v3101, %v3108
        %3112 = vrot.lane.b32.xlu0 %v3110, 64
        %v3113 = vpop.permute.xlu0 %3112
        %v3115 = vadd.f32 %v3105, %v3113
        %v3116 = vtanh.pop %v3115
        %3118 = vrot.lane.b32.xlu0 %v3116, 64
        %v3119 = vpop.permute.xlu0 %3118
        %v3121 = vmul.f32 %v3103, %v3119
        %v3123 = vsel %vm915, %v3121, 0
        %3125 = vmatprep.subr.mxu0 0.0
        %3126 = vmatpush1.msra.mxu0 0.0
        %3127 = vmatprep.subr.mxu0 0.0
        %3128 = vmatpush1.msra.mxu0 0.0
        %3129 = vmatprep.subr.mxu0 0.0
        %3130 = vmatpush1.msra.mxu0 0.0
        %3131 = vmatprep.subr.mxu0 0.0
        %3132 = vmatpush1.msra.mxu0 0.0
        %3133 = vmatprep.subr.mxu0 0.0
        %3134 = vmatpush1.msra.mxu0 0.0
        %3135 = vmatprep.subr.mxu0 0.0
        %3136 = vmatpush1.msra.mxu0 0.0
        %3137 = vmatprep.subr.mxu0 0.0
        %3138 = vmatpush1.msra.mxu0 0.0
        %3139 = vmatprep.subr.mxu0 0.0
        %3140 = vmatpush1.msra.mxu0 0.0
        %3141 = vmatprep.subr.mxu0 %v3018
        %3142 = vmatpush1.msra.mxu0 %v3017
        %3143 = vmatprep.subr.mxu0 %v3016
        %3144 = vmatpush1.msra.mxu0 %v3015
        %3145 = vmatprep.subr.mxu0 %v3014
        %3146 = vmatpush1.msra.mxu0 %v3013
        %3147 = vmatprep.subr.mxu0 %v3012
        %3148 = vmatpush1.msra.mxu0 %v3011
        %3149 = vmatprep.subr.mxu0 %v3010
        %3150 = vmatpush1.msra.mxu0 %v3009
        %3151 = vmatprep.subr.mxu0 %v3008
        %3152 = vmatpush1.msra.mxu0 %v3007
        %3153 = vmatprep.subr.mxu0 %v3006
        %3154 = vmatpush1.msra.mxu0 %v3005
        %3155 = vmatprep.subr.mxu0 %v3004
        %3156 = vmatpush1.msra.mxu0 %v3003
        %3157 = vmatprep.subr.mxu0 0.0
        %3158 = vmatpush2.msra.mxu0 0.0
        %3159 = vmatprep.subr.mxu0 0.0
        %3160 = vmatpush2.msra.mxu0 0.0
        %3161 = vmatprep.subr.mxu0 0.0
        %3162 = vmatpush2.msra.mxu0 0.0
        %3163 = vmatprep.subr.mxu0 0.0
        %3164 = vmatpush2.msra.mxu0 0.0
        %3165 = vmatprep.subr.mxu0 0.0
        %3166 = vmatpush2.msra.mxu0 0.0
        %3167 = vmatprep.subr.mxu0 0.0
        %3168 = vmatpush2.msra.mxu0 0.0
        %3169 = vmatprep.subr.mxu0 0.0
        %3170 = vmatpush2.msra.mxu0 0.0
        %3171 = vmatprep.subr.mxu0 0.0
        %3172 = vmatpush2.msra.mxu0 0.0
        %3173 = vmatprep.subr.mxu0 0.0
        %3174 = vmatpush2.msra.mxu0 0.0
        %3175 = vmatprep.subr.mxu0 0.0
        %3176 = vmatpush2.msra.mxu0 0.0
        %3177 = vmatprep.subr.mxu0 0.0
        %3178 = vmatpush2.msra.mxu0 0.0
        %3179 = vmatprep.subr.mxu0 0.0
        %3180 = vmatpush2.msra.mxu0 0.0
        %3181 = vmatprep.subr.mxu0 0.0
        %3182 = vmatpush2.msra.mxu0 0.0
        %3183 = vmatprep.subr.mxu0 0.0
        %3184 = vmatpush2.msra.mxu0 0.0
        %3185 = vmatprep.subr.mxu0 0.0
        %3186 = vmatpush2.msra.mxu0 0.0
        %3187 = vmatprep.subr.mxu0 0.0
        %3188 = vmatpush2.msra.mxu0 0.0
        %3189 = vmatprep.mubr.f32.mxu0 0.0
        %3190 = vmatmul.mubr.f32.gmra.mxu0 %v3123
        %v3191 = vpop.f32.mrf.mxu0
        %v3192 = vadd.f32 0.0, %v3191
        %v3193 = vpop.f32.mrf.mxu0
        %v3194 = vadd.f32 0.0, %v3193
        %3195 = vdwg.mxu0
        %v3196 = vadd.f32 %v2989, %v3192
        %v3197 = vadd.f32 %v2990, %v3194
        %v3198 = vxor.u32 %v3196, 2147483648
        %v3199 = vxor.u32 %v3197, 2147483648
        %v3200 = vmul.f32 %v3198, 1.442695
        %v3201 = vpow.pop %v3200
        %v3202 = vmul.f32 %v3199, 1.442695
        %v3203 = vpow.pop %v3202
        %v3204 = vadd.f32 %v3201, 1.0
        %v3205 = vadd.f32 %v3203, 1.0
        %v3206 = vrcp.pop %v3204
        %v3207 = vmul.f32 1.0, %v3206
        %v3208 = vrcp.pop %v3205
        %v3209 = vmul.f32 1.0, %v3208
        %v3210 = vtanh.pop %v3197
        %v3211 = vmul.f32 %v3207, %v3115
        %3213 = vrot.lane.b32.xlu0 %v3210, 64
        %v3214 = vpop.permute.xlu0 %3213
        %v3216 = vmul.f32 %v3207, %v3214
        %3218 = vrot.lane.b32.xlu0 %v3216, 64
        %v3219 = vpop.permute.xlu0 %3218
        %v3221 = vadd.f32 %v3211, %v3219
        %v3222 = vtanh.pop %v3221
        %3224 = vrot.lane.b32.xlu0 %v3222, 64
        %v3225 = vpop.permute.xlu0 %3224
        %v3227 = vmul.f32 %v3209, %v3225
        %v3229 = vsel %vm915, %v3227, 0
        %3231 = vmatprep.subr.mxu0 0.0
        %3232 = vmatpush1.msra.mxu0 0.0
        %3233 = vmatprep.subr.mxu0 0.0
        %3234 = vmatpush1.msra.mxu0 0.0
        %3235 = vmatprep.subr.mxu0 0.0
        %3236 = vmatpush1.msra.mxu0 0.0
        %3237 = vmatprep.subr.mxu0 0.0
        %3238 = vmatpush1.msra.mxu0 0.0
        %3239 = vmatprep.subr.mxu0 0.0
        %3240 = vmatpush1.msra.mxu0 0.0
        %3241 = vmatprep.subr.mxu0 0.0
        %3242 = vmatpush1.msra.mxu0 0.0
        %3243 = vmatprep.subr.mxu0 0.0
        %3244 = vmatpush1.msra.mxu0 0.0
        %3245 = vmatprep.subr.mxu0 0.0
        %3246 = vmatpush1.msra.mxu0 0.0
        %3247 = vmatprep.subr.mxu0 %v3018
        %3248 = vmatpush1.msra.mxu0 %v3017
        %3249 = vmatprep.subr.mxu0 %v3016
        %3250 = vmatpush1.msra.mxu0 %v3015
        %3251 = vmatprep.subr.mxu0 %v3014
        %3252 = vmatpush1.msra.mxu0 %v3013
        %3253 = vmatprep.subr.mxu0 %v3012
        %3254 = vmatpush1.msra.mxu0 %v3011
        %3255 = vmatprep.subr.mxu0 %v3010
        %3256 = vmatpush1.msra.mxu0 %v3009
        %3257 = vmatprep.subr.mxu0 %v3008
        %3258 = vmatpush1.msra.mxu0 %v3007
        %3259 = vmatprep.subr.mxu0 %v3006
        %3260 = vmatpush1.msra.mxu0 %v3005
        %3261 = vmatprep.subr.mxu0 %v3004
        %3262 = vmatpush1.msra.mxu0 %v3003
        %3263 = vmatprep.subr.mxu0 0.0
        %3264 = vmatpush2.msra.mxu0 0.0
        %3265 = vmatprep.subr.mxu0 0.0
        %3266 = vmatpush2.msra.mxu0 0.0
        %3267 = vmatprep.subr.mxu0 0.0
        %3268 = vmatpush2.msra.mxu0 0.0
        %3269 = vmatprep.subr.mxu0 0.0
        %3270 = vmatpush2.msra.mxu0 0.0
        %3271 = vmatprep.subr.mxu0 0.0
        %3272 = vmatpush2.msra.mxu0 0.0
        %3273 = vmatprep.subr.mxu0 0.0
        %3274 = vmatpush2.msra.mxu0 0.0
        %3275 = vmatprep.subr.mxu0 0.0
        %3276 = vmatpush2.msra.mxu0 0.0
        %3277 = vmatprep.subr.mxu0 0.0
        %3278 = vmatpush2.msra.mxu0 0.0
        %3279 = vmatprep.subr.mxu0 0.0
        %3280 = vmatpush2.msra.mxu0 0.0
        %3281 = vmatprep.subr.mxu0 0.0
        %3282 = vmatpush2.msra.mxu0 0.0
        %3283 = vmatprep.subr.mxu0 0.0
        %3284 = vmatpush2.msra.mxu0 0.0
        %3285 = vmatprep.subr.mxu0 0.0
        %3286 = vmatpush2.msra.mxu0 0.0
        %3287 = vmatprep.subr.mxu0 0.0
        %3288 = vmatpush2.msra.mxu0 0.0
        %3289 = vmatprep.subr.mxu0 0.0
        %3290 = vmatpush2.msra.mxu0 0.0
        %3291 = vmatprep.subr.mxu0 0.0
        %3292 = vmatpush2.msra.mxu0 0.0
        %3293 = vmatprep.subr.mxu0 0.0
        %3294 = vmatpush2.msra.mxu0 0.0
        %3295 = vmatprep.mubr.f32.mxu0 0.0
        %3296 = vmatmul.mubr.f32.gmra.mxu0 %v3229
        %v3297 = vpop.f32.mrf.mxu0
        %v3298 = vadd.f32 0.0, %v3297
        %v3299 = vpop.f32.mrf.mxu0
        %v3300 = vadd.f32 0.0, %v3299
        %3301 = vdwg.mxu0
        %v3302 = vadd.f32 %v2991, %v3298
        %v3303 = vadd.f32 %v2992, %v3300
        %v3304 = vxor.u32 %v3302, 2147483648
        %v3305 = vxor.u32 %v3303, 2147483648
        %v3306 = vmul.f32 %v3304, 1.442695
        %v3307 = vpow.pop %v3306
        %v3308 = vmul.f32 %v3305, 1.442695
        %v3309 = vpow.pop %v3308
        %v3310 = vadd.f32 %v3307, 1.0
        %v3311 = vadd.f32 %v3309, 1.0
        %v3312 = vrcp.pop %v3310
        %v3313 = vmul.f32 1.0, %v3312
        %v3314 = vrcp.pop %v3311
        %v3315 = vmul.f32 1.0, %v3314
        %v3316 = vtanh.pop %v3303
        %v3317 = vmul.f32 %v3313, %v3221
        %3319 = vrot.lane.b32.xlu0 %v3316, 64
        %v3320 = vpop.permute.xlu0 %3319
        %v3322 = vmul.f32 %v3313, %v3320
        %3324 = vrot.lane.b32.xlu0 %v3322, 64
        %v3325 = vpop.permute.xlu0 %3324
        %v3327 = vadd.f32 %v3317, %v3325
        %v3328 = vtanh.pop %v3327
        %3330 = vrot.lane.b32.xlu0 %v3328, 64
        %v3331 = vpop.permute.xlu0 %3330
        %v3333 = vmul.f32 %v3315, %v3331
        %v3335 = vsel %vm915, %v3333, 0
        %3337 = vmatprep.subr.mxu0 0.0
        %3338 = vmatpush1.msra.mxu0 0.0
        %3339 = vmatprep.subr.mxu0 0.0
        %3340 = vmatpush1.msra.mxu0 0.0
        %3341 = vmatprep.subr.mxu0 0.0
        %3342 = vmatpush1.msra.mxu0 0.0
        %3343 = vmatprep.subr.mxu0 0.0
        %3344 = vmatpush1.msra.mxu0 0.0
        %3345 = vmatprep.subr.mxu0 0.0
        %3346 = vmatpush1.msra.mxu0 0.0
        %3347 = vmatprep.subr.mxu0 0.0
        %3348 = vmatpush1.msra.mxu0 0.0
        %3349 = vmatprep.subr.mxu0 0.0
        %3350 = vmatpush1.msra.mxu0 0.0
        %3351 = vmatprep.subr.mxu0 0.0
        %3352 = vmatpush1.msra.mxu0 0.0
        %3353 = vmatprep.subr.mxu0 %v3018
        %3354 = vmatpush1.msra.mxu0 %v3017
        %3355 = vmatprep.subr.mxu0 %v3016
        %3356 = vmatpush1.msra.mxu0 %v3015
        %3357 = vmatprep.subr.mxu0 %v3014
        %3358 = vmatpush1.msra.mxu0 %v3013
        %3359 = vmatprep.subr.mxu0 %v3012
        %3360 = vmatpush1.msra.mxu0 %v3011
        %3361 = vmatprep.subr.mxu0 %v3010
        %3362 = vmatpush1.msra.mxu0 %v3009
        %3363 = vmatprep.subr.mxu0 %v3008
        %3364 = vmatpush1.msra.mxu0 %v3007
        %3365 = vmatprep.subr.mxu0 %v3006
        %3366 = vmatpush1.msra.mxu0 %v3005
        %3367 = vmatprep.subr.mxu0 %v3004
        %3368 = vmatpush1.msra.mxu0 %v3003
        %3369 = vmatprep.subr.mxu0 0.0
        %3370 = vmatpush2.msra.mxu0 0.0
        %3371 = vmatprep.subr.mxu0 0.0
        %3372 = vmatpush2.msra.mxu0 0.0
        %3373 = vmatprep.subr.mxu0 0.0
        %3374 = vmatpush2.msra.mxu0 0.0
        %3375 = vmatprep.subr.mxu0 0.0
        %3376 = vmatpush2.msra.mxu0 0.0
        %3377 = vmatprep.subr.mxu0 0.0
        %3378 = vmatpush2.msra.mxu0 0.0
        %3379 = vmatprep.subr.mxu0 0.0
        %3380 = vmatpush2.msra.mxu0 0.0
        %3381 = vmatprep.subr.mxu0 0.0
        %3382 = vmatpush2.msra.mxu0 0.0
        %3383 = vmatprep.subr.mxu0 0.0
        %3384 = vmatpush2.msra.mxu0 0.0
        %3385 = vmatprep.subr.mxu0 0.0
        %3386 = vmatpush2.msra.mxu0 0.0
        %3387 = vmatprep.subr.mxu0 0.0
        %3388 = vmatpush2.msra.mxu0 0.0
        %3389 = vmatprep.subr.mxu0 0.0
        %3390 = vmatpush2.msra.mxu0 0.0
        %3391 = vmatprep.subr.mxu0 0.0
        %3392 = vmatpush2.msra.mxu0 0.0
        %3393 = vmatprep.subr.mxu0 0.0
        %3394 = vmatpush2.msra.mxu0 0.0
        %3395 = vmatprep.subr.mxu0 0.0
        %3396 = vmatpush2.msra.mxu0 0.0
        %3397 = vmatprep.subr.mxu0 0.0
        %3398 = vmatpush2.msra.mxu0 0.0
        %3399 = vmatprep.subr.mxu0 0.0
        %3400 = vmatpush2.msra.mxu0 0.0
        %3401 = vmatprep.mubr.f32.mxu0 0.0
        %3402 = vmatmul.mubr.f32.gmra.mxu0 %v3335
        %v3403 = vpop.f32.mrf.mxu0
        %v3404 = vadd.f32 0.0, %v3403
        %v3405 = vpop.f32.mrf.mxu0
        %v3406 = vadd.f32 0.0, %v3405
        %3407 = vdwg.mxu0
        %v3408 = vadd.f32 %v2993, %v3404
        %v3409 = vadd.f32 %v2994, %v3406
        %v3410 = vxor.u32 %v3408, 2147483648
        %v3411 = vxor.u32 %v3409, 2147483648
        %v3412 = vmul.f32 %v3410, 1.442695
        %v3413 = vpow.pop %v3412
        %v3414 = vmul.f32 %v3411, 1.442695
        %v3415 = vpow.pop %v3414
        %v3416 = vadd.f32 %v3413, 1.0
        %v3417 = vadd.f32 %v3415, 1.0
        %v3418 = vrcp.pop %v3416
        %v3419 = vmul.f32 1.0, %v3418
        %v3420 = vrcp.pop %v3417
        %v3421 = vmul.f32 1.0, %v3420
        %v3422 = vtanh.pop %v3409
        %v3423 = vmul.f32 %v3419, %v3327
        %3425 = vrot.lane.b32.xlu0 %v3422, 64
        %v3426 = vpop.permute.xlu0 %3425
        %v3428 = vmul.f32 %v3419, %v3426
        %3430 = vrot.lane.b32.xlu0 %v3428, 64
        %v3431 = vpop.permute.xlu0 %3430
        %v3433 = vadd.f32 %v3423, %v3431
        %v3434 = vtanh.pop %v3433
        %3436 = vrot.lane.b32.xlu0 %v3434, 64
        %v3437 = vpop.permute.xlu0 %3436
        %v3439 = vmul.f32 %v3421, %v3437
        %v3441 = vsel %vm915, %v3439, 0
        %3443 = vmatprep.subr.mxu0 0.0
        %3444 = vmatpush1.msra.mxu0 0.0
        %3445 = vmatprep.subr.mxu0 0.0
        %3446 = vmatpush1.msra.mxu0 0.0
        %3447 = vmatprep.subr.mxu0 0.0
        %3448 = vmatpush1.msra.mxu0 0.0
        %3449 = vmatprep.subr.mxu0 0.0
        %3450 = vmatpush1.msra.mxu0 0.0
        %3451 = vmatprep.subr.mxu0 0.0
        %3452 = vmatpush1.msra.mxu0 0.0
        %3453 = vmatprep.subr.mxu0 0.0
        %3454 = vmatpush1.msra.mxu0 0.0
        %3455 = vmatprep.subr.mxu0 0.0
        %3456 = vmatpush1.msra.mxu0 0.0
        %3457 = vmatprep.subr.mxu0 0.0
        %3458 = vmatpush1.msra.mxu0 0.0
        %3459 = vmatprep.subr.mxu0 %v3018
        %3460 = vmatpush1.msra.mxu0 %v3017
        %3461 = vmatprep.subr.mxu0 %v3016
        %3462 = vmatpush1.msra.mxu0 %v3015
        %3463 = vmatprep.subr.mxu0 %v3014
        %3464 = vmatpush1.msra.mxu0 %v3013
        %3465 = vmatprep.subr.mxu0 %v3012
        %3466 = vmatpush1.msra.mxu0 %v3011
        %3467 = vmatprep.subr.mxu0 %v3010
        %3468 = vmatpush1.msra.mxu0 %v3009
        %3469 = vmatprep.subr.mxu0 %v3008
        %3470 = vmatpush1.msra.mxu0 %v3007
        %3471 = vmatprep.subr.mxu0 %v3006
        %3472 = vmatpush1.msra.mxu0 %v3005
        %3473 = vmatprep.subr.mxu0 %v3004
        %3474 = vmatpush1.msra.mxu0 %v3003
        %3475 = vmatprep.subr.mxu0 0.0
        %3476 = vmatpush2.msra.mxu0 0.0
        %3477 = vmatprep.subr.mxu0 0.0
        %3478 = vmatpush2.msra.mxu0 0.0
        %3479 = vmatprep.subr.mxu0 0.0
        %3480 = vmatpush2.msra.mxu0 0.0
        %3481 = vmatprep.subr.mxu0 0.0
        %3482 = vmatpush2.msra.mxu0 0.0
        %3483 = vmatprep.subr.mxu0 0.0
        %3484 = vmatpush2.msra.mxu0 0.0
        %3485 = vmatprep.subr.mxu0 0.0
        %3486 = vmatpush2.msra.mxu0 0.0
        %3487 = vmatprep.subr.mxu0 0.0
        %3488 = vmatpush2.msra.mxu0 0.0
        %3489 = vmatprep.subr.mxu0 0.0
        %3490 = vmatpush2.msra.mxu0 0.0
        %3491 = vmatprep.subr.mxu0 0.0
        %3492 = vmatpush2.msra.mxu0 0.0
        %3493 = vmatprep.subr.mxu0 0.0
        %3494 = vmatpush2.msra.mxu0 0.0
        %3495 = vmatprep.subr.mxu0 0.0
        %3496 = vmatpush2.msra.mxu0 0.0
        %3497 = vmatprep.subr.mxu0 0.0
        %3498 = vmatpush2.msra.mxu0 0.0
        %3499 = vmatprep.subr.mxu0 0.0
        %3500 = vmatpush2.msra.mxu0 0.0
        %3501 = vmatprep.subr.mxu0 0.0
        %3502 = vmatpush2.msra.mxu0 0.0
        %3503 = vmatprep.subr.mxu0 0.0
        %3504 = vmatpush2.msra.mxu0 0.0
        %3505 = vmatprep.subr.mxu0 0.0
        %3506 = vmatpush2.msra.mxu0 0.0
        %3507 = vmatprep.mubr.f32.mxu0 0.0
        %3508 = vmatmul.mubr.f32.gmra.mxu0 %v3441
        %v3509 = vpop.f32.mrf.mxu0
        %v3510 = vadd.f32 0.0, %v3509
        %v3511 = vpop.f32.mrf.mxu0
        %v3512 = vadd.f32 0.0, %v3511
        %3513 = vdwg.mxu0
        %v3514 = vadd.f32 %v2995, %v3510
        %v3515 = vadd.f32 %v2996, %v3512
        %v3516 = vxor.u32 %v3514, 2147483648
        %v3517 = vxor.u32 %v3515, 2147483648
        %v3518 = vmul.f32 %v3516, 1.442695
        %v3519 = vpow.pop %v3518
        %v3520 = vmul.f32 %v3517, 1.442695
        %v3521 = vpow.pop %v3520
        %v3522 = vadd.f32 %v3519, 1.0
        %v3523 = vadd.f32 %v3521, 1.0
        %v3524 = vrcp.pop %v3522
        %v3525 = vmul.f32 1.0, %v3524
        %v3526 = vrcp.pop %v3523
        %v3527 = vmul.f32 1.0, %v3526
        %v3528 = vtanh.pop %v3515
        %v3529 = vmul.f32 %v3525, %v3433
        %3531 = vrot.lane.b32.xlu0 %v3528, 64
        %v3532 = vpop.permute.xlu0 %3531
        %v3534 = vmul.f32 %v3525, %v3532
        %3536 = vrot.lane.b32.xlu0 %v3534, 64
        %v3537 = vpop.permute.xlu0 %3536
        %v3539 = vadd.f32 %v3529, %v3537
        %v3540 = vtanh.pop %v3539
        %3542 = vrot.lane.b32.xlu0 %v3540, 64
        %v3543 = vpop.permute.xlu0 %3542
        %v3545 = vmul.f32 %v3527, %v3543
        %v3547 = vsel %vm915, %v3545, 0
        %3549 = vmatprep.subr.mxu0 0.0
        %3550 = vmatpush1.msra.mxu0 0.0
        %3551 = vmatprep.subr.mxu0 0.0
        %3552 = vmatpush1.msra.mxu0 0.0
        %3553 = vmatprep.subr.mxu0 0.0
        %3554 = vmatpush1.msra.mxu0 0.0
        %3555 = vmatprep.subr.mxu0 0.0
        %3556 = vmatpush1.msra.mxu0 0.0
        %3557 = vmatprep.subr.mxu0 0.0
        %3558 = vmatpush1.msra.mxu0 0.0
        %3559 = vmatprep.subr.mxu0 0.0
        %3560 = vmatpush1.msra.mxu0 0.0
        %3561 = vmatprep.subr.mxu0 0.0
        %3562 = vmatpush1.msra.mxu0 0.0
        %3563 = vmatprep.subr.mxu0 0.0
        %3564 = vmatpush1.msra.mxu0 0.0
        %3565 = vmatprep.subr.mxu0 %v3018
        %3566 = vmatpush1.msra.mxu0 %v3017
        %3567 = vmatprep.subr.mxu0 %v3016
        %3568 = vmatpush1.msra.mxu0 %v3015
        %3569 = vmatprep.subr.mxu0 %v3014
        %3570 = vmatpush1.msra.mxu0 %v3013
        %3571 = vmatprep.subr.mxu0 %v3012
        %3572 = vmatpush1.msra.mxu0 %v3011
        %3573 = vmatprep.subr.mxu0 %v3010
        %3574 = vmatpush1.msra.mxu0 %v3009
        %3575 = vmatprep.subr.mxu0 %v3008
        %3576 = vmatpush1.msra.mxu0 %v3007
        %3577 = vmatprep.subr.mxu0 %v3006
        %3578 = vmatpush1.msra.mxu0 %v3005
        %3579 = vmatprep.subr.mxu0 %v3004
        %3580 = vmatpush1.msra.mxu0 %v3003
        %3581 = vmatprep.subr.mxu0 0.0
        %3582 = vmatpush2.msra.mxu0 0.0
        %3583 = vmatprep.subr.mxu0 0.0
        %3584 = vmatpush2.msra.mxu0 0.0
        %3585 = vmatprep.subr.mxu0 0.0
        %3586 = vmatpush2.msra.mxu0 0.0
        %3587 = vmatprep.subr.mxu0 0.0
        %3588 = vmatpush2.msra.mxu0 0.0
        %3589 = vmatprep.subr.mxu0 0.0
        %3590 = vmatpush2.msra.mxu0 0.0
        %3591 = vmatprep.subr.mxu0 0.0
        %3592 = vmatpush2.msra.mxu0 0.0
        %3593 = vmatprep.subr.mxu0 0.0
        %3594 = vmatpush2.msra.mxu0 0.0
        %3595 = vmatprep.subr.mxu0 0.0
        %3596 = vmatpush2.msra.mxu0 0.0
        %3597 = vmatprep.subr.mxu0 0.0
        %3598 = vmatpush2.msra.mxu0 0.0
        %3599 = vmatprep.subr.mxu0 0.0
        %3600 = vmatpush2.msra.mxu0 0.0
        %3601 = vmatprep.subr.mxu0 0.0
        %3602 = vmatpush2.msra.mxu0 0.0
        %3603 = vmatprep.subr.mxu0 0.0
        %3604 = vmatpush2.msra.mxu0 0.0
        %3605 = vmatprep.subr.mxu0 0.0
        %3606 = vmatpush2.msra.mxu0 0.0
        %3607 = vmatprep.subr.mxu0 0.0
        %3608 = vmatpush2.msra.mxu0 0.0
        %3609 = vmatprep.subr.mxu0 0.0
        %3610 = vmatpush2.msra.mxu0 0.0
        %3611 = vmatprep.subr.mxu0 0.0
        %3612 = vmatpush2.msra.mxu0 0.0
        %3613 = vmatprep.mubr.f32.mxu0 0.0
        %3614 = vmatmul.mubr.f32.gmra.mxu0 %v3547
        %v3615 = vpop.f32.mrf.mxu0
        %v3616 = vadd.f32 0.0, %v3615
        %v3617 = vpop.f32.mrf.mxu0
        %v3618 = vadd.f32 0.0, %v3617
        %3619 = vdwg.mxu0
        %v3620 = vadd.f32 %v2997, %v3616
        %v3621 = vadd.f32 %v2998, %v3618
        %v3622 = vxor.u32 %v3620, 2147483648
        %v3623 = vxor.u32 %v3621, 2147483648
        %v3624 = vmul.f32 %v3622, 1.442695
        %v3625 = vpow.pop %v3624
        %v3626 = vmul.f32 %v3623, 1.442695
        %v3627 = vpow.pop %v3626
        %v3628 = vadd.f32 %v3625, 1.0
        %v3629 = vadd.f32 %v3627, 1.0
        %v3630 = vrcp.pop %v3628
        %v3631 = vmul.f32 1.0, %v3630
        %v3632 = vrcp.pop %v3629
        %v3633 = vmul.f32 1.0, %v3632
        %v3634 = vtanh.pop %v3621
        %v3635 = vmul.f32 %v3631, %v3539
        %3637 = vrot.lane.b32.xlu0 %v3634, 64
        %v3638 = vpop.permute.xlu0 %3637
        %v3640 = vmul.f32 %v3631, %v3638
        %3642 = vrot.lane.b32.xlu0 %v3640, 64
        %v3643 = vpop.permute.xlu0 %3642
        %v3645 = vadd.f32 %v3635, %v3643
        %v3646 = vtanh.pop %v3645
        %3648 = vrot.lane.b32.xlu0 %v3646, 64
        %v3649 = vpop.permute.xlu0 %3648
        %v3651 = vmul.f32 %v3633, %v3649
        %v3653 = vsel %vm915, %v3651, 0
        %3655 = vmatprep.subr.mxu0 0.0
        %3656 = vmatpush1.msra.mxu0 0.0
        %3657 = vmatprep.subr.mxu0 0.0
        %3658 = vmatpush1.msra.mxu0 0.0
        %3659 = vmatprep.subr.mxu0 0.0
        %3660 = vmatpush1.msra.mxu0 0.0
        %3661 = vmatprep.subr.mxu0 0.0
        %3662 = vmatpush1.msra.mxu0 0.0
        %3663 = vmatprep.subr.mxu0 0.0
        %3664 = vmatpush1.msra.mxu0 0.0
        %3665 = vmatprep.subr.mxu0 0.0
        %3666 = vmatpush1.msra.mxu0 0.0
        %3667 = vmatprep.subr.mxu0 0.0
        %3668 = vmatpush1.msra.mxu0 0.0
        %3669 = vmatprep.subr.mxu0 0.0
        %3670 = vmatpush1.msra.mxu0 0.0
        %3671 = vmatprep.subr.mxu0 %v3018
        %3672 = vmatpush1.msra.mxu0 %v3017
        %3673 = vmatprep.subr.mxu0 %v3016
        %3674 = vmatpush1.msra.mxu0 %v3015
        %3675 = vmatprep.subr.mxu0 %v3014
        %3676 = vmatpush1.msra.mxu0 %v3013
        %3677 = vmatprep.subr.mxu0 %v3012
        %3678 = vmatpush1.msra.mxu0 %v3011
        %3679 = vmatprep.subr.mxu0 %v3010
        %3680 = vmatpush1.msra.mxu0 %v3009
        %3681 = vmatprep.subr.mxu0 %v3008
        %3682 = vmatpush1.msra.mxu0 %v3007
        %3683 = vmatprep.subr.mxu0 %v3006
        %3684 = vmatpush1.msra.mxu0 %v3005
        %3685 = vmatprep.subr.mxu0 %v3004
        %3686 = vmatpush1.msra.mxu0 %v3003
        %3687 = vmatprep.subr.mxu0 0.0
        %3688 = vmatpush2.msra.mxu0 0.0
        %3689 = vmatprep.subr.mxu0 0.0
        %3690 = vmatpush2.msra.mxu0 0.0
        %3691 = vmatprep.subr.mxu0 0.0
        %3692 = vmatpush2.msra.mxu0 0.0
        %3693 = vmatprep.subr.mxu0 0.0
        %3694 = vmatpush2.msra.mxu0 0.0
        %3695 = vmatprep.subr.mxu0 0.0
        %3696 = vmatpush2.msra.mxu0 0.0
        %3697 = vmatprep.subr.mxu0 0.0
        %3698 = vmatpush2.msra.mxu0 0.0
        %3699 = vmatprep.subr.mxu0 0.0
        %3700 = vmatpush2.msra.mxu0 0.0
        %3701 = vmatprep.subr.mxu0 0.0
        %3702 = vmatpush2.msra.mxu0 0.0
        %3703 = vmatprep.subr.mxu0 0.0
        %3704 = vmatpush2.msra.mxu0 0.0
        %3705 = vmatprep.subr.mxu0 0.0
        %3706 = vmatpush2.msra.mxu0 0.0
        %3707 = vmatprep.subr.mxu0 0.0
        %3708 = vmatpush2.msra.mxu0 0.0
        %3709 = vmatprep.subr.mxu0 0.0
        %3710 = vmatpush2.msra.mxu0 0.0
        %3711 = vmatprep.subr.mxu0 0.0
        %3712 = vmatpush2.msra.mxu0 0.0
        %3713 = vmatprep.subr.mxu0 0.0
        %3714 = vmatpush2.msra.mxu0 0.0
        %3715 = vmatprep.subr.mxu0 0.0
        %3716 = vmatpush2.msra.mxu0 0.0
        %3717 = vmatprep.subr.mxu0 0.0
        %3718 = vmatpush2.msra.mxu0 0.0
        %3719 = vmatprep.mubr.f32.mxu0 0.0
        %3720 = vmatmul.mubr.f32.gmra.mxu0 %v3653
        %v3721 = vpop.f32.mrf.mxu0
        %v3722 = vadd.f32 0.0, %v3721
        %v3723 = vpop.f32.mrf.mxu0
        %v3724 = vadd.f32 0.0, %v3723
        %3725 = vdwg.mxu0
        %v3726 = vadd.f32 %v2999, %v3722
        %v3727 = vadd.f32 %v3000, %v3724
        %v3728 = vxor.u32 %v3726, 2147483648
        %v3729 = vxor.u32 %v3727, 2147483648
        %v3730 = vmul.f32 %v3728, 1.442695
        %v3731 = vpow.pop %v3730
        %v3732 = vmul.f32 %v3729, 1.442695
        %v3733 = vpow.pop %v3732
        %v3734 = vadd.f32 %v3731, 1.0
        %v3735 = vadd.f32 %v3733, 1.0
        %v3736 = vrcp.pop %v3734
        %v3737 = vmul.f32 1.0, %v3736
        %v3738 = vrcp.pop %v3735
        %v3739 = vmul.f32 1.0, %v3738
        %v3740 = vtanh.pop %v3727
        %v3741 = vmul.f32 %v3737, %v3645
        %3743 = vrot.lane.b32.xlu0 %v3740, 64
        %v3744 = vpop.permute.xlu0 %3743
        %v3746 = vmul.f32 %v3737, %v3744
        %3748 = vrot.lane.b32.xlu0 %v3746, 64
        %v3749 = vpop.permute.xlu0 %3748
        %v3751 = vadd.f32 %v3741, %v3749
        %v3752 = vtanh.pop %v3751
        %3754 = vrot.lane.b32.xlu0 %v3752, 64
        %v3755 = vpop.permute.xlu0 %3754
        %v3757 = vmul.f32 %v3739, %v3755
        %v3759 = vsel %vm915, %v3757, 0
        %3761 = vmatprep.subr.mxu0 0.0
        %3762 = vmatpush1.msra.mxu0 0.0
        %3763 = vmatprep.subr.mxu0 0.0
        %3764 = vmatpush1.msra.mxu0 0.0
        %3765 = vmatprep.subr.mxu0 0.0
        %3766 = vmatpush1.msra.mxu0 0.0
        %3767 = vmatprep.subr.mxu0 0.0
        %3768 = vmatpush1.msra.mxu0 0.0
        %3769 = vmatprep.subr.mxu0 0.0
        %3770 = vmatpush1.msra.mxu0 0.0
        %3771 = vmatprep.subr.mxu0 0.0
        %3772 = vmatpush1.msra.mxu0 0.0
        %3773 = vmatprep.subr.mxu0 0.0
        %3774 = vmatpush1.msra.mxu0 0.0
        %3775 = vmatprep.subr.mxu0 0.0
        %3776 = vmatpush1.msra.mxu0 0.0
        %3777 = vmatprep.subr.mxu0 %v3018
        %3778 = vmatpush1.msra.mxu0 %v3017
        %3779 = vmatprep.subr.mxu0 %v3016
        %3780 = vmatpush1.msra.mxu0 %v3015
        %3781 = vmatprep.subr.mxu0 %v3014
        %3782 = vmatpush1.msra.mxu0 %v3013
        %3783 = vmatprep.subr.mxu0 %v3012
        %3784 = vmatpush1.msra.mxu0 %v3011
        %3785 = vmatprep.subr.mxu0 %v3010
        %3786 = vmatpush1.msra.mxu0 %v3009
        %3787 = vmatprep.subr.mxu0 %v3008
        %3788 = vmatpush1.msra.mxu0 %v3007
        %3789 = vmatprep.subr.mxu0 %v3006
        %3790 = vmatpush1.msra.mxu0 %v3005
        %3791 = vmatprep.subr.mxu0 %v3004
        %3792 = vmatpush1.msra.mxu0 %v3003
        %3793 = vmatprep.subr.mxu0 0.0
        %3794 = vmatpush2.msra.mxu0 0.0
        %3795 = vmatprep.subr.mxu0 0.0
        %3796 = vmatpush2.msra.mxu0 0.0
        %3797 = vmatprep.subr.mxu0 0.0
        %3798 = vmatpush2.msra.mxu0 0.0
        %3799 = vmatprep.subr.mxu0 0.0
        %3800 = vmatpush2.msra.mxu0 0.0
        %3801 = vmatprep.subr.mxu0 0.0
        %3802 = vmatpush2.msra.mxu0 0.0
        %3803 = vmatprep.subr.mxu0 0.0
        %3804 = vmatpush2.msra.mxu0 0.0
        %3805 = vmatprep.subr.mxu0 0.0
        %3806 = vmatpush2.msra.mxu0 0.0
        %3807 = vmatprep.subr.mxu0 0.0
        %3808 = vmatpush2.msra.mxu0 0.0
        %3809 = vmatprep.subr.mxu0 0.0
        %3810 = vmatpush2.msra.mxu0 0.0
        %3811 = vmatprep.subr.mxu0 0.0
        %3812 = vmatpush2.msra.mxu0 0.0
        %3813 = vmatprep.subr.mxu0 0.0
        %3814 = vmatpush2.msra.mxu0 0.0
        %3815 = vmatprep.subr.mxu0 0.0
        %3816 = vmatpush2.msra.mxu0 0.0
        %3817 = vmatprep.subr.mxu0 0.0
        %3818 = vmatpush2.msra.mxu0 0.0
        %3819 = vmatprep.subr.mxu0 0.0
        %3820 = vmatpush2.msra.mxu0 0.0
        %3821 = vmatprep.subr.mxu0 0.0
        %3822 = vmatpush2.msra.mxu0 0.0
        %3823 = vmatprep.subr.mxu0 0.0
        %3824 = vmatpush2.msra.mxu0 0.0
        %3825 = vmatprep.mubr.f32.mxu0 0.0
        %3826 = vmatmul.mubr.f32.gmra.mxu0 %v3759
        %v3827 = vpop.f32.mrf.mxu0
        %v3828 = vadd.f32 0.0, %v3827
        %v3829 = vpop.f32.mrf.mxu0
        %v3830 = vadd.f32 0.0, %v3829
        %3831 = vdwg.mxu0
        %v3832 = vadd.f32 %v3001, %v3828
        %v3833 = vadd.f32 %v3002, %v3830
        %v3834 = vxor.u32 %v3832, 2147483648
        %v3835 = vxor.u32 %v3833, 2147483648
        %v3836 = vmul.f32 %v3834, 1.442695
        %v3837 = vpow.pop %v3836
        %v3838 = vmul.f32 %v3835, 1.442695
        %v3839 = vpow.pop %v3838
        %v3840 = vadd.f32 %v3837, 1.0
        %v3841 = vadd.f32 %v3839, 1.0
        %v3842 = vrcp.pop %v3840
        %v3843 = vmul.f32 1.0, %v3842
        %v3844 = vrcp.pop %v3841
        %v3845 = vmul.f32 1.0, %v3844
        %v3846 = vtanh.pop %v3833
        %v3847 = vmul.f32 %v3843, %v3751
        %3849 = vrot.lane.b32.xlu0 %v3846, 64
        %v3850 = vpop.permute.xlu0 %3849
        %v3852 = vmul.f32 %v3843, %v3850
        %3854 = vrot.lane.b32.xlu0 %v3852, 64
        %v3855 = vpop.permute.xlu0 %3854
        %v3857 = vadd.f32 %v3847, %v3855
        %v3858 = vtanh.pop %v3857
        %3860 = vrot.lane.b32.xlu0 %v3858, 64
        %v3861 = vpop.permute.xlu0 %3860
        %v3863 = vmul.f32 %v3845, %v3861
        %3865 = vrot.lane.b32.xlu0 %v3863, 32
        %v3866 = vpop.permute.xlu0 %3865
        %v3868 = vsel %vm591, %v3121, %v3866
        %v3869 = vld [vmem:[%s11] sm:$0xff]
        %v3870 = vld [vmem:[%s11 + $0x8] sm:$0xff]
        %v3871 = vld [vmem:[%s11 + $0x10] sm:$0xff]
        %v3872 = vld [vmem:[%s11 + $0x18] sm:$0xff]
        %v3873 = vld [vmem:[%s11 + $0x20] sm:$0xff]
        %v3874 = vld [vmem:[%s11 + $0x28] sm:$0xff]
        %v3875 = vld [vmem:[%s11 + $0x30] sm:$0xff]
        %v3876 = vld [vmem:[%s11 + $0x38] sm:$0xff]
        %v3877 = vld [vmem:[%s12] sm:$0x1]
        %v3879 = vlaneseq
        %v3880 = vshrl.u32 %v3879, 7
        %v3881 = vsub.s32 0, %v3880
        %v3882 = vrot.slane %v3877, %v3881
        %v3885 = vsel %vm915, %v3868, 0
        %3887 = vmatprep.subr.mxu0 0.0
        %3888 = vmatpush1.msra.mxu0 0.0
        %3889 = vmatprep.subr.mxu0 0.0
        %3890 = vmatpush1.msra.mxu0 0.0
        %3891 = vmatprep.subr.mxu0 0.0
        %3892 = vmatpush1.msra.mxu0 0.0
        %3893 = vmatprep.subr.mxu0 0.0
        %3894 = vmatpush1.msra.mxu0 0.0
        %3895 = vmatprep.subr.mxu0 0.0
        %3896 = vmatpush1.msra.mxu0 0.0
        %3897 = vmatprep.subr.mxu0 0.0
        %3898 = vmatpush1.msra.mxu0 0.0
        %3899 = vmatprep.subr.mxu0 0.0
        %3900 = vmatpush1.msra.mxu0 0.0
        %3901 = vmatprep.subr.mxu0 0.0
        %3902 = vmatpush1.msra.mxu0 0.0
        %3903 = vmatprep.subr.mxu0 0.0
        %3904 = vmatpush1.msra.mxu0 %v3876
        %3905 = vmatprep.subr.mxu0 0.0
        %3906 = vmatpush1.msra.mxu0 %v3875
        %3907 = vmatprep.subr.mxu0 0.0
        %3908 = vmatpush1.msra.mxu0 %v3874
        %3909 = vmatprep.subr.mxu0 0.0
        %3910 = vmatpush1.msra.mxu0 %v3873
        %3911 = vmatprep.subr.mxu0 0.0
        %3912 = vmatpush1.msra.mxu0 %v3872
        %3913 = vmatprep.subr.mxu0 0.0
        %3914 = vmatpush1.msra.mxu0 %v3871
        %3915 = vmatprep.subr.mxu0 0.0
        %3916 = vmatpush1.msra.mxu0 %v3870
        %3917 = vmatprep.subr.mxu0 0.0
        %3918 = vmatpush1.msra.mxu0 %v3869
        %3919 = vmatprep.subr.mxu0 0.0
        %3920 = vmatpush2.msra.mxu0 0.0
        %3921 = vmatprep.subr.mxu0 0.0
        %3922 = vmatpush2.msra.mxu0 0.0
        %3923 = vmatprep.subr.mxu0 0.0
        %3924 = vmatpush2.msra.mxu0 0.0
        %3925 = vmatprep.subr.mxu0 0.0
        %3926 = vmatpush2.msra.mxu0 0.0
        %3927 = vmatprep.subr.mxu0 0.0
        %3928 = vmatpush2.msra.mxu0 0.0
        %3929 = vmatprep.subr.mxu0 0.0
        %3930 = vmatpush2.msra.mxu0 0.0
        %3931 = vmatprep.subr.mxu0 0.0
        %3932 = vmatpush2.msra.mxu0 0.0
        %3933 = vmatprep.subr.mxu0 0.0
        %3934 = vmatpush2.msra.mxu0 0.0
        %3935 = vmatprep.subr.mxu0 0.0
        %3936 = vmatpush2.msra.mxu0 0.0
        %3937 = vmatprep.subr.mxu0 0.0
        %3938 = vmatpush2.msra.mxu0 0.0
        %3939 = vmatprep.subr.mxu0 0.0
        %3940 = vmatpush2.msra.mxu0 0.0
        %3941 = vmatprep.subr.mxu0 0.0
        %3942 = vmatpush2.msra.mxu0 0.0
        %3943 = vmatprep.subr.mxu0 0.0
        %3944 = vmatpush2.msra.mxu0 0.0
        %3945 = vmatprep.subr.mxu0 0.0
        %3946 = vmatpush2.msra.mxu0 0.0
        %3947 = vmatprep.subr.mxu0 0.0
        %3948 = vmatpush2.msra.mxu0 0.0
        %3949 = vmatprep.subr.mxu0 0.0
        %3950 = vmatpush2.msra.mxu0 0.0
        %3951 = vmatprep.mubr.f32.mxu0 0.0
        %3952 = vmatmul.mubr.f32.gmra.mxu0 %v3885
        %v3953 = vpop.f32.mrf.mxu0
        %v3954 = vadd.f32 %v3882, %v3953
        %v3955 = vpop.f32.mrf.mxu0
        %3956 = vdwg.mxu0
        %3957 = vst [vmem:[%s528] sm:$0xff] %v3954
        %p3958 = scmp.lt.s32.totalorder %s28, 1
        %s3959 = scalar_select %p3958, %s28, 1
        %s3960 = smul.addr %s3959, 8
        %s3961 = scalar_lea.vmem %s13, %s3960
        // Predicated region
        $region97: #{simple_lstm_forward.1} parent=71 // pred_check
          %p3962 = pneg %p324
        $region98: #{simple_lstm_forward.1} parent=71 // pred_check_branch
          %3964 = sbr.rel (%p3962) target = $region100
        $region99: #{simple_lstm_forward.1} parent=71 // pred_region
          _
        $region100: #{simple_lstm_forward.1} parent=71 // pred_fallthru
          _
      $region72: #{simple_lstm_forward.1} parent=5 // pred_fallthru
        _
      %p3965 = scmp.le.s32.totalorder 2, %s23
      // Predicated region
      $region101: #{simple_lstm_forward.1} parent=5 // pred_check
        %p3966 = pneg %p3965
      $region102: #{simple_lstm_forward.1} parent=5 // pred_check_branch
        %3968 = sbr.rel (%p3966) target = $region104
      $region103: #{simple_lstm_forward.1} parent=5 // pred_region
        %s3969 = ssub.s32 %s23, 2
        // Predicated region
        $region105: #{simple_lstm_forward.1} parent=103 // pred_check
          %p3970 = pneg %p330
        $region106: #{simple_lstm_forward.1} parent=103 // pred_check_branch
          %3972 = sbr.rel (%p3970) target = $region108
        $region107: #{simple_lstm_forward.1} parent=103 // pred_region
          %p3973 = scmp.lt.s32.totalorder %s29, 1
          %s3974 = scalar_select %p3973, %s29, 1
          %s3975 = smul.addr %s3974, 8
          %s3976 = scalar_lea.vmem %s13, %s3975
        $region108: #{simple_lstm_forward.1} parent=103 // pred_fallthru
          _
      $region104: #{simple_lstm_forward.1} parent=5 // pred_fallthru
        _
    $region6: #{simple_lstm_forward.1} parent=1 // loop_footer
      %s27 = sadd.s32 1, %s23
    $region7: #{simple_lstm_forward.1} parent=1 // loop_footer_branch
      %22 = sbr.rel target = $region3
    $region8: #{simple_lstm_forward.1} parent=1 // loop_exit
      _
    %3977 = vsyncpa [#allocation3], 1
    %s3978 = scalar_lea.sflag [#allocation3], 1
    %3979 = vsyncpa %s3978, 1
    %3980 = vsyncpa [#allocation5], 1
    %3981 = vsyncpa [#allocation8], 1
    %3982 = vsyncpa [#allocation11], 1

</llo_original>
